<compile_context>
chip_gen: v6e
topology: v6e:2x2x1
jax: 0.10.0
libtpu: 0.0.40
codegen_flags: <defaults>
</compile_context>

<pallas_src>
import numpy as np

import jax
import jax.numpy as jnp
from jax.experimental import pallas as pl
from jax.experimental.pallas import tpu as pltpu

EPS = 1e-5  # nn.BatchNorm default eps


# --------------------------------------------------------------------------
# per-generation sizing helpers
# --------------------------------------------------------------------------
def _vmem_budget_bytes():
    """Scoped-VMEM request: half of physical per-core VMEM, capped at 64 MiB
    (v7x has 64 MiB/TC, v5e/v6e have 128 MiB)."""
    try:
        cap = int(pltpu.get_tpu_info().vmem_capacity_bytes)
    except Exception:
        try:
            kind = jax.devices()[0].device_kind.lower()
        except Exception:
            kind = ""
        cap = (64 << 20) if "v7" in kind else (128 << 20)
    return min(cap // 2, 64 << 20)


def _target_rows():
    """MXU output-row target: 128 on v5e and older (128x128 MXU),
    256 on v6e / v7x (256x256 MXU)."""
    try:
        kind = jax.devices()[0].device_kind.lower()
    except Exception:
        kind = ""
    return 128 if any(v in kind for v in ("v2", "v3", "v4", "v5")) else 256


def _pick_tile_d(N, D, HW, cin, cout, comp_isz, out_isz, budget_bytes, td_cap):
    """Largest depth tile (multiple of 8 dividing D, or D itself) under a VMEM
    footprint budget that accounts for the double-buffered blocks, the banded
    weights, the in-kernel tap slab and the f32 accumulator."""
    cands = sorted({t for t in range(8, D + 1, 8) if D % t == 0} | {D})

    def footprint(t):
        K = cin * (t + 2)
        R = cout * t
        fp = 2 * cin * t * HW * comp_isz          # x body block (dbl-buffered)
        fp += 2 * 2 * cin * HW * comp_isz         # halo-plane block
        fp += 2 * cout * t * HW * out_isz         # output block (dbl-buffered)
        fp += 2 * 9 * K * R * comp_isz            # banded weights (O(t^2))
        fp += 2 * 9 * HW * comp_isz               # lane masks
        fp += K * HW * comp_isz                   # assembled slab
        fp += 9 * K * HW * comp_isz               # concatenated taps (matmul RHS)
        fp += R * HW * 4                          # f32 accumulator
        fp += 2 * R * 2 * 4                       # stats block
        return fp + (2 << 20)                     # headroom

    fitting = [t for t in cands if footprint(t) <= budget_bytes]
    if not fitting:
        # TODO(synk): fall back to an H/W-tiled variant when even the smallest
        # depth tile blows the VMEM budget (very large H*W).
        return min(cands)
    capped = [t for t in fitting if t <= td_cap] or fitting
    if N == 1:
        # Keep >= 2 grid steps so a v7x megacore does not idle one TensorCore.
        two_step = [t for t in capped if D // t >= 2]
        if two_step:
            return max(two_step)
    return max(capped)


# --------------------------------------------------------------------------
# LUConv forward
# --------------------------------------------------------------------------
def luconv_forward(x, conv_w, conv_b, bn_gamma, bn_beta, *, act="relu",
                   eps=EPS, tile_d=None, compute_dtype=jnp.bfloat16):
    """x: (N, Cin, D, H, W) NCDHW; conv_w: (Cout, Cin, 3, 3, 3). Returns NCDHW."""
    if act != "relu":
        # TODO(synk): 'prelu' / 'elu' activation variants not implemented.
        raise NotImplementedError("only act='relu' is implemented")
    # A per-channel conv bias is mathematically cancelled by the immediately
    # following batch-statistics BN (mean absorbs it; shift compensates), so
    # it is dropped from the kernel entirely (one fewer VPU add / DMA stream).
    del conv_b
    # TODO(synk): ContBatchNorm3d's running_mean/var momentum update (module
    # buffer state) is not reproduced; only the forward activations are.

    N, Cin, D, H, W = x.shape
    Cout = conv_w.shape[0]
    HW = H * W
    out_dtype = x.dtype
    comp_isz = jnp.dtype(compute_dtype).itemsize
    out_isz = jnp.dtype(out_dtype).itemsize
    vmem_limit = int(_vmem_budget_bytes())

    if tile_d is None:
        td_cap = max(8, _target_rows() // Cout)
        tile_d = _pick_tile_d(N, D, HW, Cin, Cout, comp_isz, out_isz,
                              int(vmem_limit * 0.75), td_cap)
    tD = int(tile_d)
    assert D % tD == 0 and (tD == D or tD % 8 == 0), (D, tD)
    Dt = D // tD
    K = Cin * (tD + 2)   # contraction rows per tap (channels x halo'd planes)
    R = Cout * tD        # output rows per tile, ordered (cout, depth)

    # -------------------- wrapper-side prep (cheap XLA) ----------------------
    # x stays in its natural NCDHW channel-first layout; only flatten (H, W)
    # onto the lane axis and cast to the MXU operand dtype.
    x2 = x.reshape(N, Cin, D, HW).astype(compute_dtype)

    # Tiny per-tile depth-halo planes (true zeros at the D boundaries), laid
    # out (N, Dt, 2, Cin, HW) so the BlockSpec's last two dims are full dims.
    zero = jnp.zeros((N, Cin, 1, HW), compute_dtype)
    lo_planes = jnp.concatenate([zero, x2[:, :, tD - 1:D - 1:tD, :]], axis=2)
    hi_planes = jnp.concatenate([x2[:, :, tD:D:tD, :], zero], axis=2)
    halo = jnp.stack([lo_planes, hi_planes], axis=2).transpose(0, 3, 2, 1, 4)

    # Banded weights: fold the 3 depth taps into the contraction dim, then
    # permute columns to match the kernel-side RHS row order:
    #   rows [0, Cin*tD)           -> body plane (i, d)  == slab plane d+1
    #   rows [Cin*tD, Cin*tD+Cin)  -> lo halo plane of channel i (slab plane 0)
    #   rows [Cin*tD+Cin, K)       -> hi halo plane of channel i (slab plane tD+1)
    w32 = conv_w.astype(jnp.float32)
    eye = np.zeros((3, tD, tD + 2), np.float32)
    for kd in range(3):
        eye[kd, np.arange(tD), np.arange(tD) + kd] = 1.0
    bw = jnp.einsum("oikhw,kdp->hwodip", w32, jnp.asarray(eye)).reshape(9, R, K)
    order = ([i * (tD + 2) + dd + 1 for i in range(Cin) for dd in range(tD)]
             + [i * (tD + 2) for i in range(Cin)]
             + [i * (tD + 2) + tD + 1 for i in range(Cin)])
    bw = bw[:, :, np.asarray(order, np.int32)]
    bw9 = jnp.transpose(bw, (1, 0, 2)).reshape(R, 9 * K).astype(compute_dtype)

    # (kh, kw) lane shifts + zero-padding edge masks on the flattened H*W axis.
    shifts, needs_mask, mask_rows = [], [], []
    hh = np.arange(H)[:, None]
    ww = np.arange(W)[None, :]
    for kh in range(3):
        for kw in range(3):
            delta = (kh - 1) * W + (kw - 1)
            shifts.append(int((-delta) % HW))
            valid = ((hh + kh - 1 >= 0) & (hh + kh - 1 < H) &
                     (ww + kw - 1 >= 0) & (ww + kw - 1 < W))
            mask_rows.append(valid.reshape(1, HW).astype(np.float32))
            needs_mask.append(not bool(valid.all()))
    masks = jnp.asarray(np.stack(mask_rows, 0), dtype=compute_dtype)  # (9,1,HW)

    # -------------------- shared per-tile conv (both passes) -----------------
    def conv_tile(x_ref, halo_ref, bw_ref, mask_ref):
        body = x_ref[0].reshape(Cin * tD, HW)        # aligned merge (tD % 8 == 0)
        hal = halo_ref[0, 0].reshape(2 * Cin, HW)    # tiny
        slab = jnp.concatenate([body, hal], axis=0)  # (K, HW), aligned offsets
        taps = []
        for k in range(9):                           # static unroll
            xk = pltpu.roll(slab, shifts[k], 1) if shifts[k] else slab
            if needs_mask[k]:
                xk = xk * mask_ref[k]                # (1, HW) broadcast
            taps.append(xk)
        rhs = jnp.concatenate(taps, axis=0)          # (9K, HW)
        # single MXU dot, f32 accumulation
        return jnp.dot(bw_ref[...], rhs, preferred_element_type=jnp.float32)

    # -------------------- common specs / params ------------------------------
    x_spec = pl.BlockSpec((1, Cin, tD, HW), lambda n, d: (n, 0, d, 0))
    halo_spec = pl.BlockSpec((1, 1, 2, Cin, HW), lambda n, d: (n, d, 0, 0, 0))
    bw_spec = pl.BlockSpec((R, 9 * K), lambda n, d: (0, 0))
    mask_spec = pl.BlockSpec((9, 1, HW), lambda n, d: (0, 0, 0))

    flops = int(2 * N * D * HW * Cout * Cin * 27)
    x_bytes = (N * Cin * D * HW + N * Dt * 2 * Cin * HW) * comp_isz
    w_bytes = (R * 9 * K + 9 * HW) * comp_isz
    cparams = pltpu.CompilerParams(
        dimension_semantics=("parallel", "parallel"),
        vmem_limit_bytes=vmem_limit)

    # -------------------- pass 1: conv -> per-tile (sum, sumsq) --------------
    def stats_kernel(x_ref, halo_ref, bw_ref, mask_ref, stats_ref):
        acc = conv_tile(x_ref, halo_ref, bw_ref, mask_ref)          # (R,HW) f32
        stats_ref[0, 0] = jnp.concatenate(                          # one store
            [jnp.sum(acc, axis=1, keepdims=True),
             jnp.sum(acc * acc, axis=1, keepdims=True)], axis=1)    # (R, 2)

    stats = pl.pallas_call(
        stats_kernel,
        grid=(N, Dt),
        in_specs=[x_spec, halo_spec, bw_spec, mask_spec],
        out_specs=pl.BlockSpec((1, 1, R, 2), lambda n, d: (n, d, 0, 0)),
        out_shape=jax.ShapeDtypeStruct((N, Dt, R, 2), jnp.float32),
        compiler_params=cparams,
        cost_estimate=pl.CostEstimate(
            flops=flops, transcendentals=0,
            bytes_accessed=int(x_bytes + w_bytes + N * Dt * R * 2 * 4)),
    )(x2, halo, bw9, masks)

    # -------------- tiny XLA glue: finish BN reduction -> scale/shift --------
    s = stats.reshape(N, Dt, Cout, tD, 2).sum(axis=(0, 1, 3))        # (Cout, 2)
    cnt = float(N * D * H * W)
    mean = s[:, 0] / cnt
    var = jnp.maximum(s[:, 1] / cnt - mean * mean, 0.0)
    inv = jax.lax.rsqrt(var + eps)
    scale = bn_gamma.astype(jnp.float32) * inv
    shift = bn_beta.astype(jnp.float32) - mean * scale
    scale_rep = jnp.repeat(scale, tD)[:, None]                        # (R, 1)
    shift_rep = jnp.repeat(shift, tD)[:, None]

    # -------------------- pass 2: recompute conv, BN + ReLU ------------------
    def bn_relu_kernel(x_ref, halo_ref, bw_ref, mask_ref,
                       scale_ref, shift_ref, o_ref):
        acc = conv_tile(x_ref, halo_ref, bw_ref, mask_ref)           # (R,HW) f32
        z = jnp.maximum(acc * scale_ref[...] + shift_ref[...], 0.0)
        o_ref[0] = z.reshape(Cout, tD, HW).astype(o_ref.dtype)

    out = pl.pallas_call(
        bn_relu_kernel,
        grid=(N, Dt),
        in_specs=[x_spec, halo_spec, bw_spec, mask_spec,
                  pl.BlockSpec((R, 1), lambda n, d: (0, 0)),
                  pl.BlockSpec((R, 1), lambda n, d: (0, 0))],
        out_specs=pl.BlockSpec((1, Cout, tD, HW), lambda n, d: (n, 0, d, 0)),
        out_shape=jax.ShapeDtypeStruct((N, Cout, D, HW), out_dtype),
        compiler_params=cparams,
        cost_estimate=pl.CostEstimate(
            flops=flops, transcendentals=0,
            bytes_accessed=int(x_bytes + w_bytes + N * Cout * D * HW * out_isz)),
    )(x2, halo, bw9, masks, scale_rep, shift_rep)

    return out.reshape(N, Cout, D, H, W)


# --------------------------------------------------------------------------
# pure-JAX reference
# --------------------------------------------------------------------------
def _reference(x_ncdhw, conv_w, conv_b, bn_gamma, bn_beta):
    """LUConv forward (act='relu') reference."""
    y = jax.lax.conv_general_dilated(
        x_ncdhw.astype(jnp.float32), conv_w.astype(jnp.float32),
        window_strides=(1, 1, 1), padding=[(1, 1)] * 3,
        dimension_numbers=('NCDHW', 'OIDHW', 'NCDHW'))
    y = y + conv_b.reshape(1, -1, 1, 1, 1)
    mean = jnp.mean(y, axis=(0, 2, 3, 4), keepdims=True)
    var = jnp.mean((y - mean) ** 2, axis=(0, 2, 3, 4), keepdims=True)
    y = (y - mean) * jax.lax.rsqrt(var + EPS)
    y = y * bn_gamma.reshape(1, -1, 1, 1, 1) + bn_beta.reshape(1, -1, 1, 1, 1)
    return jnp.maximum(y, 0.0)


if __name__ == "__main__":
    # Shapes consistent with LUConv(in_chan=4, out_chan=8, act='relu').
    N, Cin, Cout, D, H, W = 2, 4, 8, 16, 8, 16

    key = jax.random.PRNGKey(0)
    kx, kw_, kb, kg, kbe = jax.random.split(key, 5)
    x = jax.random.normal(kx, (N, Cin, D, H, W), dtype=jnp.float32)
    conv_w = 0.1 * jax.random.normal(kw_, (Cout, Cin, 3, 3, 3), dtype=jnp.float32)
    conv_b = 0.1 * jax.random.normal(kb, (Cout,), dtype=jnp.float32)
    bn_gamma = 1.0 + 0.1 * jax.random.normal(kg, (Cout,), dtype=jnp.float32)
    bn_beta = 0.1 * jax.random.normal(kbe, (Cout,), dtype=jnp.float32)

    ref = _reference(x, conv_w, conv_b, bn_gamma, bn_beta)

    # f32 compute path: tight numerical check against the reference.
    fwd_f32 = jax.jit(lambda *a: luconv_forward(*a, compute_dtype=jnp.float32))
    out = jax.block_until_ready(fwd_f32(x, conv_w, conv_b, bn_gamma, bn_beta))
    assert out.shape == (N, Cout, D, H, W), out.shape
    err = float(jnp.max(jnp.abs(out - ref)))
    assert err < 1e-3, err

    # bf16 MXU-operand path (recommended on v6e/v7x): loose tolerance.
    fwd_bf16 = jax.jit(lambda *a: luconv_forward(*a, compute_dtype=jnp.bfloat16))
    out_bf16 = jax.block_until_ready(
        fwd_bf16(x, conv_w, conv_b, bn_gamma, bn_beta))
    err_bf16 = float(jnp.max(jnp.abs(out_bf16.astype(jnp.float32) - ref)))
    assert err_bf16 < 0.25, err_bf16

    print("KERNEL_OK")
</pallas_src>

<mosaic_0001>
module attributes {stable_mosaic.version = 11 : i64} {
  func.func @stats_kernel(%arg0: i32, %arg1: i32, %arg2: memref<1x4x16x128xf32, #tpu.memory_space<vmem>>, %arg3: memref<1x1x2x4x128xf32, #tpu.memory_space<vmem>>, %arg4: memref<128x648xf32, #tpu.memory_space<vmem>>, %arg5: memref<9x1x128xf32, #tpu.memory_space<vmem>>, %arg6: memref<1x1x128x2xf32, #tpu.memory_space<vmem>>) attributes {dimension_semantics = [#tpu.dimension_semantics<parallel>, #tpu.dimension_semantics<parallel>], iteration_bounds = array<i64: 2, 1>, scalar_prefetch = 0 : i64, scratch_operands = 0 : i64, tpu.core_type = #tpu.core_type<tc>, window_params = [{transform_indices = @transform_0, window_bounds = array<i64: 1, 4, 16, 128>}, {transform_indices = @transform_1, window_bounds = array<i64: 1, 1, 2, 4, 128>}, {pipeline_mode = #tpu.pipeline_mode<synchronous>, transform_indices = @transform_2, window_bounds = array<i64: 128, 648>}, {pipeline_mode = #tpu.pipeline_mode<synchronous>, transform_indices = @transform_3, window_bounds = array<i64: 9, 1, 128>}, {transform_indices = @transform_4, window_bounds = array<i64: 1, 1, 128, 2>}]} {
    %c0 = arith.constant 0 : index
    %c0_0 = arith.constant 0 : index
    %c0_1 = arith.constant 0 : index
    %c0_2 = arith.constant 0 : index
    %0 = vector.load %arg2[%c0, %c0_0, %c0_1, %c0_2] : memref<1x4x16x128xf32, #tpu.memory_space<vmem>>, vector<1x4x16x128xf32>
    %1 = vector.shape_cast %0 : vector<1x4x16x128xf32> to vector<4x16x128xf32>
    %2 = vector.shape_cast %1 : vector<4x16x128xf32> to vector<64x128xf32>
    %c0_3 = arith.constant 0 : index
    %c0_4 = arith.constant 0 : index
    %c0_5 = arith.constant 0 : index
    %c0_6 = arith.constant 0 : index
    %c0_7 = arith.constant 0 : index
    %3 = vector.load %arg3[%c0_3, %c0_4, %c0_5, %c0_6, %c0_7] : memref<1x1x2x4x128xf32, #tpu.memory_space<vmem>>, vector<1x1x2x4x128xf32>
    %4 = vector.shape_cast %3 : vector<1x1x2x4x128xf32> to vector<2x4x128xf32>
    %5 = vector.shape_cast %4 : vector<2x4x128xf32> to vector<8x128xf32>
    %6 = tpu.concatenate %2, %5 in 0 : vector<64x128xf32>, vector<8x128xf32> -> vector<72x128xf32>
    %c17_i32 = arith.constant 17 : i32
    %7 = tpu.dynamic_rotate %6 by %c17_i32 dim 1 : vector<72x128xf32>, i32 -> vector<72x128xf32>
    %c0_8 = arith.constant 0 : index
    %c0_9 = arith.constant 0 : index
    %c0_10 = arith.constant 0 : index
    %8 = vector.load %arg5[%c0_8, %c0_9, %c0_10] : memref<9x1x128xf32, #tpu.memory_space<vmem>>, vector<1x1x128xf32>
    %9 = vector.shape_cast %8 : vector<1x1x128xf32> to vector<1x128xf32>
    %10 = vector.broadcast %9 : vector<1x128xf32> to vector<72x128xf32>
    %11 = arith.mulf %7, %10 : vector<72x128xf32>
    %c16_i32 = arith.constant 16 : i32
    %12 = tpu.dynamic_rotate %6 by %c16_i32 dim 1 : vector<72x128xf32>, i32 -> vector<72x128xf32>
    %c1 = arith.constant 1 : index
    %c0_11 = arith.constant 0 : index
    %c0_12 = arith.constant 0 : index
    %13 = vector.load %arg5[%c1, %c0_11, %c0_12] : memref<9x1x128xf32, #tpu.memory_space<vmem>>, vector<1x1x128xf32>
    %14 = vector.shape_cast %13 : vector<1x1x128xf32> to vector<1x128xf32>
    %15 = vector.broadcast %14 : vector<1x128xf32> to vector<72x128xf32>
    %16 = arith.mulf %12, %15 : vector<72x128xf32>
    %c15_i32 = arith.constant 15 : i32
    %17 = tpu.dynamic_rotate %6 by %c15_i32 dim 1 : vector<72x128xf32>, i32 -> vector<72x128xf32>
    %c2 = arith.constant 2 : index
    %c0_13 = arith.constant 0 : index
    %c0_14 = arith.constant 0 : index
    %18 = vector.load %arg5[%c2, %c0_13, %c0_14] : memref<9x1x128xf32, #tpu.memory_space<vmem>>, vector<1x1x128xf32>
    %19 = vector.shape_cast %18 : vector<1x1x128xf32> to vector<1x128xf32>
    %20 = vector.broadcast %19 : vector<1x128xf32> to vector<72x128xf32>
    %21 = arith.mulf %17, %20 : vector<72x128xf32>
    %c1_i32 = arith.constant 1 : i32
    %22 = tpu.dynamic_rotate %6 by %c1_i32 dim 1 : vector<72x128xf32>, i32 -> vector<72x128xf32>
    %c3 = arith.constant 3 : index
    %c0_15 = arith.constant 0 : index
    %c0_16 = arith.constant 0 : index
    %23 = vector.load %arg5[%c3, %c0_15, %c0_16] : memref<9x1x128xf32, #tpu.memory_space<vmem>>, vector<1x1x128xf32>
    %24 = vector.shape_cast %23 : vector<1x1x128xf32> to vector<1x128xf32>
    %25 = vector.broadcast %24 : vector<1x128xf32> to vector<72x128xf32>
    %26 = arith.mulf %22, %25 : vector<72x128xf32>
    %c127_i32 = arith.constant 127 : i32
    %27 = tpu.dynamic_rotate %6 by %c127_i32 dim 1 : vector<72x128xf32>, i32 -> vector<72x128xf32>
    %c5 = arith.constant 5 : index
    %c0_17 = arith.constant 0 : index
    %c0_18 = arith.constant 0 : index
    %28 = vector.load %arg5[%c5, %c0_17, %c0_18] : memref<9x1x128xf32, #tpu.memory_space<vmem>>, vector<1x1x128xf32>
    %29 = vector.shape_cast %28 : vector<1x1x128xf32> to vector<1x128xf32>
    %30 = vector.broadcast %29 : vector<1x128xf32> to vector<72x128xf32>
    %31 = arith.mulf %27, %30 : vector<72x128xf32>
    %c113_i32 = arith.constant 113 : i32
    %32 = tpu.dynamic_rotate %6 by %c113_i32 dim 1 : vector<72x128xf32>, i32 -> vector<72x128xf32>
    %c6 = arith.constant 6 : index
    %c0_19 = arith.constant 0 : index
    %c0_20 = arith.constant 0 : index
    %33 = vector.load %arg5[%c6, %c0_19, %c0_20] : memref<9x1x128xf32, #tpu.memory_space<vmem>>, vector<1x1x128xf32>
    %34 = vector.shape_cast %33 : vector<1x1x128xf32> to vector<1x128xf32>
    %35 = vector.broadcast %34 : vector<1x128xf32> to vector<72x128xf32>
    %36 = arith.mulf %32, %35 : vector<72x128xf32>
    %c112_i32 = arith.constant 112 : i32
    %37 = tpu.dynamic_rotate %6 by %c112_i32 dim 1 : vector<72x128xf32>, i32 -> vector<72x128xf32>
    %c7 = arith.constant 7 : index
    %c0_21 = arith.constant 0 : index
    %c0_22 = arith.constant 0 : index
    %38 = vector.load %arg5[%c7, %c0_21, %c0_22] : memref<9x1x128xf32, #tpu.memory_space<vmem>>, vector<1x1x128xf32>
    %39 = vector.shape_cast %38 : vector<1x1x128xf32> to vector<1x128xf32>
    %40 = vector.broadcast %39 : vector<1x128xf32> to vector<72x128xf32>
    %41 = arith.mulf %37, %40 : vector<72x128xf32>
    %c111_i32 = arith.constant 111 : i32
    %42 = tpu.dynamic_rotate %6 by %c111_i32 dim 1 : vector<72x128xf32>, i32 -> vector<72x128xf32>
    %c8 = arith.constant 8 : index
    %c0_23 = arith.constant 0 : index
    %c0_24 = arith.constant 0 : index
    %43 = vector.load %arg5[%c8, %c0_23, %c0_24] : memref<9x1x128xf32, #tpu.memory_space<vmem>>, vector<1x1x128xf32>
    %44 = vector.shape_cast %43 : vector<1x1x128xf32> to vector<1x128xf32>
    %45 = vector.broadcast %44 : vector<1x128xf32> to vector<72x128xf32>
    %46 = arith.mulf %42, %45 : vector<72x128xf32>
    %47 = tpu.concatenate %11, %16, %21, %26, %6, %31, %36, %41, %46 in 0 : vector<72x128xf32>, vector<72x128xf32>, vector<72x128xf32>, vector<72x128xf32>, vector<72x128xf32>, vector<72x128xf32>, vector<72x128xf32>, vector<72x128xf32>, vector<72x128xf32> -> vector<648x128xf32>
    %c0_25 = arith.constant 0 : index
    %c0_26 = arith.constant 0 : index
    %48 = vector.load %arg4[%c0_25, %c0_26] : memref<128x648xf32, #tpu.memory_space<vmem>>, vector<128x648xf32>
    %cst = arith.constant dense<0.000000e+00> : vector<128x128xf32>
    %49 = tpu.matmul %48, %47, %cst {dimension_numbers = #tpu.dot_dimension_numbers<[1], [0], [0], [1], [0, 0, 1, 1], [], []>} : vector<128x648xf32>, vector<648x128xf32>, vector<128x128xf32> -> vector<128x128xf32>
    %cst_27 = arith.constant dense<0.000000e+00> : vector<128xf32>
    %50 = vector.multi_reduction <add>, %49, %cst_27 [1] : vector<128x128xf32> to vector<128xf32>
    %51 = vector.shape_cast %50 : vector<128xf32> to vector<128x1xf32>
    %52 = arith.mulf %49, %49 : vector<128x128xf32>
    %cst_28 = arith.constant dense<0.000000e+00> : vector<128xf32>
    %53 = vector.multi_reduction <add>, %52, %cst_28 [1] : vector<128x128xf32> to vector<128xf32>
    %54 = vector.shape_cast %53 : vector<128xf32> to vector<128x1xf32>
    %55 = tpu.concatenate %51, %54 in 1 : vector<128x1xf32>, vector<128x1xf32> -> vector<128x2xf32>
    %c0_29 = arith.constant 0 : index
    %c0_30 = arith.constant 0 : index
    %c0_31 = arith.constant 0 : index
    %c0_32 = arith.constant 0 : index
    %56 = vector.load %arg6[%c0_29, %c0_30, %c0_31, %c0_32] : memref<1x1x128x2xf32, #tpu.memory_space<vmem>>, vector<1x1x128x2xf32>
    %57 = vector.shape_cast %56 : vector<1x1x128x2xf32> to vector<128x2xf32>
    %58 = vector.shape_cast %55 : vector<128x2xf32> to vector<1x1x128x2xf32>
    tpu.vector_store %arg6[%c0_29, %c0_30, %c0_31, %c0_32], %58 {strides = array<i32>} : memref<1x1x128x2xf32, #tpu.memory_space<vmem>>, vector<1x1x128x2xf32>,
    return
  }
  func.func @transform_0(%arg0: i32, %arg1: i32) -> (i32, i32, i32, i32) {
    %c0_i32 = arith.constant 0 : i32
    %c0_i32_0 = arith.constant 0 : i32
    %c0_i32_1 = arith.constant 0 : i32
    return %arg0, %c0_i32, %arg1, %c0_i32_0 : i32, i32, i32, i32
  }
  func.func @transform_1(%arg0: i32, %arg1: i32) -> (i32, i32, i32, i32, i32) {
    %c0_i32 = arith.constant 0 : i32
    %c0_i32_0 = arith.constant 0 : i32
    %c0_i32_1 = arith.constant 0 : i32
    %c0_i32_2 = arith.constant 0 : i32
    return %arg0, %arg1, %c0_i32, %c0_i32_0, %c0_i32_1 : i32, i32, i32, i32, i32
  }
  func.func @transform_2(%arg0: i32, %arg1: i32) -> (i32, i32) {
    %c0_i32 = arith.constant 0 : i32
    %c0_i32_0 = arith.constant 0 : i32
    %c0_i32_1 = arith.constant 0 : i32
    return %c0_i32, %c0_i32_0 : i32, i32
  }
  func.func @transform_3(%arg0: i32, %arg1: i32) -> (i32, i32, i32) {
    %c0_i32 = arith.constant 0 : i32
    %c0_i32_0 = arith.constant 0 : i32
    %c0_i32_1 = arith.constant 0 : i32
    %c0_i32_2 = arith.constant 0 : i32
    return %c0_i32, %c0_i32_0, %c0_i32_1 : i32, i32, i32
  }
  func.func @transform_4(%arg0: i32, %arg1: i32) -> (i32, i32, i32, i32) {
    %c0_i32 = arith.constant 0 : i32
    %c0_i32_0 = arith.constant 0 : i32
    %c0_i32_1 = arith.constant 0 : i32
    return %arg0, %arg1, %c0_i32, %c0_i32_0 : i32, i32, i32, i32
  }
}

module attributes {stable_mosaic.version = 11 : i64} {
  func.func @bn_relu_kernel(%arg0: i32, %arg1: i32, %arg2: memref<1x4x16x128xf32, #tpu.memory_space<vmem>>, %arg3: memref<1x1x2x4x128xf32, #tpu.memory_space<vmem>>, %arg4: memref<128x648xf32, #tpu.memory_space<vmem>>, %arg5: memref<9x1x128xf32, #tpu.memory_space<vmem>>, %arg6: memref<128x1xf32, #tpu.memory_space<vmem>>, %arg7: memref<128x1xf32, #tpu.memory_space<vmem>>, %arg8: memref<1x8x16x128xf32, #tpu.memory_space<vmem>>) attributes {dimension_semantics = [#tpu.dimension_semantics<parallel>, #tpu.dimension_semantics<parallel>], iteration_bounds = array<i64: 2, 1>, scalar_prefetch = 0 : i64, scratch_operands = 0 : i64, tpu.core_type = #tpu.core_type<tc>, window_params = [{transform_indices = @transform_0, window_bounds = array<i64: 1, 4, 16, 128>}, {transform_indices = @transform_1, window_bounds = array<i64: 1, 1, 2, 4, 128>}, {pipeline_mode = #tpu.pipeline_mode<synchronous>, transform_indices = @transform_2, window_bounds = array<i64: 128, 648>}, {pipeline_mode = #tpu.pipeline_mode<synchronous>, transform_indices = @transform_3, window_bounds = array<i64: 9, 1, 128>}, {pipeline_mode = #tpu.pipeline_mode<synchronous>, transform_indices = @transform_4, window_bounds = array<i64: 128, 1>}, {pipeline_mode = #tpu.pipeline_mode<synchronous>, transform_indices = @transform_5, window_bounds = array<i64: 128, 1>}, {transform_indices = @transform_6, window_bounds = array<i64: 1, 8, 16, 128>}]} {
    %c0 = arith.constant 0 : index
    %c0_0 = arith.constant 0 : index
    %c0_1 = arith.constant 0 : index
    %c0_2 = arith.constant 0 : index
    %0 = vector.load %arg2[%c0, %c0_0, %c0_1, %c0_2] : memref<1x4x16x128xf32, #tpu.memory_space<vmem>>, vector<1x4x16x128xf32>
    %1 = vector.shape_cast %0 : vector<1x4x16x128xf32> to vector<4x16x128xf32>
    %2 = vector.shape_cast %1 : vector<4x16x128xf32> to vector<64x128xf32>
    %c0_3 = arith.constant 0 : index
    %c0_4 = arith.constant 0 : index
    %c0_5 = arith.constant 0 : index
    %c0_6 = arith.constant 0 : index
    %c0_7 = arith.constant 0 : index
    %3 = vector.load %arg3[%c0_3, %c0_4, %c0_5, %c0_6, %c0_7] : memref<1x1x2x4x128xf32, #tpu.memory_space<vmem>>, vector<1x1x2x4x128xf32>
    %4 = vector.shape_cast %3 : vector<1x1x2x4x128xf32> to vector<2x4x128xf32>
    %5 = vector.shape_cast %4 : vector<2x4x128xf32> to vector<8x128xf32>
    %6 = tpu.concatenate %2, %5 in 0 : vector<64x128xf32>, vector<8x128xf32> -> vector<72x128xf32>
    %c17_i32 = arith.constant 17 : i32
    %7 = tpu.dynamic_rotate %6 by %c17_i32 dim 1 : vector<72x128xf32>, i32 -> vector<72x128xf32>
    %c0_8 = arith.constant 0 : index
    %c0_9 = arith.constant 0 : index
    %c0_10 = arith.constant 0 : index
    %8 = vector.load %arg5[%c0_8, %c0_9, %c0_10] : memref<9x1x128xf32, #tpu.memory_space<vmem>>, vector<1x1x128xf32>
    %9 = vector.shape_cast %8 : vector<1x1x128xf32> to vector<1x128xf32>
    %10 = vector.broadcast %9 : vector<1x128xf32> to vector<72x128xf32>
    %11 = arith.mulf %7, %10 : vector<72x128xf32>
    %c16_i32 = arith.constant 16 : i32
    %12 = tpu.dynamic_rotate %6 by %c16_i32 dim 1 : vector<72x128xf32>, i32 -> vector<72x128xf32>
    %c1 = arith.constant 1 : index
    %c0_11 = arith.constant 0 : index
    %c0_12 = arith.constant 0 : index
    %13 = vector.load %arg5[%c1, %c0_11, %c0_12] : memref<9x1x128xf32, #tpu.memory_space<vmem>>, vector<1x1x128xf32>
    %14 = vector.shape_cast %13 : vector<1x1x128xf32> to vector<1x128xf32>
    %15 = vector.broadcast %14 : vector<1x128xf32> to vector<72x128xf32>
    %16 = arith.mulf %12, %15 : vector<72x128xf32>
    %c15_i32 = arith.constant 15 : i32
    %17 = tpu.dynamic_rotate %6 by %c15_i32 dim 1 : vector<72x128xf32>, i32 -> vector<72x128xf32>
    %c2 = arith.constant 2 : index
    %c0_13 = arith.constant 0 : index
    %c0_14 = arith.constant 0 : index
    %18 = vector.load %arg5[%c2, %c0_13, %c0_14] : memref<9x1x128xf32, #tpu.memory_space<vmem>>, vector<1x1x128xf32>
    %19 = vector.shape_cast %18 : vector<1x1x128xf32> to vector<1x128xf32>
    %20 = vector.broadcast %19 : vector<1x128xf32> to vector<72x128xf32>
    %21 = arith.mulf %17, %20 : vector<72x128xf32>
    %c1_i32 = arith.constant 1 : i32
    %22 = tpu.dynamic_rotate %6 by %c1_i32 dim 1 : vector<72x128xf32>, i32 -> vector<72x128xf32>
    %c3 = arith.constant 3 : index
    %c0_15 = arith.constant 0 : index
    %c0_16 = arith.constant 0 : index
    %23 = vector.load %arg5[%c3, %c0_15, %c0_16] : memref<9x1x128xf32, #tpu.memory_space<vmem>>, vector<1x1x128xf32>
    %24 = vector.shape_cast %23 : vector<1x1x128xf32> to vector<1x128xf32>
    %25 = vector.broadcast %24 : vector<1x128xf32> to vector<72x128xf32>
    %26 = arith.mulf %22, %25 : vector<72x128xf32>
    %c127_i32 = arith.constant 127 : i32
    %27 = tpu.dynamic_rotate %6 by %c127_i32 dim 1 : vector<72x128xf32>, i32 -> vector<72x128xf32>
    %c5 = arith.constant 5 : index
    %c0_17 = arith.constant 0 : index
    %c0_18 = arith.constant 0 : index
    %28 = vector.load %arg5[%c5, %c0_17, %c0_18] : memref<9x1x128xf32, #tpu.memory_space<vmem>>, vector<1x1x128xf32>
    %29 = vector.shape_cast %28 : vector<1x1x128xf32> to vector<1x128xf32>
    %30 = vector.broadcast %29 : vector<1x128xf32> to vector<72x128xf32>
    %31 = arith.mulf %27, %30 : vector<72x128xf32>
    %c113_i32 = arith.constant 113 : i32
    %32 = tpu.dynamic_rotate %6 by %c113_i32 dim 1 : vector<72x128xf32>, i32 -> vector<72x128xf32>
    %c6 = arith.constant 6 : index
    %c0_19 = arith.constant 0 : index
    %c0_20 = arith.constant 0 : index
    %33 = vector.load %arg5[%c6, %c0_19, %c0_20] : memref<9x1x128xf32, #tpu.memory_space<vmem>>, vector<1x1x128xf32>
    %34 = vector.shape_cast %33 : vector<1x1x128xf32> to vector<1x128xf32>
    %35 = vector.broadcast %34 : vector<1x128xf32> to vector<72x128xf32>
    %36 = arith.mulf %32, %35 : vector<72x128xf32>
    %c112_i32 = arith.constant 112 : i32
    %37 = tpu.dynamic_rotate %6 by %c112_i32 dim 1 : vector<72x128xf32>, i32 -> vector<72x128xf32>
    %c7 = arith.constant 7 : index
    %c0_21 = arith.constant 0 : index
    %c0_22 = arith.constant 0 : index
    %38 = vector.load %arg5[%c7, %c0_21, %c0_22] : memref<9x1x128xf32, #tpu.memory_space<vmem>>, vector<1x1x128xf32>
    %39 = vector.shape_cast %38 : vector<1x1x128xf32> to vector<1x128xf32>
    %40 = vector.broadcast %39 : vector<1x128xf32> to vector<72x128xf32>
    %41 = arith.mulf %37, %40 : vector<72x128xf32>
    %c111_i32 = arith.constant 111 : i32
    %42 = tpu.dynamic_rotate %6 by %c111_i32 dim 1 : vector<72x128xf32>, i32 -> vector<72x128xf32>
    %c8 = arith.constant 8 : index
    %c0_23 = arith.constant 0 : index
    %c0_24 = arith.constant 0 : index
    %43 = vector.load %arg5[%c8, %c0_23, %c0_24] : memref<9x1x128xf32, #tpu.memory_space<vmem>>, vector<1x1x128xf32>
    %44 = vector.shape_cast %43 : vector<1x1x128xf32> to vector<1x128xf32>
    %45 = vector.broadcast %44 : vector<1x128xf32> to vector<72x128xf32>
    %46 = arith.mulf %42, %45 : vector<72x128xf32>
    %47 = tpu.concatenate %11, %16, %21, %26, %6, %31, %36, %41, %46 in 0 : vector<72x128xf32>, vector<72x128xf32>, vector<72x128xf32>, vector<72x128xf32>, vector<72x128xf32>, vector<72x128xf32>, vector<72x128xf32>, vector<72x128xf32>, vector<72x128xf32> -> vector<648x128xf32>
    %c0_25 = arith.constant 0 : index
    %c0_26 = arith.constant 0 : index
    %48 = vector.load %arg4[%c0_25, %c0_26] : memref<128x648xf32, #tpu.memory_space<vmem>>, vector<128x648xf32>
    %cst = arith.constant dense<0.000000e+00> : vector<128x128xf32>
    %49 = tpu.matmul %48, %47, %cst {dimension_numbers = #tpu.dot_dimension_numbers<[1], [0], [0], [1], [0, 0, 1, 1], [], []>} : vector<128x648xf32>, vector<648x128xf32>, vector<128x128xf32> -> vector<128x128xf32>
    %c0_27 = arith.constant 0 : index
    %c0_28 = arith.constant 0 : index
    %50 = vector.load %arg6[%c0_27, %c0_28] : memref<128x1xf32, #tpu.memory_space<vmem>>, vector<128x1xf32>
    %51 = vector.broadcast %50 : vector<128x1xf32> to vector<128x128xf32>
    %52 = arith.mulf %49, %51 : vector<128x128xf32>
    %c0_29 = arith.constant 0 : index
    %c0_30 = arith.constant 0 : index
    %53 = vector.load %arg7[%c0_29, %c0_30] : memref<128x1xf32, #tpu.memory_space<vmem>>, vector<128x1xf32>
    %54 = vector.broadcast %53 : vector<128x1xf32> to vector<128x128xf32>
    %55 = arith.addf %52, %54 : vector<128x128xf32>
    %cst_31 = arith.constant 0.000000e+00 : f32
    %56 = vector.broadcast %cst_31 : f32 to vector<128x128xf32>
    %57 = arith.maximumf %55, %56 : vector<128x128xf32>
    %58 = vector.shape_cast %57 : vector<128x128xf32> to vector<8x16x128xf32>
    %c0_32 = arith.constant 0 : index
    %c0_33 = arith.constant 0 : index
    %c0_34 = arith.constant 0 : index
    %c0_35 = arith.constant 0 : index
    %59 = vector.load %arg8[%c0_32, %c0_33, %c0_34, %c0_35] : memref<1x8x16x128xf32, #tpu.memory_space<vmem>>, vector<1x8x16x128xf32>
    %60 = vector.shape_cast %59 : vector<1x8x16x128xf32> to vector<8x16x128xf32>
    %61 = vector.shape_cast %58 : vector<8x16x128xf32> to vector<1x8x16x128xf32>
    tpu.vector_store %arg8[%c0_32, %c0_33, %c0_34, %c0_35], %61 {strides = array<i32>} : memref<1x8x16x128xf32, #tpu.memory_space<vmem>>, vector<1x8x16x128xf32>,
    return
  }
  func.func @transform_0(%arg0: i32, %arg1: i32) -> (i32, i32, i32, i32) {
    %c0_i32 = arith.constant 0 : i32
    %c0_i32_0 = arith.constant 0 : i32
    %c0_i32_1 = arith.constant 0 : i32
    return %arg0, %c0_i32, %arg1, %c0_i32_0 : i32, i32, i32, i32
  }
  func.func @transform_1(%arg0: i32, %arg1: i32) -> (i32, i32, i32, i32, i32) {
    %c0_i32 = arith.constant 0 : i32
    %c0_i32_0 = arith.constant 0 : i32
    %c0_i32_1 = arith.constant 0 : i32
    %c0_i32_2 = arith.constant 0 : i32
    return %arg0, %arg1, %c0_i32, %c0_i32_0, %c0_i32_1 : i32, i32, i32, i32, i32
  }
  func.func @transform_2(%arg0: i32, %arg1: i32) -> (i32, i32) {
    %c0_i32 = arith.constant 0 : i32
    %c0_i32_0 = arith.constant 0 : i32
    %c0_i32_1 = arith.constant 0 : i32
    return %c0_i32, %c0_i32_0 : i32, i32
  }
  func.func @transform_3(%arg0: i32, %arg1: i32) -> (i32, i32, i32) {
    %c0_i32 = arith.constant 0 : i32
    %c0_i32_0 = arith.constant 0 : i32
    %c0_i32_1 = arith.constant 0 : i32
    %c0_i32_2 = arith.constant 0 : i32
    return %c0_i32, %c0_i32_0, %c0_i32_1 : i32, i32, i32
  }
  func.func @transform_4(%arg0: i32, %arg1: i32) -> (i32, i32) {
    %c0_i32 = arith.constant 0 : i32
    %c0_i32_0 = arith.constant 0 : i32
    %c0_i32_1 = arith.constant 0 : i32
    return %c0_i32, %c0_i32_0 : i32, i32
  }
  func.func @transform_5(%arg0: i32, %arg1: i32) -> (i32, i32) {
    %c0_i32 = arith.constant 0 : i32
    %c0_i32_0 = arith.constant 0 : i32
    %c0_i32_1 = arith.constant 0 : i32
    return %c0_i32, %c0_i32_0 : i32, i32
  }
  func.func @transform_6(%arg0: i32, %arg1: i32) -> (i32, i32, i32, i32) {
    %c0_i32 = arith.constant 0 : i32
    %c0_i32_0 = arith.constant 0 : i32
    %c0_i32_1 = arith.constant 0 : i32
    return %arg0, %c0_i32, %arg1, %c0_i32_0 : i32, i32, i32, i32
  }
}

</mosaic_0001>

<llo_original>
// kernel: _lambda_.2
$region0: #{_lambda_.2}
  #allocation0 [shape = 'u32[]', space=smem, size = 0x4, offset = 0x4, fixed_abs, tag = 'smem constant byte address 0x4 - core index']
  #allocation1 [shape = 'u32[144,128]{1,0:T(1,128)}', space=vmem, size = 0x12000, scoped, tag = 'internal scratch']
  %s0 = inlined_call_operand.vmem [shape: f32[2,4,16,128], index: 0, kind: input, shape index: {}]
  %s1 = inlined_call_operand.vmem [shape: f32[2,1,2,4,128], index: 1, kind: input, shape index: {}]
  %s2 = inlined_call_operand.vmem [shape: f32[128,648], index: 2, kind: input, shape index: {}]
  %s3 = inlined_call_operand.vmem [shape: f32[9,1,128], index: 3, kind: input, shape index: {}]
  %s4 = inlined_call_operand.vmem [shape: f32[2,1,128,2], index: 4, kind: output, shape index: {}]
  %s5 = sld [smem:[#allocation0]]
  $region49: #{_lambda_.2} parent=0
    _
  %s7 = ssub.s32 1, %s5
  %s8 = scalar_select 0, %s7, %s5
  loop: start=0, step=1, limit=4
  $region2: #{_lambda_.2} parent=0 // loop_pre_header
    _
  $region3: #{_lambda_.2} parent=0 // loop_header
    %s10 = sphi 0, %s14
    %p11 = scmp.ge.s32.totalorder %s10, 4
    %s17 = sphi 0, %s29
    %s18 = sphi 0, %s25
    %s19 = sphi 0, %s17
    %s20 = sphi 0, %s18
    %s21 = sphi 0, %s19
    %s22 = sphi 0, %s20
    %s34 = sphi 0, %s36
    %s37 = sphi 0, %s34
    %s38 = sphi 0, %s37
    %s54 = sphi 0, %s38
    %s62 = sphi 0, %s64
    %s65 = sphi 0, %s62
    %s66 = sphi 0, %s65
    %s82 = sphi 0, %s66
    %s86 = sphi 0, %s86
    %s88 = sphi 0, %s86
    %s89 = sphi 0, %s88
    %s103 = sphi 0, %s89
    %s107 = sphi 0, %s107
    %s109 = sphi 0, %s107
    %s110 = sphi 0, %s109
    %s124 = sphi 0, %s110
    %s132 = sphi 0, %s134
    %s135 = sphi 0, %s132
    %s136 = sphi 0, %s135
    %s152 = sphi 0, %s136
  $region4: #{_lambda_.2} parent=0 // loop_header_branch
    %13 = sbr.rel (%p11) target = $region8
  $region5: #{_lambda_.2} parent=0 // loop_body
    %s15 = ssub.s32 %s10, 1
    %s16 = ssub.s32 %s10, 2
    %s23 = sadd.s32 1, %s18
    %p24 = scmp.ge.s32.totalorder %s23, 1
    %s25 = scalar_select %p24, 0, %s23
    %s26 = sadd.s32 1, %s17
    %s27 = scalar_select %p24, %s26, %s17
    %p28 = scmp.ge.s32.totalorder %s27, 2
    %s29 = scalar_select %p28, 0, %s27
    %s30 = ssub.s32 %s17, %s29
    %s31 = ssub.s32 %s18, %s25
    %s32 = sor.u32 %s30, %s31
    %p33 = scmp.eq.s32.totalorder %s32, 0
    %s35 = sadd.s32 %s34, 1
    %s36 = scalar_select %p33, %s34, %s35
    %p39 = pneg %p33
    %p40 = scmp.eq.s32.totalorder %s10, 1
    %p41 = por %p39, %p40
    %p42 = scmp.ne.s32.totalorder %s34, %s37
    %p43 = scmp.eq.s32.totalorder %s10, 0
    %p44 = por %p42, %p43
    %p45 = scmp.ne.s32.totalorder %s34, %s37
    %p46 = scmp.eq.s32.totalorder %s15, 1
    %p47 = por %p45, %p46
    %p48 = scmp.ne.s32.totalorder %s37, %s38
    %p49 = scmp.eq.s32.totalorder %s15, 0
    %p50 = por %p48, %p49
    %p51 = scmp.ne.s32.totalorder %s37, %s38
    %p52 = scmp.eq.s32.totalorder %s16, 1
    %p53 = por %p51, %p52
    %p55 = scmp.ne.s32.totalorder %s38, %s54
    %p56 = scmp.eq.s32.totalorder %s16, 0
    %p57 = por %p55, %p56
    %s58 = ssub.s32 %s17, %s29
    %s59 = ssub.s32 %s18, %s25
    %s60 = sor.u32 %s58, %s59
    %p61 = scmp.eq.s32.totalorder %s60, 0
    %s63 = sadd.s32 %s62, 1
    %s64 = scalar_select %p61, %s62, %s63
    %p67 = pneg %p61
    %p68 = scmp.eq.s32.totalorder %s10, 1
    %p69 = por %p67, %p68
    %p70 = scmp.ne.s32.totalorder %s62, %s65
    %p71 = scmp.eq.s32.totalorder %s10, 0
    %p72 = por %p70, %p71
    %p73 = scmp.ne.s32.totalorder %s62, %s65
    %p74 = scmp.eq.s32.totalorder %s15, 1
    %p75 = por %p73, %p74
    %p76 = scmp.ne.s32.totalorder %s65, %s66
    %p77 = scmp.eq.s32.totalorder %s15, 0
    %p78 = por %p76, %p77
    %p79 = scmp.ne.s32.totalorder %s65, %s66
    %p80 = scmp.eq.s32.totalorder %s16, 1
    %p81 = por %p79, %p80
    %p83 = scmp.ne.s32.totalorder %s66, %s82
    %p84 = scmp.eq.s32.totalorder %s16, 0
    %p85 = por %p83, %p84
    %s87 = sadd.s32 %s86, 1
    %p90 = scmp.eq.s32.totalorder %s10, 1
    %p91 = scmp.ne.s32.totalorder %s86, %s88
    %p92 = scmp.eq.s32.totalorder %s10, 0
    %p93 = por %p91, %p92
    %p94 = scmp.ne.s32.totalorder %s86, %s88
    %p95 = scmp.eq.s32.totalorder %s15, 1
    %p96 = por %p94, %p95
    %p97 = scmp.ne.s32.totalorder %s88, %s89
    %p98 = scmp.eq.s32.totalorder %s15, 0
    %p99 = por %p97, %p98
    %p100 = scmp.ne.s32.totalorder %s88, %s89
    %p101 = scmp.eq.s32.totalorder %s16, 1
    %p102 = por %p100, %p101
    %p104 = scmp.ne.s32.totalorder %s89, %s103
    %p105 = scmp.eq.s32.totalorder %s16, 0
    %p106 = por %p104, %p105
    %s108 = sadd.s32 %s107, 1
    %p111 = scmp.eq.s32.totalorder %s10, 1
    %p112 = scmp.ne.s32.totalorder %s107, %s109
    %p113 = scmp.eq.s32.totalorder %s10, 0
    %p114 = por %p112, %p113
    %p115 = scmp.ne.s32.totalorder %s107, %s109
    %p116 = scmp.eq.s32.totalorder %s15, 1
    %p117 = por %p115, %p116
    %p118 = scmp.ne.s32.totalorder %s109, %s110
    %p119 = scmp.eq.s32.totalorder %s15, 0
    %p120 = por %p118, %p119
    %p121 = scmp.ne.s32.totalorder %s109, %s110
    %p122 = scmp.eq.s32.totalorder %s16, 1
    %p123 = por %p121, %p122
    %p125 = scmp.ne.s32.totalorder %s110, %s124
    %p126 = scmp.eq.s32.totalorder %s16, 0
    %p127 = por %p125, %p126
    %s128 = ssub.s32 %s17, %s29
    %s129 = ssub.s32 %s18, %s25
    %s130 = sor.u32 %s128, %s129
    %p131 = scmp.eq.s32.totalorder %s130, 0
    %s133 = sadd.s32 %s132, 1
    %s134 = scalar_select %p131, %s132, %s133
    %p137 = pneg %p131
    %p138 = scmp.eq.s32.totalorder %s10, 1
    %p139 = por %p137, %p138
    %p140 = scmp.ne.s32.totalorder %s132, %s135
    %p141 = scmp.eq.s32.totalorder %s10, 0
    %p142 = por %p140, %p141
    %p143 = scmp.ne.s32.totalorder %s132, %s135
    %p144 = scmp.eq.s32.totalorder %s15, 1
    %p145 = por %p143, %p144
    %p146 = scmp.ne.s32.totalorder %s135, %s136
    %p147 = scmp.eq.s32.totalorder %s15, 0
    %p148 = por %p146, %p147
    %p149 = scmp.ne.s32.totalorder %s135, %s136
    %p150 = scmp.eq.s32.totalorder %s16, 1
    %p151 = por %p149, %p150
    %p153 = scmp.ne.s32.totalorder %s136, %s152
    %p154 = scmp.eq.s32.totalorder %s16, 0
    %p155 = por %p153, %p154
    %p156 = scmp.le.s32.totalorder 1, %s10
    %p157 = scmp.lt.s32.totalorder %s10, 3
    %p158 = pnand %p156, %p157
    %p159 = pneg %p158
    // Predicated region
    $region9: #{_lambda_.2} parent=5 // pred_check
      _
    $region10: #{_lambda_.2} parent=5 // pred_check_branch
      %161 = sbr.rel (%p158) target = $region12
    $region11: #{_lambda_.2} parent=5 // pred_region
      %s162 = ssub.s32 %s10, 1
      // Predicated region
      $region13: #{_lambda_.2} parent=11 // pred_check
        %p163 = pneg %p99
      $region14: #{_lambda_.2} parent=11 // pred_check_branch
        %165 = sbr.rel (%p163) target = $region16
      $region15: #{_lambda_.2} parent=11 // pred_region
        _
      $region16: #{_lambda_.2} parent=11 // pred_fallthru
        _
      // Predicated region
      $region17: #{_lambda_.2} parent=11 // pred_check
        %p166 = pneg %p120
      $region18: #{_lambda_.2} parent=11 // pred_check_branch
        %168 = sbr.rel (%p166) target = $region20
      $region19: #{_lambda_.2} parent=11 // pred_region
        _
      $region20: #{_lambda_.2} parent=11 // pred_fallthru
        _
    $region12: #{_lambda_.2} parent=5 // pred_fallthru
      _
    %p169 = scmp.lt.s32.totalorder %s10, 2
    // Predicated region
    $region21: #{_lambda_.2} parent=5 // pred_check
      %p170 = pneg %p169
    $region22: #{_lambda_.2} parent=5 // pred_check_branch
      %172 = sbr.rel (%p170) target = $region24
    $region23: #{_lambda_.2} parent=5 // pred_region
      // Predicated region
      $region25: #{_lambda_.2} parent=23 // pred_check
        %p173 = pneg %p44
      $region26: #{_lambda_.2} parent=23 // pred_check_branch
        %175 = sbr.rel (%p173) target = $region28
      $region27: #{_lambda_.2} parent=23 // pred_region
        %s176 = smul.u32 2, %s18
        %p177 = scmp.lt.s32.totalorder %s17, 1
        %s178 = scalar_select %p177, %s17, 1
        %p179 = scmp.lt.s32.totalorder %s176, 1
        %s180 = scalar_select %p179, %s176, 1
        %s181 = smul.addr %s178, 8
        %s182 = sadd.s32 %s180, %s181
        %s183 = smul.addr %s182, 8
        %s184 = scalar_lea.vmem %s0, %s183
        %s185 = smul.u32 2, %s18
      $region28: #{_lambda_.2} parent=23 // pred_fallthru
        _
      // Predicated region
      $region29: #{_lambda_.2} parent=23 // pred_check
        %p186 = pneg %p72
      $region30: #{_lambda_.2} parent=23 // pred_check_branch
        %188 = sbr.rel (%p186) target = $region32
      $region31: #{_lambda_.2} parent=23 // pred_region
        %p189 = scmp.lt.s32.totalorder %s17, 1
        %s190 = scalar_select %p189, %s17, 1
        %p191 = scmp.lt.s32.totalorder %s18, 0
        %s192 = scalar_select %p191, %s18, 0
        %s193 = smul.addr %s192, 2
        %s194 = smul.addr %s190, 2
        %s195 = sadd.s32 %s193, %s194
        %s196 = smul.addr %s195, 4
        %s197 = scalar_lea.vmem %s1, %s196
      $region32: #{_lambda_.2} parent=23 // pred_fallthru
        _
    $region24: #{_lambda_.2} parent=5 // pred_fallthru
      _
    %p198 = scmp.le.s32.totalorder 1, %s10
    %p199 = scmp.lt.s32.totalorder %s10, 3
    %p200 = pnand %p198, %p199
    %p201 = pneg %p200
    // Predicated region
    $region33: #{_lambda_.2} parent=5 // pred_check
      _
    $region34: #{_lambda_.2} parent=5 // pred_check_branch
      %203 = sbr.rel (%p200) target = $region36
    $region35: #{_lambda_.2} parent=5 // pred_region
      %s204 = ssub.s32 %s10, 1
      %s205 = smul.u32 2, %s20
      %p206 = scmp.lt.s32.totalorder %s19, 1
      %s207 = scalar_select %p206, %s19, 1
      %p208 = scmp.lt.s32.totalorder %s205, 1
      %s209 = scalar_select %p208, %s205, 1
      %s210 = smul.addr %s207, 8
      %s211 = sadd.s32 %s209, %s210
      %s212 = smul.addr %s211, 8
      %s213 = scalar_lea.vmem %s0, %s212
      %p214 = pneg %p50
      %p215 = pneg %p47
      %p216 = scmp.lt.s32.totalorder %s19, 1
      %s217 = scalar_select %p216, %s19, 1
      %p218 = scmp.lt.s32.totalorder %s20, 0
      %s219 = scalar_select %p218, %s20, 0
      %s220 = smul.addr %s219, 2
      %s221 = smul.addr %s217, 2
      %s222 = sadd.s32 %s220, %s221
      %s223 = smul.addr %s222, 4
      %s224 = scalar_lea.vmem %s1, %s223
      %p225 = pneg %p78
      %p226 = pneg %p75
      %p227 = pneg %p99
      %p228 = pneg %p96
      %p229 = pneg %p120
      %p230 = pneg %p117
      %p231 = pneg %p148
      %p232 = pneg %p145
      %p233 = scmp.lt.s32.totalorder %s19, 1
      %s234 = scalar_select %p233, %s19, 1
      %p235 = scmp.lt.s32.totalorder %s20, 0
      %s236 = scalar_select %p235, %s20, 0
      %s237 = smul.addr %s236, 16
      %s238 = smul.addr %s234, 16
      %s239 = sadd.s32 %s237, %s238
      %s240 = smul.addr %s239, 8
      %s241 = scalar_lea.vmem %s4, %s240
      %s242 = smul.u32 2, %s20
      %p243 = scmp.lt.s32.totalorder %s19, 1
      %s244 = scalar_select %p243, %s19, 1
      %p245 = scmp.lt.s32.totalorder %s242, 1
      %s246 = scalar_select %p245, %s242, 1
      %s247 = smul.addr %s244, 8
      %s248 = sadd.s32 %s246, %s247
      %s249 = smul.addr %s248, 8
      %s250 = scalar_lea.vmem %s0, %s249
      %s251 = smul.u32 2, %s20
      %p252 = scmp.lt.s32.totalorder %s19, 1
      %s253 = scalar_select %p252, %s19, 1
      %p254 = scmp.lt.s32.totalorder %s20, 0
      %s255 = scalar_select %p254, %s20, 0
      %s256 = smul.addr %s255, 2
      %s257 = smul.addr %s253, 2
      %s258 = sadd.s32 %s256, %s257
      %s259 = smul.addr %s258, 4
      %s260 = scalar_lea.vmem %s1, %s259
      %p261 = scmp.lt.s32.totalorder %s19, 1
      %s262 = scalar_select %p261, %s19, 1
      %p263 = scmp.lt.s32.totalorder %s20, 0
      %s264 = scalar_select %p263, %s20, 0
      %s265 = smul.addr %s264, 16
      %s266 = smul.addr %s262, 16
      %s267 = sadd.s32 %s265, %s266
      %s268 = smul.addr %s267, 8
      %s269 = scalar_lea.vmem %s4, %s268
      %v270 = vld [vmem:[%s250] sm:$0xff]
      %v271 = vld [vmem:[%s250 + $0x8] sm:$0xff]
      %v272 = vld [vmem:[%s250 + $0x10] sm:$0xff]
      %v273 = vld [vmem:[%s250 + $0x18] sm:$0xff]
      %v274 = vld [vmem:[%s250 + $0x20] sm:$0xff]
      %v275 = vld [vmem:[%s250 + $0x28] sm:$0xff]
      %v276 = vld [vmem:[%s250 + $0x30] sm:$0xff]
      %v277 = vld [vmem:[%s250 + $0x38] sm:$0xff]
      %v278 = vld [vmem:[%s260] sm:$0xf]
      %v279 = vld [vmem:[%s260 + $0x4] sm:$0xf]
      %v282 = vcombine.low %v278, %v279
      %284 = vrot.lane.b32.xlu0 %v270, 17
      %v285 = vpop.permute.xlu0 %284
      %286 = vrot.lane.b32.xlu0 %v271, 17
      %v287 = vpop.permute.xlu0 %286
      %288 = vrot.lane.b32.xlu0 %v272, 17
      %v289 = vpop.permute.xlu0 %288
      %290 = vrot.lane.b32.xlu0 %v273, 17
      %v291 = vpop.permute.xlu0 %290
      %292 = vrot.lane.b32.xlu0 %v274, 17
      %v293 = vpop.permute.xlu0 %292
      %294 = vrot.lane.b32.xlu0 %v275, 17
      %v295 = vpop.permute.xlu0 %294
      %296 = vrot.lane.b32.xlu0 %v276, 17
      %v297 = vpop.permute.xlu0 %296
      %298 = vrot.lane.b32.xlu0 %v277, 17
      %v299 = vpop.permute.xlu0 %298
      %300 = vrot.lane.b32.xlu0 %v282, 17
      %v301 = vpop.permute.xlu0 %300
      %v302 = vld [vmem:[%s3] sm:$0x1]
      %v304 = vlaneseq
      %v305 = vshrl.u32 %v304, 7
      %v306 = vsub.s32 0, %v305
      %v307 = vrot.slane %v302, %v306
      %v309 = vmul.f32 %v285, %v307
      %v310 = vmul.f32 %v287, %v307
      %v311 = vmul.f32 %v289, %v307
      %v312 = vmul.f32 %v291, %v307
      %v313 = vmul.f32 %v293, %v307
      %v314 = vmul.f32 %v295, %v307
      %v315 = vmul.f32 %v297, %v307
      %v316 = vmul.f32 %v299, %v307
      %v317 = vmul.f32 %v301, %v307
      %318 = vrot.lane.b32.xlu0 %v270, 16
      %v319 = vpop.permute.xlu0 %318
      %320 = vrot.lane.b32.xlu0 %v271, 16
      %v321 = vpop.permute.xlu0 %320
      %322 = vrot.lane.b32.xlu0 %v272, 16
      %v323 = vpop.permute.xlu0 %322
      %324 = vrot.lane.b32.xlu0 %v273, 16
      %v325 = vpop.permute.xlu0 %324
      %326 = vrot.lane.b32.xlu0 %v274, 16
      %v327 = vpop.permute.xlu0 %326
      %328 = vrot.lane.b32.xlu0 %v275, 16
      %v329 = vpop.permute.xlu0 %328
      %330 = vrot.lane.b32.xlu0 %v276, 16
      %v331 = vpop.permute.xlu0 %330
      %332 = vrot.lane.b32.xlu0 %v277, 16
      %v333 = vpop.permute.xlu0 %332
      %334 = vrot.lane.b32.xlu0 %v282, 16
      %v335 = vpop.permute.xlu0 %334
      %s336 = scalar_lea.vmem %s3, 1
      %v337 = vld [vmem:[%s336] sm:$0x1]
      %v339 = vlaneseq
      %v340 = vshrl.u32 %v339, 7
      %v341 = vsub.s32 0, %v340
      %v342 = vrot.slane %v337, %v341
      %v344 = vmul.f32 %v319, %v342
      %v345 = vmul.f32 %v321, %v342
      %v346 = vmul.f32 %v323, %v342
      %v347 = vmul.f32 %v325, %v342
      %v348 = vmul.f32 %v327, %v342
      %v349 = vmul.f32 %v329, %v342
      %v350 = vmul.f32 %v331, %v342
      %v351 = vmul.f32 %v333, %v342
      %v352 = vmul.f32 %v335, %v342
      %353 = vrot.lane.b32.xlu0 %v270, 15
      %v354 = vpop.permute.xlu0 %353
      %355 = vrot.lane.b32.xlu0 %v271, 15
      %v356 = vpop.permute.xlu0 %355
      %357 = vrot.lane.b32.xlu0 %v272, 15
      %v358 = vpop.permute.xlu0 %357
      %359 = vrot.lane.b32.xlu0 %v273, 15
      %v360 = vpop.permute.xlu0 %359
      %361 = vrot.lane.b32.xlu0 %v274, 15
      %v362 = vpop.permute.xlu0 %361
      %363 = vrot.lane.b32.xlu0 %v275, 15
      %v364 = vpop.permute.xlu0 %363
      %365 = vrot.lane.b32.xlu0 %v276, 15
      %v366 = vpop.permute.xlu0 %365
      %367 = vrot.lane.b32.xlu0 %v277, 15
      %v368 = vpop.permute.xlu0 %367
      %369 = vrot.lane.b32.xlu0 %v282, 15
      %v370 = vpop.permute.xlu0 %369
      %s371 = scalar_lea.vmem %s3, 2
      %v372 = vld [vmem:[%s371] sm:$0x1]
      %v374 = vlaneseq
      %v375 = vshrl.u32 %v374, 7
      %v376 = vsub.s32 0, %v375
      %v377 = vrot.slane %v372, %v376
      %v379 = vmul.f32 %v354, %v377
      %v380 = vmul.f32 %v356, %v377
      %v381 = vmul.f32 %v358, %v377
      %v382 = vmul.f32 %v360, %v377
      %v383 = vmul.f32 %v362, %v377
      %v384 = vmul.f32 %v364, %v377
      %v385 = vmul.f32 %v366, %v377
      %v386 = vmul.f32 %v368, %v377
      %v387 = vmul.f32 %v370, %v377
      %388 = vrot.lane.b32.xlu0 %v270, 1
      %v389 = vpop.permute.xlu0 %388
      %390 = vrot.lane.b32.xlu0 %v271, 1
      %v391 = vpop.permute.xlu0 %390
      %392 = vrot.lane.b32.xlu0 %v272, 1
      %v393 = vpop.permute.xlu0 %392
      %394 = vrot.lane.b32.xlu0 %v273, 1
      %v395 = vpop.permute.xlu0 %394
      %396 = vrot.lane.b32.xlu0 %v274, 1
      %v397 = vpop.permute.xlu0 %396
      %398 = vrot.lane.b32.xlu0 %v275, 1
      %v399 = vpop.permute.xlu0 %398
      %400 = vrot.lane.b32.xlu0 %v276, 1
      %v401 = vpop.permute.xlu0 %400
      %402 = vrot.lane.b32.xlu0 %v277, 1
      %v403 = vpop.permute.xlu0 %402
      %404 = vrot.lane.b32.xlu0 %v282, 1
      %v405 = vpop.permute.xlu0 %404
      %s406 = scalar_lea.vmem %s3, 3
      %v407 = vld [vmem:[%s406] sm:$0x1]
      %v409 = vlaneseq
      %v410 = vshrl.u32 %v409, 7
      %v411 = vsub.s32 0, %v410
      %v412 = vrot.slane %v407, %v411
      %v414 = vmul.f32 %v389, %v412
      %v415 = vmul.f32 %v391, %v412
      %v416 = vmul.f32 %v393, %v412
      %v417 = vmul.f32 %v395, %v412
      %v418 = vmul.f32 %v397, %v412
      %v419 = vmul.f32 %v399, %v412
      %v420 = vmul.f32 %v401, %v412
      %v421 = vmul.f32 %v403, %v412
      %v422 = vmul.f32 %v405, %v412
      %423 = vrot.lane.b32.xlu0 %v270, 127
      %v424 = vpop.permute.xlu0 %423
      %425 = vrot.lane.b32.xlu0 %v271, 127
      %v426 = vpop.permute.xlu0 %425
      %427 = vrot.lane.b32.xlu0 %v272, 127
      %v428 = vpop.permute.xlu0 %427
      %429 = vrot.lane.b32.xlu0 %v273, 127
      %v430 = vpop.permute.xlu0 %429
      %431 = vrot.lane.b32.xlu0 %v274, 127
      %v432 = vpop.permute.xlu0 %431
      %433 = vrot.lane.b32.xlu0 %v275, 127
      %v434 = vpop.permute.xlu0 %433
      %435 = vrot.lane.b32.xlu0 %v276, 127
      %v436 = vpop.permute.xlu0 %435
      %437 = vrot.lane.b32.xlu0 %v277, 127
      %v438 = vpop.permute.xlu0 %437
      %439 = vrot.lane.b32.xlu0 %v282, 127
      %v440 = vpop.permute.xlu0 %439
      %s441 = scalar_lea.vmem %s3, 5
      %v442 = vld [vmem:[%s441] sm:$0x1]
      %v444 = vlaneseq
      %v445 = vshrl.u32 %v444, 7
      %v446 = vsub.s32 0, %v445
      %v447 = vrot.slane %v442, %v446
      %v449 = vmul.f32 %v424, %v447
      %v450 = vmul.f32 %v426, %v447
      %v451 = vmul.f32 %v428, %v447
      %v452 = vmul.f32 %v430, %v447
      %v453 = vmul.f32 %v432, %v447
      %v454 = vmul.f32 %v434, %v447
      %v455 = vmul.f32 %v436, %v447
      %v456 = vmul.f32 %v438, %v447
      %v457 = vmul.f32 %v440, %v447
      %458 = vrot.lane.b32.xlu0 %v270, 113
      %v459 = vpop.permute.xlu0 %458
      %460 = vrot.lane.b32.xlu0 %v271, 113
      %v461 = vpop.permute.xlu0 %460
      %462 = vrot.lane.b32.xlu0 %v272, 113
      %v463 = vpop.permute.xlu0 %462
      %464 = vrot.lane.b32.xlu0 %v273, 113
      %v465 = vpop.permute.xlu0 %464
      %466 = vrot.lane.b32.xlu0 %v274, 113
      %v467 = vpop.permute.xlu0 %466
      %468 = vrot.lane.b32.xlu0 %v275, 113
      %v469 = vpop.permute.xlu0 %468
      %470 = vrot.lane.b32.xlu0 %v276, 113
      %v471 = vpop.permute.xlu0 %470
      %472 = vrot.lane.b32.xlu0 %v277, 113
      %v473 = vpop.permute.xlu0 %472
      %474 = vrot.lane.b32.xlu0 %v282, 113
      %v475 = vpop.permute.xlu0 %474
      %s476 = scalar_lea.vmem %s3, 6
      %v477 = vld [vmem:[%s476] sm:$0x1]
      %v479 = vlaneseq
      %v480 = vshrl.u32 %v479, 7
      %v481 = vsub.s32 0, %v480
      %v482 = vrot.slane %v477, %v481
      %v484 = vmul.f32 %v459, %v482
      %v485 = vmul.f32 %v461, %v482
      %v486 = vmul.f32 %v463, %v482
      %v487 = vmul.f32 %v465, %v482
      %v488 = vmul.f32 %v467, %v482
      %v489 = vmul.f32 %v469, %v482
      %v490 = vmul.f32 %v471, %v482
      %v491 = vmul.f32 %v473, %v482
      %v492 = vmul.f32 %v475, %v482
      %493 = vrot.lane.b32.xlu0 %v270, 112
      %v494 = vpop.permute.xlu0 %493
      %495 = vrot.lane.b32.xlu0 %v271, 112
      %v496 = vpop.permute.xlu0 %495
      %497 = vrot.lane.b32.xlu0 %v272, 112
      %v498 = vpop.permute.xlu0 %497
      %499 = vrot.lane.b32.xlu0 %v273, 112
      %v500 = vpop.permute.xlu0 %499
      %501 = vrot.lane.b32.xlu0 %v274, 112
      %v502 = vpop.permute.xlu0 %501
      %503 = vrot.lane.b32.xlu0 %v275, 112
      %v504 = vpop.permute.xlu0 %503
      %505 = vrot.lane.b32.xlu0 %v276, 112
      %v506 = vpop.permute.xlu0 %505
      %507 = vrot.lane.b32.xlu0 %v277, 112
      %v508 = vpop.permute.xlu0 %507
      %509 = vrot.lane.b32.xlu0 %v282, 112
      %v510 = vpop.permute.xlu0 %509
      %s511 = scalar_lea.vmem %s3, 7
      %v512 = vld [vmem:[%s511] sm:$0x1]
      %v514 = vlaneseq
      %v515 = vshrl.u32 %v514, 7
      %v516 = vsub.s32 0, %v515
      %v517 = vrot.slane %v512, %v516
      %v519 = vmul.f32 %v494, %v517
      %v520 = vmul.f32 %v496, %v517
      %v521 = vmul.f32 %v498, %v517
      %v522 = vmul.f32 %v500, %v517
      %v523 = vmul.f32 %v502, %v517
      %v524 = vmul.f32 %v504, %v517
      %v525 = vmul.f32 %v506, %v517
      %v526 = vmul.f32 %v508, %v517
      %v527 = vmul.f32 %v510, %v517
      %528 = vrot.lane.b32.xlu0 %v270, 111
      %v529 = vpop.permute.xlu0 %528
      %530 = vrot.lane.b32.xlu0 %v271, 111
      %v531 = vpop.permute.xlu0 %530
      %532 = vrot.lane.b32.xlu0 %v272, 111
      %v533 = vpop.permute.xlu0 %532
      %534 = vrot.lane.b32.xlu0 %v273, 111
      %v535 = vpop.permute.xlu0 %534
      %536 = vrot.lane.b32.xlu0 %v274, 111
      %v537 = vpop.permute.xlu0 %536
      %538 = vrot.lane.b32.xlu0 %v275, 111
      %v539 = vpop.permute.xlu0 %538
      %540 = vrot.lane.b32.xlu0 %v276, 111
      %v541 = vpop.permute.xlu0 %540
      %542 = vrot.lane.b32.xlu0 %v277, 111
      %v543 = vpop.permute.xlu0 %542
      %544 = vrot.lane.b32.xlu0 %v282, 111
      %v545 = vpop.permute.xlu0 %544
      %s546 = scalar_lea.vmem %s3, 8
      %v547 = vld [vmem:[%s546] sm:$0x1]
      %v549 = vlaneseq
      %v550 = vshrl.u32 %v549, 7
      %v551 = vsub.s32 0, %v550
      %v552 = vrot.slane %v547, %v551
      %v554 = vmul.f32 %v529, %v552
      %v555 = vmul.f32 %v531, %v552
      %v556 = vmul.f32 %v533, %v552
      %v557 = vmul.f32 %v535, %v552
      %v558 = vmul.f32 %v537, %v552
      %v559 = vmul.f32 %v539, %v552
      %v560 = vmul.f32 %v541, %v552
      %v561 = vmul.f32 %v543, %v552
      %v562 = vmul.f32 %v545, %v552
      %v563 = vld [vmem:[%s2] sm:$0xff]
      %v564 = vld [vmem:[%s2 + $0x8] sm:$0xff]
      %v565 = vld [vmem:[%s2 + $0x10] sm:$0xff]
      %v566 = vld [vmem:[%s2 + $0x18] sm:$0xff]
      %v567 = vld [vmem:[%s2 + $0x20] sm:$0xff]
      %v568 = vld [vmem:[%s2 + $0x28] sm:$0xff]
      %v569 = vld [vmem:[%s2 + $0x30] sm:$0xff]
      %v570 = vld [vmem:[%s2 + $0x38] sm:$0xff]
      %v571 = vld [vmem:[%s2 + $0x40] sm:$0xff]
      %v572 = vld [vmem:[%s2 + $0x48] sm:$0xff]
      %v573 = vld [vmem:[%s2 + $0x50] sm:$0xff]
      %v574 = vld [vmem:[%s2 + $0x58] sm:$0xff]
      %v575 = vld [vmem:[%s2 + $0x60] sm:$0xff]
      %v576 = vld [vmem:[%s2 + $0x68] sm:$0xff]
      %v577 = vld [vmem:[%s2 + $0x70] sm:$0xff]
      %v578 = vld [vmem:[%s2 + $0x78] sm:$0xff]
      %v579 = vld [vmem:[%s2 + $0x80] sm:$0xff]
      %v580 = vld [vmem:[%s2 + $0x88] sm:$0xff]
      %v581 = vld [vmem:[%s2 + $0x90] sm:$0xff]
      %v582 = vld [vmem:[%s2 + $0x98] sm:$0xff]
      %v583 = vld [vmem:[%s2 + $0xa0] sm:$0xff]
      %v584 = vld [vmem:[%s2 + $0xa8] sm:$0xff]
      %v585 = vld [vmem:[%s2 + $0xb0] sm:$0xff]
      %v586 = vld [vmem:[%s2 + $0xb8] sm:$0xff]
      %v587 = vld [vmem:[%s2 + $0xc0] sm:$0xff]
      %v588 = vld [vmem:[%s2 + $0xc8] sm:$0xff]
      %v589 = vld [vmem:[%s2 + $0xd0] sm:$0xff]
      %v590 = vld [vmem:[%s2 + $0xd8] sm:$0xff]
      %v591 = vld [vmem:[%s2 + $0xe0] sm:$0xff]
      %v592 = vld [vmem:[%s2 + $0xe8] sm:$0xff]
      %v593 = vld [vmem:[%s2 + $0xf0] sm:$0xff]
      %v594 = vld [vmem:[%s2 + $0xf8] sm:$0xff]
      %v595 = vld [vmem:[%s2 + $0x100] sm:$0xff]
      %v596 = vld [vmem:[%s2 + $0x108] sm:$0xff]
      %v597 = vld [vmem:[%s2 + $0x110] sm:$0xff]
      %v598 = vld [vmem:[%s2 + $0x118] sm:$0xff]
      %v599 = vld [vmem:[%s2 + $0x120] sm:$0xff]
      %v600 = vld [vmem:[%s2 + $0x128] sm:$0xff]
      %v601 = vld [vmem:[%s2 + $0x130] sm:$0xff]
      %v602 = vld [vmem:[%s2 + $0x138] sm:$0xff]
      %v603 = vld [vmem:[%s2 + $0x140] sm:$0xff]
      %v604 = vld [vmem:[%s2 + $0x148] sm:$0xff]
      %v605 = vld [vmem:[%s2 + $0x150] sm:$0xff]
      %v606 = vld [vmem:[%s2 + $0x158] sm:$0xff]
      %v607 = vld [vmem:[%s2 + $0x160] sm:$0xff]
      %v608 = vld [vmem:[%s2 + $0x168] sm:$0xff]
      %v609 = vld [vmem:[%s2 + $0x170] sm:$0xff]
      %v610 = vld [vmem:[%s2 + $0x178] sm:$0xff]
      %v611 = vld [vmem:[%s2 + $0x180] sm:$0xff]
      %v612 = vld [vmem:[%s2 + $0x188] sm:$0xff]
      %v613 = vld [vmem:[%s2 + $0x190] sm:$0xff]
      %v614 = vld [vmem:[%s2 + $0x198] sm:$0xff]
      %v615 = vld [vmem:[%s2 + $0x1a0] sm:$0xff]
      %v616 = vld [vmem:[%s2 + $0x1a8] sm:$0xff]
      %v617 = vld [vmem:[%s2 + $0x1b0] sm:$0xff]
      %v618 = vld [vmem:[%s2 + $0x1b8] sm:$0xff]
      %v619 = vld [vmem:[%s2 + $0x1c0] sm:$0xff]
      %v620 = vld [vmem:[%s2 + $0x1c8] sm:$0xff]
      %v621 = vld [vmem:[%s2 + $0x1d0] sm:$0xff]
      %v622 = vld [vmem:[%s2 + $0x1d8] sm:$0xff]
      %v623 = vld [vmem:[%s2 + $0x1e0] sm:$0xff]
      %v624 = vld [vmem:[%s2 + $0x1e8] sm:$0xff]
      %v625 = vld [vmem:[%s2 + $0x1f0] sm:$0xff]
      %v626 = vld [vmem:[%s2 + $0x1f8] sm:$0xff]
      %v627 = vld [vmem:[%s2 + $0x200] sm:$0xff]
      %v628 = vld [vmem:[%s2 + $0x208] sm:$0xff]
      %v629 = vld [vmem:[%s2 + $0x210] sm:$0xff]
      %v630 = vld [vmem:[%s2 + $0x218] sm:$0xff]
      %v631 = vld [vmem:[%s2 + $0x220] sm:$0xff]
      %v632 = vld [vmem:[%s2 + $0x228] sm:$0xff]
      %v633 = vld [vmem:[%s2 + $0x230] sm:$0xff]
      %v634 = vld [vmem:[%s2 + $0x238] sm:$0xff]
      %v635 = vld [vmem:[%s2 + $0x240] sm:$0xff]
      %v636 = vld [vmem:[%s2 + $0x248] sm:$0xff]
      %v637 = vld [vmem:[%s2 + $0x250] sm:$0xff]
      %v638 = vld [vmem:[%s2 + $0x258] sm:$0xff]
      %v639 = vld [vmem:[%s2 + $0x260] sm:$0xff]
      %v640 = vld [vmem:[%s2 + $0x268] sm:$0xff]
      %v641 = vld [vmem:[%s2 + $0x270] sm:$0xff]
      %v642 = vld [vmem:[%s2 + $0x278] sm:$0xff]
      %v643 = vld [vmem:[%s2 + $0x280] sm:$0xff]
      %v644 = vld [vmem:[%s2 + $0x288] sm:$0xff]
      %v645 = vld [vmem:[%s2 + $0x290] sm:$0xff]
      %v646 = vld [vmem:[%s2 + $0x298] sm:$0xff]
      %v647 = vld [vmem:[%s2 + $0x2a0] sm:$0xff]
      %v648 = vld [vmem:[%s2 + $0x2a8] sm:$0xff]
      %v649 = vld [vmem:[%s2 + $0x2b0] sm:$0xff]
      %v650 = vld [vmem:[%s2 + $0x2b8] sm:$0xff]
      %v651 = vld [vmem:[%s2 + $0x2c0] sm:$0xff]
      %v652 = vld [vmem:[%s2 + $0x2c8] sm:$0xff]
      %v653 = vld [vmem:[%s2 + $0x2d0] sm:$0xff]
      %v654 = vld [vmem:[%s2 + $0x2d8] sm:$0xff]
      %v655 = vld [vmem:[%s2 + $0x2e0] sm:$0xff]
      %v656 = vld [vmem:[%s2 + $0x2e8] sm:$0xff]
      %v657 = vld [vmem:[%s2 + $0x2f0] sm:$0xff]
      %v658 = vld [vmem:[%s2 + $0x2f8] sm:$0xff]
      %vm659 = vcmask 64512
      %v661 = vsel %vm659, %v568, 0
      %v664 = vsel %vm659, %v574, 0
      %v667 = vsel %vm659, %v580, 0
      %v670 = vsel %vm659, %v586, 0
      %v673 = vsel %vm659, %v592, 0
      %v676 = vsel %vm659, %v598, 0
      %v679 = vsel %vm659, %v604, 0
      %v682 = vsel %vm659, %v610, 0
      %v685 = vsel %vm659, %v616, 0
      %v688 = vsel %vm659, %v622, 0
      %v691 = vsel %vm659, %v628, 0
      %v694 = vsel %vm659, %v634, 0
      %v697 = vsel %vm659, %v640, 0
      %v700 = vsel %vm659, %v646, 0
      %v703 = vsel %vm659, %v652, 0
      %v706 = vsel %vm659, %v658, 0
      %708 = vmatprep.subr.mxu0 0.0
      %709 = vmatpush1.msra.mxu0 %v350
      %710 = vmatprep.subr.mxu0 0.0
      %711 = vmatpush1.msra.mxu0 %v349
      %712 = vmatprep.subr.mxu0 0.0
      %713 = vmatpush1.msra.mxu0 %v348
      %714 = vmatprep.subr.mxu0 0.0
      %715 = vmatpush1.msra.mxu0 %v347
      %716 = vmatprep.subr.mxu0 0.0
      %717 = vmatpush1.msra.mxu0 %v346
      %718 = vmatprep.subr.mxu0 0.0
      %719 = vmatpush1.msra.mxu0 %v345
      %720 = vmatprep.subr.mxu0 0.0
      %721 = vmatpush1.msra.mxu0 %v344
      %722 = vmatprep.subr.mxu0 0.0
      %723 = vmatpush1.msra.mxu0 %v317
      %724 = vmatprep.subr.mxu0 0.0
      %725 = vmatpush1.msra.mxu0 %v316
      %726 = vmatprep.subr.mxu0 0.0
      %727 = vmatpush1.msra.mxu0 %v315
      %728 = vmatprep.subr.mxu0 0.0
      %729 = vmatpush1.msra.mxu0 %v314
      %730 = vmatprep.subr.mxu0 0.0
      %731 = vmatpush1.msra.mxu0 %v313
      %732 = vmatprep.subr.mxu0 0.0
      %733 = vmatpush1.msra.mxu0 %v312
      %734 = vmatprep.subr.mxu0 0.0
      %735 = vmatpush1.msra.mxu0 %v311
      %736 = vmatprep.subr.mxu0 0.0
      %737 = vmatpush1.msra.mxu0 %v310
      %738 = vmatprep.subr.mxu0 0.0
      %739 = vmatpush1.msra.mxu0 %v309
      %740 = vmatprep.subr.mxu0 0.0
      %741 = vmatpush2.msra.mxu0 %v418
      %742 = vmatprep.subr.mxu0 0.0
      %743 = vmatpush2.msra.mxu0 %v417
      %744 = vmatprep.subr.mxu0 0.0
      %745 = vmatpush2.msra.mxu0 %v416
      %746 = vmatprep.subr.mxu0 0.0
      %747 = vmatpush2.msra.mxu0 %v415
      %748 = vmatprep.subr.mxu0 0.0
      %749 = vmatpush2.msra.mxu0 %v414
      %750 = vmatprep.subr.mxu0 0.0
      %751 = vmatpush2.msra.mxu0 %v387
      %752 = vmatprep.subr.mxu0 0.0
      %753 = vmatpush2.msra.mxu0 %v386
      %754 = vmatprep.subr.mxu0 0.0
      %755 = vmatpush2.msra.mxu0 %v385
      %756 = vmatprep.subr.mxu0 0.0
      %757 = vmatpush2.msra.mxu0 %v384
      %758 = vmatprep.subr.mxu0 0.0
      %759 = vmatpush2.msra.mxu0 %v383
      %760 = vmatprep.subr.mxu0 0.0
      %761 = vmatpush2.msra.mxu0 %v382
      %762 = vmatprep.subr.mxu0 0.0
      %763 = vmatpush2.msra.mxu0 %v381
      %764 = vmatprep.subr.mxu0 0.0
      %765 = vmatpush2.msra.mxu0 %v380
      %766 = vmatprep.subr.mxu0 0.0
      %767 = vmatpush2.msra.mxu0 %v379
      %768 = vmatprep.subr.mxu0 0.0
      %769 = vmatpush2.msra.mxu0 %v352
      %770 = vmatprep.subr.mxu0 0.0
      %771 = vmatpush2.msra.mxu0 %v351
      %772 = vmatprep.mubr.f32.mxu0 %v564
      %773 = vmatmul.mubr.f32.gmra.mxu0 %v563
      %v774 = vpop.f32.mrf.mxu0
      %v775 = vadd.f32 0.0, %v774
      %v776 = vpop.f32.mrf.mxu0
      %777 = vmatprep.mubr.f32.mxu0 %v570
      %778 = vmatmul.mubr.f32.gmra.mxu0 %v569
      %v779 = vpop.f32.mrf.mxu0
      %v780 = vadd.f32 0.0, %v779
      %v781 = vpop.f32.mrf.mxu0
      %782 = vmatprep.mubr.f32.mxu0 %v576
      %783 = vmatmul.mubr.f32.gmra.mxu0 %v575
      %v784 = vpop.f32.mrf.mxu0
      %v785 = vadd.f32 0.0, %v784
      %v786 = vpop.f32.mrf.mxu0
      %787 = vmatprep.mubr.f32.mxu0 %v582
      %788 = vmatmul.mubr.f32.gmra.mxu0 %v581
      %v789 = vpop.f32.mrf.mxu0
      %v790 = vadd.f32 0.0, %v789
      %v791 = vpop.f32.mrf.mxu0
      %792 = vmatprep.mubr.f32.mxu0 %v588
      %793 = vmatmul.mubr.f32.gmra.mxu0 %v587
      %v794 = vpop.f32.mrf.mxu0
      %v795 = vadd.f32 0.0, %v794
      %v796 = vpop.f32.mrf.mxu0
      %797 = vmatprep.mubr.f32.mxu0 %v594
      %798 = vmatmul.mubr.f32.gmra.mxu0 %v593
      %v799 = vpop.f32.mrf.mxu0
      %v800 = vadd.f32 0.0, %v799
      %v801 = vpop.f32.mrf.mxu0
      %802 = vmatprep.mubr.f32.mxu0 %v600
      %803 = vmatmul.mubr.f32.gmra.mxu0 %v599
      %v804 = vpop.f32.mrf.mxu0
      %v805 = vadd.f32 0.0, %v804
      %v806 = vpop.f32.mrf.mxu0
      %807 = vmatprep.mubr.f32.mxu0 %v606
      %808 = vmatmul.mubr.f32.gmra.mxu0 %v605
      %v809 = vpop.f32.mrf.mxu0
      %v810 = vadd.f32 0.0, %v809
      %v811 = vpop.f32.mrf.mxu0
      %812 = vmatprep.mubr.f32.mxu0 %v612
      %813 = vmatmul.mubr.f32.gmra.mxu0 %v611
      %v814 = vpop.f32.mrf.mxu0
      %v815 = vadd.f32 0.0, %v814
      %v816 = vpop.f32.mrf.mxu0
      %817 = vmatprep.mubr.f32.mxu0 %v618
      %818 = vmatmul.mubr.f32.gmra.mxu0 %v617
      %v819 = vpop.f32.mrf.mxu0
      %v820 = vadd.f32 0.0, %v819
      %v821 = vpop.f32.mrf.mxu0
      %822 = vmatprep.mubr.f32.mxu0 %v624
      %823 = vmatmul.mubr.f32.gmra.mxu0 %v623
      %v824 = vpop.f32.mrf.mxu0
      %v825 = vadd.f32 0.0, %v824
      %v826 = vpop.f32.mrf.mxu0
      %827 = vmatprep.mubr.f32.mxu0 %v630
      %828 = vmatmul.mubr.f32.gmra.mxu0 %v629
      %v829 = vpop.f32.mrf.mxu0
      %v830 = vadd.f32 0.0, %v829
      %v831 = vpop.f32.mrf.mxu0
      %832 = vmatprep.mubr.f32.mxu0 %v636
      %833 = vmatmul.mubr.f32.gmra.mxu0 %v635
      %v834 = vpop.f32.mrf.mxu0
      %v835 = vadd.f32 0.0, %v834
      %v836 = vpop.f32.mrf.mxu0
      %837 = vmatprep.mubr.f32.mxu0 %v642
      %838 = vmatmul.mubr.f32.gmra.mxu0 %v641
      %v839 = vpop.f32.mrf.mxu0
      %v840 = vadd.f32 0.0, %v839
      %v841 = vpop.f32.mrf.mxu0
      %842 = vmatprep.mubr.f32.mxu0 %v648
      %843 = vmatmul.mubr.f32.gmra.mxu0 %v647
      %v844 = vpop.f32.mrf.mxu0
      %v845 = vadd.f32 0.0, %v844
      %v846 = vpop.f32.mrf.mxu0
      %847 = vmatprep.mubr.f32.mxu0 %v654
      %848 = vmatmul.mubr.f32.gmra.mxu0 %v653
      %v849 = vpop.f32.mrf.mxu0
      %v850 = vadd.f32 0.0, %v849
      %v851 = vpop.f32.mrf.mxu0
      %852 = vdwg.mxu0
      %853 = vmatprep.subr.mxu0 0.0
      %854 = vmatpush1.msra.mxu0 %v451
      %855 = vmatprep.subr.mxu0 0.0
      %856 = vmatpush1.msra.mxu0 %v450
      %857 = vmatprep.subr.mxu0 0.0
      %858 = vmatpush1.msra.mxu0 %v449
      %859 = vmatprep.subr.mxu0 0.0
      %860 = vmatpush1.msra.mxu0 %v282
      %861 = vmatprep.subr.mxu0 0.0
      %862 = vmatpush1.msra.mxu0 %v277
      %863 = vmatprep.subr.mxu0 0.0
      %864 = vmatpush1.msra.mxu0 %v276
      %865 = vmatprep.subr.mxu0 0.0
      %866 = vmatpush1.msra.mxu0 %v275
      %867 = vmatprep.subr.mxu0 0.0
      %868 = vmatpush1.msra.mxu0 %v274
      %869 = vmatprep.subr.mxu0 0.0
      %870 = vmatpush1.msra.mxu0 %v273
      %871 = vmatprep.subr.mxu0 0.0
      %872 = vmatpush1.msra.mxu0 %v272
      %873 = vmatprep.subr.mxu0 0.0
      %874 = vmatpush1.msra.mxu0 %v271
      %875 = vmatprep.subr.mxu0 0.0
      %876 = vmatpush1.msra.mxu0 %v270
      %877 = vmatprep.subr.mxu0 0.0
      %878 = vmatpush1.msra.mxu0 %v422
      %879 = vmatprep.subr.mxu0 0.0
      %880 = vmatpush1.msra.mxu0 %v421
      %881 = vmatprep.subr.mxu0 0.0
      %882 = vmatpush1.msra.mxu0 %v420
      %883 = vmatprep.subr.mxu0 0.0
      %884 = vmatpush1.msra.mxu0 %v419
      %885 = vmatprep.subr.mxu0 0.0
      %886 = vmatpush2.msra.mxu0 %v519
      %887 = vmatprep.subr.mxu0 0.0
      %888 = vmatpush2.msra.mxu0 %v492
      %889 = vmatprep.subr.mxu0 0.0
      %890 = vmatpush2.msra.mxu0 %v491
      %891 = vmatprep.subr.mxu0 0.0
      %892 = vmatpush2.msra.mxu0 %v490
      %893 = vmatprep.subr.mxu0 0.0
      %894 = vmatpush2.msra.mxu0 %v489
      %895 = vmatprep.subr.mxu0 0.0
      %896 = vmatpush2.msra.mxu0 %v488
      %897 = vmatprep.subr.mxu0 0.0
      %898 = vmatpush2.msra.mxu0 %v487
      %899 = vmatprep.subr.mxu0 0.0
      %900 = vmatpush2.msra.mxu0 %v486
      %901 = vmatprep.subr.mxu0 0.0
      %902 = vmatpush2.msra.mxu0 %v485
      %903 = vmatprep.subr.mxu0 0.0
      %904 = vmatpush2.msra.mxu0 %v484
      %905 = vmatprep.subr.mxu0 0.0
      %906 = vmatpush2.msra.mxu0 %v457
      %907 = vmatprep.subr.mxu0 0.0
      %908 = vmatpush2.msra.mxu0 %v456
      %909 = vmatprep.subr.mxu0 0.0
      %910 = vmatpush2.msra.mxu0 %v455
      %911 = vmatprep.subr.mxu0 0.0
      %912 = vmatpush2.msra.mxu0 %v454
      %913 = vmatprep.subr.mxu0 0.0
      %914 = vmatpush2.msra.mxu0 %v453
      %915 = vmatprep.subr.mxu0 0.0
      %916 = vmatpush2.msra.mxu0 %v452
      %917 = vmatprep.mubr.f32.mxu0 %v566
      %918 = vmatmul.mubr.f32.gmra.mxu0 %v565
      %v919 = vpop.f32.mrf.mxu0
      %v920 = vadd.f32 %v775, %v919
      %v921 = vpop.f32.mrf.mxu0
      %922 = vmatprep.mubr.f32.mxu0 %v572
      %923 = vmatmul.mubr.f32.gmra.mxu0 %v571
      %v924 = vpop.f32.mrf.mxu0
      %v925 = vadd.f32 %v780, %v924
      %v926 = vpop.f32.mrf.mxu0
      %927 = vmatprep.mubr.f32.mxu0 %v578
      %928 = vmatmul.mubr.f32.gmra.mxu0 %v577
      %v929 = vpop.f32.mrf.mxu0
      %v930 = vadd.f32 %v785, %v929
      %v931 = vpop.f32.mrf.mxu0
      %932 = vmatprep.mubr.f32.mxu0 %v584
      %933 = vmatmul.mubr.f32.gmra.mxu0 %v583
      %v934 = vpop.f32.mrf.mxu0
      %v935 = vadd.f32 %v790, %v934
      %v936 = vpop.f32.mrf.mxu0
      %937 = vmatprep.mubr.f32.mxu0 %v590
      %938 = vmatmul.mubr.f32.gmra.mxu0 %v589
      %v939 = vpop.f32.mrf.mxu0
      %v940 = vadd.f32 %v795, %v939
      %v941 = vpop.f32.mrf.mxu0
      %942 = vmatprep.mubr.f32.mxu0 %v596
      %943 = vmatmul.mubr.f32.gmra.mxu0 %v595
      %v944 = vpop.f32.mrf.mxu0
      %v945 = vadd.f32 %v800, %v944
      %v946 = vpop.f32.mrf.mxu0
      %947 = vmatprep.mubr.f32.mxu0 %v602
      %948 = vmatmul.mubr.f32.gmra.mxu0 %v601
      %v949 = vpop.f32.mrf.mxu0
      %v950 = vadd.f32 %v805, %v949
      %v951 = vpop.f32.mrf.mxu0
      %952 = vmatprep.mubr.f32.mxu0 %v608
      %953 = vmatmul.mubr.f32.gmra.mxu0 %v607
      %v954 = vpop.f32.mrf.mxu0
      %v955 = vadd.f32 %v810, %v954
      %v956 = vpop.f32.mrf.mxu0
      %957 = vmatprep.mubr.f32.mxu0 %v614
      %958 = vmatmul.mubr.f32.gmra.mxu0 %v613
      %v959 = vpop.f32.mrf.mxu0
      %v960 = vadd.f32 %v815, %v959
      %v961 = vpop.f32.mrf.mxu0
      %962 = vmatprep.mubr.f32.mxu0 %v620
      %963 = vmatmul.mubr.f32.gmra.mxu0 %v619
      %v964 = vpop.f32.mrf.mxu0
      %v965 = vadd.f32 %v820, %v964
      %v966 = vpop.f32.mrf.mxu0
      %967 = vmatprep.mubr.f32.mxu0 %v626
      %968 = vmatmul.mubr.f32.gmra.mxu0 %v625
      %v969 = vpop.f32.mrf.mxu0
      %v970 = vadd.f32 %v825, %v969
      %v971 = vpop.f32.mrf.mxu0
      %972 = vmatprep.mubr.f32.mxu0 %v632
      %973 = vmatmul.mubr.f32.gmra.mxu0 %v631
      %v974 = vpop.f32.mrf.mxu0
      %v975 = vadd.f32 %v830, %v974
      %v976 = vpop.f32.mrf.mxu0
      %977 = vmatprep.mubr.f32.mxu0 %v638
      %978 = vmatmul.mubr.f32.gmra.mxu0 %v637
      %v979 = vpop.f32.mrf.mxu0
      %v980 = vadd.f32 %v835, %v979
      %v981 = vpop.f32.mrf.mxu0
      %982 = vmatprep.mubr.f32.mxu0 %v644
      %983 = vmatmul.mubr.f32.gmra.mxu0 %v643
      %v984 = vpop.f32.mrf.mxu0
      %v985 = vadd.f32 %v840, %v984
      %v986 = vpop.f32.mrf.mxu0
      %987 = vmatprep.mubr.f32.mxu0 %v650
      %988 = vmatmul.mubr.f32.gmra.mxu0 %v649
      %v989 = vpop.f32.mrf.mxu0
      %v990 = vadd.f32 %v845, %v989
      %v991 = vpop.f32.mrf.mxu0
      %992 = vmatprep.mubr.f32.mxu0 %v656
      %993 = vmatmul.mubr.f32.gmra.mxu0 %v655
      %v994 = vpop.f32.mrf.mxu0
      %v995 = vadd.f32 %v850, %v994
      %v996 = vpop.f32.mrf.mxu0
      %997 = vdwg.mxu0
      %998 = vmatprep.subr.mxu0 0.0
      %999 = vmatpush1.msra.mxu0 %v561
      %1000 = vmatprep.subr.mxu0 0.0
      %1001 = vmatpush1.msra.mxu0 %v560
      %1002 = vmatprep.subr.mxu0 0.0
      %1003 = vmatpush1.msra.mxu0 %v559
      %1004 = vmatprep.subr.mxu0 0.0
      %1005 = vmatpush1.msra.mxu0 %v558
      %1006 = vmatprep.subr.mxu0 0.0
      %1007 = vmatpush1.msra.mxu0 %v557
      %1008 = vmatprep.subr.mxu0 0.0
      %1009 = vmatpush1.msra.mxu0 %v556
      %1010 = vmatprep.subr.mxu0 0.0
      %1011 = vmatpush1.msra.mxu0 %v555
      %1012 = vmatprep.subr.mxu0 0.0
      %1013 = vmatpush1.msra.mxu0 %v554
      %1014 = vmatprep.subr.mxu0 0.0
      %1015 = vmatpush1.msra.mxu0 %v527
      %1016 = vmatprep.subr.mxu0 0.0
      %1017 = vmatpush1.msra.mxu0 %v526
      %1018 = vmatprep.subr.mxu0 0.0
      %1019 = vmatpush1.msra.mxu0 %v525
      %1020 = vmatprep.subr.mxu0 0.0
      %1021 = vmatpush1.msra.mxu0 %v524
      %1022 = vmatprep.subr.mxu0 0.0
      %1023 = vmatpush1.msra.mxu0 %v523
      %1024 = vmatprep.subr.mxu0 0.0
      %1025 = vmatpush1.msra.mxu0 %v522
      %1026 = vmatprep.subr.mxu0 0.0
      %1027 = vmatpush1.msra.mxu0 %v521
      %1028 = vmatprep.subr.mxu0 0.0
      %1029 = vmatpush1.msra.mxu0 %v520
      %1030 = vmatprep.subr.mxu0 0.0
      %1031 = vmatpush2.msra.mxu0 0.0
      %1032 = vmatprep.subr.mxu0 0.0
      %1033 = vmatpush2.msra.mxu0 0.0
      %1034 = vmatprep.subr.mxu0 0.0
      %1035 = vmatpush2.msra.mxu0 0.0
      %1036 = vmatprep.subr.mxu0 0.0
      %1037 = vmatpush2.msra.mxu0 0.0
      %1038 = vmatprep.subr.mxu0 0.0
      %1039 = vmatpush2.msra.mxu0 0.0
      %1040 = vmatprep.subr.mxu0 0.0
      %1041 = vmatpush2.msra.mxu0 0.0
      %1042 = vmatprep.subr.mxu0 0.0
      %1043 = vmatpush2.msra.mxu0 0.0
      %1044 = vmatprep.subr.mxu0 0.0
      %1045 = vmatpush2.msra.mxu0 0.0
      %1046 = vmatprep.subr.mxu0 0.0
      %1047 = vmatpush2.msra.mxu0 0.0
      %1048 = vmatprep.subr.mxu0 0.0
      %1049 = vmatpush2.msra.mxu0 0.0
      %1050 = vmatprep.subr.mxu0 0.0
      %1051 = vmatpush2.msra.mxu0 0.0
      %1052 = vmatprep.subr.mxu0 0.0
      %1053 = vmatpush2.msra.mxu0 0.0
      %1054 = vmatprep.subr.mxu0 0.0
      %1055 = vmatpush2.msra.mxu0 0.0
      %1056 = vmatprep.subr.mxu0 0.0
      %1057 = vmatpush2.msra.mxu0 0.0
      %1058 = vmatprep.subr.mxu0 0.0
      %1059 = vmatpush2.msra.mxu0 0.0
      %1060 = vmatprep.subr.mxu0 0.0
      %1061 = vmatpush2.msra.mxu0 %v562
      %1062 = vmatprep.mubr.f32.mxu0 %v661
      %1063 = vmatmul.mubr.f32.gmra.mxu0 %v567
      %v1064 = vpop.f32.mrf.mxu0
      %v1065 = vadd.f32 %v920, %v1064
      %v1066 = vpop.f32.mrf.mxu0
      %1067 = vmatprep.mubr.f32.mxu0 %v664
      %1068 = vmatmul.mubr.f32.gmra.mxu0 %v573
      %v1069 = vpop.f32.mrf.mxu0
      %v1070 = vadd.f32 %v925, %v1069
      %v1071 = vpop.f32.mrf.mxu0
      %1072 = vmatprep.mubr.f32.mxu0 %v667
      %1073 = vmatmul.mubr.f32.gmra.mxu0 %v579
      %v1074 = vpop.f32.mrf.mxu0
      %v1075 = vadd.f32 %v930, %v1074
      %v1076 = vpop.f32.mrf.mxu0
      %1077 = vmatprep.mubr.f32.mxu0 %v670
      %1078 = vmatmul.mubr.f32.gmra.mxu0 %v585
      %v1079 = vpop.f32.mrf.mxu0
      %v1080 = vadd.f32 %v935, %v1079
      %v1081 = vpop.f32.mrf.mxu0
      %1082 = vmatprep.mubr.f32.mxu0 %v673
      %1083 = vmatmul.mubr.f32.gmra.mxu0 %v591
      %v1084 = vpop.f32.mrf.mxu0
      %v1085 = vadd.f32 %v940, %v1084
      %v1086 = vpop.f32.mrf.mxu0
      %1087 = vmatprep.mubr.f32.mxu0 %v676
      %1088 = vmatmul.mubr.f32.gmra.mxu0 %v597
      %v1089 = vpop.f32.mrf.mxu0
      %v1090 = vadd.f32 %v945, %v1089
      %v1091 = vpop.f32.mrf.mxu0
      %1092 = vmatprep.mubr.f32.mxu0 %v679
      %1093 = vmatmul.mubr.f32.gmra.mxu0 %v603
      %v1094 = vpop.f32.mrf.mxu0
      %v1095 = vadd.f32 %v950, %v1094
      %v1096 = vpop.f32.mrf.mxu0
      %1097 = vmatprep.mubr.f32.mxu0 %v682
      %1098 = vmatmul.mubr.f32.gmra.mxu0 %v609
      %v1099 = vpop.f32.mrf.mxu0
      %v1100 = vadd.f32 %v955, %v1099
      %v1101 = vpop.f32.mrf.mxu0
      %1102 = vmatprep.mubr.f32.mxu0 %v685
      %1103 = vmatmul.mubr.f32.gmra.mxu0 %v615
      %v1104 = vpop.f32.mrf.mxu0
      %v1105 = vadd.f32 %v960, %v1104
      %v1106 = vpop.f32.mrf.mxu0
      %1107 = vmatprep.mubr.f32.mxu0 %v688
      %1108 = vmatmul.mubr.f32.gmra.mxu0 %v621
      %v1109 = vpop.f32.mrf.mxu0
      %v1110 = vadd.f32 %v965, %v1109
      %v1111 = vpop.f32.mrf.mxu0
      %1112 = vmatprep.mubr.f32.mxu0 %v691
      %1113 = vmatmul.mubr.f32.gmra.mxu0 %v627
      %v1114 = vpop.f32.mrf.mxu0
      %v1115 = vadd.f32 %v970, %v1114
      %v1116 = vpop.f32.mrf.mxu0
      %1117 = vmatprep.mubr.f32.mxu0 %v694
      %1118 = vmatmul.mubr.f32.gmra.mxu0 %v633
      %v1119 = vpop.f32.mrf.mxu0
      %v1120 = vadd.f32 %v975, %v1119
      %v1121 = vpop.f32.mrf.mxu0
      %1122 = vmatprep.mubr.f32.mxu0 %v697
      %1123 = vmatmul.mubr.f32.gmra.mxu0 %v639
      %v1124 = vpop.f32.mrf.mxu0
      %v1125 = vadd.f32 %v980, %v1124
      %v1126 = vpop.f32.mrf.mxu0
      %1127 = vmatprep.mubr.f32.mxu0 %v700
      %1128 = vmatmul.mubr.f32.gmra.mxu0 %v645
      %v1129 = vpop.f32.mrf.mxu0
      %v1130 = vadd.f32 %v985, %v1129
      %v1131 = vpop.f32.mrf.mxu0
      %1132 = vmatprep.mubr.f32.mxu0 %v703
      %1133 = vmatmul.mubr.f32.gmra.mxu0 %v651
      %v1134 = vpop.f32.mrf.mxu0
      %v1135 = vadd.f32 %v990, %v1134
      %v1136 = vpop.f32.mrf.mxu0
      %1137 = vmatprep.mubr.f32.mxu0 %v706
      %1138 = vmatmul.mubr.f32.gmra.mxu0 %v657
      %v1139 = vpop.f32.mrf.mxu0
      %v1140 = vadd.f32 %v995, %v1139
      %v1141 = vpop.f32.mrf.mxu0
      %1142 = vdwg.mxu0
      %1143 = vadd.xlane.f32.xlu0 %v1065
      %v1144 = vpop.xlane.xlu0 %1143
      %1145 = vadd.xlane.f32.xlu0 %v1070
      %v1146 = vpop.xlane.xlu0 %1145
      %1147 = vadd.xlane.f32.xlu0 %v1075
      %v1148 = vpop.xlane.xlu0 %1147
      %1149 = vadd.xlane.f32.xlu0 %v1080
      %v1150 = vpop.xlane.xlu0 %1149
      %1151 = vadd.xlane.f32.xlu0 %v1085
      %v1152 = vpop.xlane.xlu0 %1151
      %1153 = vadd.xlane.f32.xlu0 %v1090
      %v1154 = vpop.xlane.xlu0 %1153
      %1155 = vadd.xlane.f32.xlu0 %v1095
      %v1156 = vpop.xlane.xlu0 %1155
      %1157 = vadd.xlane.f32.xlu0 %v1100
      %v1158 = vpop.xlane.xlu0 %1157
      %1159 = vadd.xlane.f32.xlu0 %v1105
      %v1160 = vpop.xlane.xlu0 %1159
      %1161 = vadd.xlane.f32.xlu0 %v1110
      %v1162 = vpop.xlane.xlu0 %1161
      %1163 = vadd.xlane.f32.xlu0 %v1115
      %v1164 = vpop.xlane.xlu0 %1163
      %1165 = vadd.xlane.f32.xlu0 %v1120
      %v1166 = vpop.xlane.xlu0 %1165
      %1167 = vadd.xlane.f32.xlu0 %v1125
      %v1168 = vpop.xlane.xlu0 %1167
      %1169 = vadd.xlane.f32.xlu0 %v1130
      %v1170 = vpop.xlane.xlu0 %1169
      %1171 = vadd.xlane.f32.xlu0 %v1135
      %v1172 = vpop.xlane.xlu0 %1171
      %1173 = vadd.xlane.f32.xlu0 %v1140
      %v1174 = vpop.xlane.xlu0 %1173
      %v1175 = vmul.f32 %v1065, %v1065
      %v1176 = vmul.f32 %v1070, %v1070
      %v1177 = vmul.f32 %v1075, %v1075
      %v1178 = vmul.f32 %v1080, %v1080
      %v1179 = vmul.f32 %v1085, %v1085
      %v1180 = vmul.f32 %v1090, %v1090
      %v1181 = vmul.f32 %v1095, %v1095
      %v1182 = vmul.f32 %v1100, %v1100
      %v1183 = vmul.f32 %v1105, %v1105
      %v1184 = vmul.f32 %v1110, %v1110
      %v1185 = vmul.f32 %v1115, %v1115
      %v1186 = vmul.f32 %v1120, %v1120
      %v1187 = vmul.f32 %v1125, %v1125
      %v1188 = vmul.f32 %v1130, %v1130
      %v1189 = vmul.f32 %v1135, %v1135
      %v1190 = vmul.f32 %v1140, %v1140
      %1191 = vadd.xlane.f32.xlu0 %v1175
      %v1192 = vpop.xlane.xlu0 %1191
      %1193 = vadd.xlane.f32.xlu0 %v1176
      %v1194 = vpop.xlane.xlu0 %1193
      %1195 = vadd.xlane.f32.xlu0 %v1177
      %v1196 = vpop.xlane.xlu0 %1195
      %1197 = vadd.xlane.f32.xlu0 %v1178
      %v1198 = vpop.xlane.xlu0 %1197
      %1199 = vadd.xlane.f32.xlu0 %v1179
      %v1200 = vpop.xlane.xlu0 %1199
      %1201 = vadd.xlane.f32.xlu0 %v1180
      %v1202 = vpop.xlane.xlu0 %1201
      %1203 = vadd.xlane.f32.xlu0 %v1181
      %v1204 = vpop.xlane.xlu0 %1203
      %1205 = vadd.xlane.f32.xlu0 %v1182
      %v1206 = vpop.xlane.xlu0 %1205
      %1207 = vadd.xlane.f32.xlu0 %v1183
      %v1208 = vpop.xlane.xlu0 %1207
      %1209 = vadd.xlane.f32.xlu0 %v1184
      %v1210 = vpop.xlane.xlu0 %1209
      %1211 = vadd.xlane.f32.xlu0 %v1185
      %v1212 = vpop.xlane.xlu0 %1211
      %1213 = vadd.xlane.f32.xlu0 %v1186
      %v1214 = vpop.xlane.xlu0 %1213
      %1215 = vadd.xlane.f32.xlu0 %v1187
      %v1216 = vpop.xlane.xlu0 %1215
      %1217 = vadd.xlane.f32.xlu0 %v1188
      %v1218 = vpop.xlane.xlu0 %1217
      %1219 = vadd.xlane.f32.xlu0 %v1189
      %v1220 = vpop.xlane.xlu0 %1219
      %1221 = vadd.xlane.f32.xlu0 %v1190
      %v1222 = vpop.xlane.xlu0 %1221
      %vm1223 = vcmask 7168
      %v1224 = vsel %vm1223, %v1144, %v1192
      %v1225 = vsel %vm1223, %v1146, %v1194
      %v1226 = vsel %vm1223, %v1148, %v1196
      %v1227 = vsel %vm1223, %v1150, %v1198
      %v1228 = vsel %vm1223, %v1152, %v1200
      %v1229 = vsel %vm1223, %v1154, %v1202
      %v1230 = vsel %vm1223, %v1156, %v1204
      %v1231 = vsel %vm1223, %v1158, %v1206
      %v1232 = vsel %vm1223, %v1160, %v1208
      %v1233 = vsel %vm1223, %v1162, %v1210
      %v1234 = vsel %vm1223, %v1164, %v1212
      %v1235 = vsel %vm1223, %v1166, %v1214
      %v1236 = vsel %vm1223, %v1168, %v1216
      %v1237 = vsel %vm1223, %v1170, %v1218
      %v1238 = vsel %vm1223, %v1172, %v1220
      %v1239 = vsel %vm1223, %v1174, %v1222
      %vm1240 = vcmask 15360
      %1241 = vst.msk [vmem:[%s269] sm:$0xff] %vm1240, %v1224
      %1242 = vst.msk [vmem:[%s269 + $0x8] sm:$0xff] %vm1240, %v1225
      %1243 = vst.msk [vmem:[%s269 + $0x10] sm:$0xff] %vm1240, %v1226
      %1244 = vst.msk [vmem:[%s269 + $0x18] sm:$0xff] %vm1240, %v1227
      %1245 = vst.msk [vmem:[%s269 + $0x20] sm:$0xff] %vm1240, %v1228
      %1246 = vst.msk [vmem:[%s269 + $0x28] sm:$0xff] %vm1240, %v1229
      %1247 = vst.msk [vmem:[%s269 + $0x30] sm:$0xff] %vm1240, %v1230
      %1248 = vst.msk [vmem:[%s269 + $0x38] sm:$0xff] %vm1240, %v1231
      %1249 = vst.msk [vmem:[%s269 + $0x40] sm:$0xff] %vm1240, %v1232
      %1250 = vst.msk [vmem:[%s269 + $0x48] sm:$0xff] %vm1240, %v1233
      %1251 = vst.msk [vmem:[%s269 + $0x50] sm:$0xff] %vm1240, %v1234
      %1252 = vst.msk [vmem:[%s269 + $0x58] sm:$0xff] %vm1240, %v1235
      %1253 = vst.msk [vmem:[%s269 + $0x60] sm:$0xff] %vm1240, %v1236
      %1254 = vst.msk [vmem:[%s269 + $0x68] sm:$0xff] %vm1240, %v1237
      %1255 = vst.msk [vmem:[%s269 + $0x70] sm:$0xff] %vm1240, %v1238
      %1256 = vst.msk [vmem:[%s269 + $0x78] sm:$0xff] %vm1240, %v1239
      %p1257 = scmp.lt.s32.totalorder %s19, 1
      %s1258 = scalar_select %p1257, %s19, 1
      %p1259 = scmp.lt.s32.totalorder %s20, 0
      %s1260 = scalar_select %p1259, %s20, 0
      %s1261 = smul.addr %s1260, 16
      %s1262 = smul.addr %s1258, 16
      %s1263 = sadd.s32 %s1261, %s1262
      %s1264 = smul.addr %s1263, 8
      %s1265 = scalar_lea.vmem %s4, %s1264
      // Predicated region
      $region37: #{_lambda_.2} parent=35 // pred_check
        %p1266 = pneg %p145
      $region38: #{_lambda_.2} parent=35 // pred_check_branch
        %1268 = sbr.rel (%p1266) target = $region40
      $region39: #{_lambda_.2} parent=35 // pred_region
        _
      $region40: #{_lambda_.2} parent=35 // pred_fallthru
        _
    $region36: #{_lambda_.2} parent=5 // pred_fallthru
      _
    %p1269 = scmp.le.s32.totalorder 2, %s10
    // Predicated region
    $region41: #{_lambda_.2} parent=5 // pred_check
      %p1270 = pneg %p1269
    $region42: #{_lambda_.2} parent=5 // pred_check_branch
      %1272 = sbr.rel (%p1270) target = $region44
    $region43: #{_lambda_.2} parent=5 // pred_region
      %s1273 = ssub.s32 %s10, 2
      // Predicated region
      $region45: #{_lambda_.2} parent=43 // pred_check
        %p1274 = pneg %p151
      $region46: #{_lambda_.2} parent=43 // pred_check_branch
        %1276 = sbr.rel (%p1274) target = $region48
      $region47: #{_lambda_.2} parent=43 // pred_region
        %p1277 = scmp.lt.s32.totalorder %s21, 1
        %s1278 = scalar_select %p1277, %s21, 1
        %p1279 = scmp.lt.s32.totalorder %s22, 0
        %s1280 = scalar_select %p1279, %s22, 0
        %s1281 = smul.addr %s1280, 16
        %s1282 = smul.addr %s1278, 16
        %s1283 = sadd.s32 %s1281, %s1282
        %s1284 = smul.addr %s1283, 8
        %s1285 = scalar_lea.vmem %s4, %s1284
      $region48: #{_lambda_.2} parent=43 // pred_fallthru
        _
    $region44: #{_lambda_.2} parent=5 // pred_fallthru
      _
  $region6: #{_lambda_.2} parent=0 // loop_footer
    %s14 = sadd.s32 1, %s10
  $region7: #{_lambda_.2} parent=0 // loop_footer_branch
    %9 = sbr.rel target = $region3
  $region8: #{_lambda_.2} parent=0 // loop_exit
    _

// kernel: _lambda_.3
$region0: #{_lambda_.3}
  #allocation0 [shape = 'u32[]', space=smem, size = 0x4, offset = 0x4, fixed_abs, tag = 'smem constant byte address 0x4 - core index']
  #allocation1 [shape = 'u32[144,128]{1,0:T(1,128)}', space=vmem, size = 0x12000, scoped, tag = 'internal scratch']
  %s0 = inlined_call_operand.vmem [shape: f32[2,4,16,128], index: 0, kind: input, shape index: {}]
  %s1 = inlined_call_operand.vmem [shape: f32[2,1,2,4,128], index: 1, kind: input, shape index: {}]
  %s2 = inlined_call_operand.vmem [shape: f32[128,648], index: 2, kind: input, shape index: {}]
  %s3 = inlined_call_operand.vmem [shape: f32[9,1,128], index: 3, kind: input, shape index: {}]
  %s4 = inlined_call_operand.vmem [shape: f32[128,1], index: 4, kind: input, shape index: {}]
  %s5 = inlined_call_operand.vmem [shape: f32[128,1], index: 5, kind: input, shape index: {}]
  %s6 = inlined_call_operand.vmem [shape: f32[2,8,16,128], index: 6, kind: output, shape index: {}]
  %s7 = sld [smem:[#allocation0]]
  $region57: #{_lambda_.3} parent=0
    _
  %s9 = ssub.s32 1, %s7
  %s10 = scalar_select 0, %s9, %s7
  loop: start=0, step=1, limit=4
  $region2: #{_lambda_.3} parent=0 // loop_pre_header
    _
  $region3: #{_lambda_.3} parent=0 // loop_header
    %s12 = sphi 0, %s16
    %p13 = scmp.ge.s32.totalorder %s12, 4
    %s19 = sphi 0, %s31
    %s20 = sphi 0, %s27
    %s21 = sphi 0, %s19
    %s22 = sphi 0, %s20
    %s23 = sphi 0, %s21
    %s24 = sphi 0, %s22
    %s36 = sphi 0, %s38
    %s39 = sphi 0, %s36
    %s40 = sphi 0, %s39
    %s56 = sphi 0, %s40
    %s64 = sphi 0, %s66
    %s67 = sphi 0, %s64
    %s68 = sphi 0, %s67
    %s84 = sphi 0, %s68
    %s88 = sphi 0, %s88
    %s90 = sphi 0, %s88
    %s91 = sphi 0, %s90
    %s105 = sphi 0, %s91
    %s109 = sphi 0, %s109
    %s111 = sphi 0, %s109
    %s112 = sphi 0, %s111
    %s126 = sphi 0, %s112
    %s130 = sphi 0, %s130
    %s132 = sphi 0, %s130
    %s133 = sphi 0, %s132
    %s147 = sphi 0, %s133
    %s151 = sphi 0, %s151
    %s153 = sphi 0, %s151
    %s154 = sphi 0, %s153
    %s168 = sphi 0, %s154
    %s176 = sphi 0, %s178
    %s179 = sphi 0, %s176
    %s180 = sphi 0, %s179
    %s196 = sphi 0, %s180
  $region4: #{_lambda_.3} parent=0 // loop_header_branch
    %15 = sbr.rel (%p13) target = $region8
  $region5: #{_lambda_.3} parent=0 // loop_body
    %s17 = ssub.s32 %s12, 1
    %s18 = ssub.s32 %s12, 2
    %s25 = sadd.s32 1, %s20
    %p26 = scmp.ge.s32.totalorder %s25, 1
    %s27 = scalar_select %p26, 0, %s25
    %s28 = sadd.s32 1, %s19
    %s29 = scalar_select %p26, %s28, %s19
    %p30 = scmp.ge.s32.totalorder %s29, 2
    %s31 = scalar_select %p30, 0, %s29
    %s32 = ssub.s32 %s19, %s31
    %s33 = ssub.s32 %s20, %s27
    %s34 = sor.u32 %s32, %s33
    %p35 = scmp.eq.s32.totalorder %s34, 0
    %s37 = sadd.s32 %s36, 1
    %s38 = scalar_select %p35, %s36, %s37
    %p41 = pneg %p35
    %p42 = scmp.eq.s32.totalorder %s12, 1
    %p43 = por %p41, %p42
    %p44 = scmp.ne.s32.totalorder %s36, %s39
    %p45 = scmp.eq.s32.totalorder %s12, 0
    %p46 = por %p44, %p45
    %p47 = scmp.ne.s32.totalorder %s36, %s39
    %p48 = scmp.eq.s32.totalorder %s17, 1
    %p49 = por %p47, %p48
    %p50 = scmp.ne.s32.totalorder %s39, %s40
    %p51 = scmp.eq.s32.totalorder %s17, 0
    %p52 = por %p50, %p51
    %p53 = scmp.ne.s32.totalorder %s39, %s40
    %p54 = scmp.eq.s32.totalorder %s18, 1
    %p55 = por %p53, %p54
    %p57 = scmp.ne.s32.totalorder %s40, %s56
    %p58 = scmp.eq.s32.totalorder %s18, 0
    %p59 = por %p57, %p58
    %s60 = ssub.s32 %s19, %s31
    %s61 = ssub.s32 %s20, %s27
    %s62 = sor.u32 %s60, %s61
    %p63 = scmp.eq.s32.totalorder %s62, 0
    %s65 = sadd.s32 %s64, 1
    %s66 = scalar_select %p63, %s64, %s65
    %p69 = pneg %p63
    %p70 = scmp.eq.s32.totalorder %s12, 1
    %p71 = por %p69, %p70
    %p72 = scmp.ne.s32.totalorder %s64, %s67
    %p73 = scmp.eq.s32.totalorder %s12, 0
    %p74 = por %p72, %p73
    %p75 = scmp.ne.s32.totalorder %s64, %s67
    %p76 = scmp.eq.s32.totalorder %s17, 1
    %p77 = por %p75, %p76
    %p78 = scmp.ne.s32.totalorder %s67, %s68
    %p79 = scmp.eq.s32.totalorder %s17, 0
    %p80 = por %p78, %p79
    %p81 = scmp.ne.s32.totalorder %s67, %s68
    %p82 = scmp.eq.s32.totalorder %s18, 1
    %p83 = por %p81, %p82
    %p85 = scmp.ne.s32.totalorder %s68, %s84
    %p86 = scmp.eq.s32.totalorder %s18, 0
    %p87 = por %p85, %p86
    %s89 = sadd.s32 %s88, 1
    %p92 = scmp.eq.s32.totalorder %s12, 1
    %p93 = scmp.ne.s32.totalorder %s88, %s90
    %p94 = scmp.eq.s32.totalorder %s12, 0
    %p95 = por %p93, %p94
    %p96 = scmp.ne.s32.totalorder %s88, %s90
    %p97 = scmp.eq.s32.totalorder %s17, 1
    %p98 = por %p96, %p97
    %p99 = scmp.ne.s32.totalorder %s90, %s91
    %p100 = scmp.eq.s32.totalorder %s17, 0
    %p101 = por %p99, %p100
    %p102 = scmp.ne.s32.totalorder %s90, %s91
    %p103 = scmp.eq.s32.totalorder %s18, 1
    %p104 = por %p102, %p103
    %p106 = scmp.ne.s32.totalorder %s91, %s105
    %p107 = scmp.eq.s32.totalorder %s18, 0
    %p108 = por %p106, %p107
    %s110 = sadd.s32 %s109, 1
    %p113 = scmp.eq.s32.totalorder %s12, 1
    %p114 = scmp.ne.s32.totalorder %s109, %s111
    %p115 = scmp.eq.s32.totalorder %s12, 0
    %p116 = por %p114, %p115
    %p117 = scmp.ne.s32.totalorder %s109, %s111
    %p118 = scmp.eq.s32.totalorder %s17, 1
    %p119 = por %p117, %p118
    %p120 = scmp.ne.s32.totalorder %s111, %s112
    %p121 = scmp.eq.s32.totalorder %s17, 0
    %p122 = por %p120, %p121
    %p123 = scmp.ne.s32.totalorder %s111, %s112
    %p124 = scmp.eq.s32.totalorder %s18, 1
    %p125 = por %p123, %p124
    %p127 = scmp.ne.s32.totalorder %s112, %s126
    %p128 = scmp.eq.s32.totalorder %s18, 0
    %p129 = por %p127, %p128
    %s131 = sadd.s32 %s130, 1
    %p134 = scmp.eq.s32.totalorder %s12, 1
    %p135 = scmp.ne.s32.totalorder %s130, %s132
    %p136 = scmp.eq.s32.totalorder %s12, 0
    %p137 = por %p135, %p136
    %p138 = scmp.ne.s32.totalorder %s130, %s132
    %p139 = scmp.eq.s32.totalorder %s17, 1
    %p140 = por %p138, %p139
    %p141 = scmp.ne.s32.totalorder %s132, %s133
    %p142 = scmp.eq.s32.totalorder %s17, 0
    %p143 = por %p141, %p142
    %p144 = scmp.ne.s32.totalorder %s132, %s133
    %p145 = scmp.eq.s32.totalorder %s18, 1
    %p146 = por %p144, %p145
    %p148 = scmp.ne.s32.totalorder %s133, %s147
    %p149 = scmp.eq.s32.totalorder %s18, 0
    %p150 = por %p148, %p149
    %s152 = sadd.s32 %s151, 1
    %p155 = scmp.eq.s32.totalorder %s12, 1
    %p156 = scmp.ne.s32.totalorder %s151, %s153
    %p157 = scmp.eq.s32.totalorder %s12, 0
    %p158 = por %p156, %p157
    %p159 = scmp.ne.s32.totalorder %s151, %s153
    %p160 = scmp.eq.s32.totalorder %s17, 1
    %p161 = por %p159, %p160
    %p162 = scmp.ne.s32.totalorder %s153, %s154
    %p163 = scmp.eq.s32.totalorder %s17, 0
    %p164 = por %p162, %p163
    %p165 = scmp.ne.s32.totalorder %s153, %s154
    %p166 = scmp.eq.s32.totalorder %s18, 1
    %p167 = por %p165, %p166
    %p169 = scmp.ne.s32.totalorder %s154, %s168
    %p170 = scmp.eq.s32.totalorder %s18, 0
    %p171 = por %p169, %p170
    %s172 = ssub.s32 %s19, %s31
    %s173 = ssub.s32 %s20, %s27
    %s174 = sor.u32 %s172, %s173
    %p175 = scmp.eq.s32.totalorder %s174, 0
    %s177 = sadd.s32 %s176, 1
    %s178 = scalar_select %p175, %s176, %s177
    %p181 = pneg %p175
    %p182 = scmp.eq.s32.totalorder %s12, 1
    %p183 = por %p181, %p182
    %p184 = scmp.ne.s32.totalorder %s176, %s179
    %p185 = scmp.eq.s32.totalorder %s12, 0
    %p186 = por %p184, %p185
    %p187 = scmp.ne.s32.totalorder %s176, %s179
    %p188 = scmp.eq.s32.totalorder %s17, 1
    %p189 = por %p187, %p188
    %p190 = scmp.ne.s32.totalorder %s179, %s180
    %p191 = scmp.eq.s32.totalorder %s17, 0
    %p192 = por %p190, %p191
    %p193 = scmp.ne.s32.totalorder %s179, %s180
    %p194 = scmp.eq.s32.totalorder %s18, 1
    %p195 = por %p193, %p194
    %p197 = scmp.ne.s32.totalorder %s180, %s196
    %p198 = scmp.eq.s32.totalorder %s18, 0
    %p199 = por %p197, %p198
    %p200 = scmp.le.s32.totalorder 1, %s12
    %p201 = scmp.lt.s32.totalorder %s12, 3
    %p202 = pnand %p200, %p201
    %p203 = pneg %p202
    // Predicated region
    $region9: #{_lambda_.3} parent=5 // pred_check
      _
    $region10: #{_lambda_.3} parent=5 // pred_check_branch
      %205 = sbr.rel (%p202) target = $region12
    $region11: #{_lambda_.3} parent=5 // pred_region
      %s206 = ssub.s32 %s12, 1
      // Predicated region
      $region13: #{_lambda_.3} parent=11 // pred_check
        %p207 = pneg %p101
      $region14: #{_lambda_.3} parent=11 // pred_check_branch
        %209 = sbr.rel (%p207) target = $region16
      $region15: #{_lambda_.3} parent=11 // pred_region
        _
      $region16: #{_lambda_.3} parent=11 // pred_fallthru
        _
      // Predicated region
      $region17: #{_lambda_.3} parent=11 // pred_check
        %p210 = pneg %p122
      $region18: #{_lambda_.3} parent=11 // pred_check_branch
        %212 = sbr.rel (%p210) target = $region20
      $region19: #{_lambda_.3} parent=11 // pred_region
        _
      $region20: #{_lambda_.3} parent=11 // pred_fallthru
        _
      // Predicated region
      $region21: #{_lambda_.3} parent=11 // pred_check
        %p213 = pneg %p143
      $region22: #{_lambda_.3} parent=11 // pred_check_branch
        %215 = sbr.rel (%p213) target = $region24
      $region23: #{_lambda_.3} parent=11 // pred_region
        _
      $region24: #{_lambda_.3} parent=11 // pred_fallthru
        _
      // Predicated region
      $region25: #{_lambda_.3} parent=11 // pred_check
        %p216 = pneg %p164
      $region26: #{_lambda_.3} parent=11 // pred_check_branch
        %218 = sbr.rel (%p216) target = $region28
      $region27: #{_lambda_.3} parent=11 // pred_region
        _
      $region28: #{_lambda_.3} parent=11 // pred_fallthru
        _
    $region12: #{_lambda_.3} parent=5 // pred_fallthru
      _
    %p219 = scmp.lt.s32.totalorder %s12, 2
    // Predicated region
    $region29: #{_lambda_.3} parent=5 // pred_check
      %p220 = pneg %p219
    $region30: #{_lambda_.3} parent=5 // pred_check_branch
      %222 = sbr.rel (%p220) target = $region32
    $region31: #{_lambda_.3} parent=5 // pred_region
      // Predicated region
      $region33: #{_lambda_.3} parent=31 // pred_check
        %p223 = pneg %p46
      $region34: #{_lambda_.3} parent=31 // pred_check_branch
        %225 = sbr.rel (%p223) target = $region36
      $region35: #{_lambda_.3} parent=31 // pred_region
        %s226 = smul.u32 2, %s20
        %p227 = scmp.lt.s32.totalorder %s19, 1
        %s228 = scalar_select %p227, %s19, 1
        %p229 = scmp.lt.s32.totalorder %s226, 1
        %s230 = scalar_select %p229, %s226, 1
        %s231 = smul.addr %s228, 8
        %s232 = sadd.s32 %s230, %s231
        %s233 = smul.addr %s232, 8
        %s234 = scalar_lea.vmem %s0, %s233
        %s235 = smul.u32 2, %s20
      $region36: #{_lambda_.3} parent=31 // pred_fallthru
        _
      // Predicated region
      $region37: #{_lambda_.3} parent=31 // pred_check
        %p236 = pneg %p74
      $region38: #{_lambda_.3} parent=31 // pred_check_branch
        %238 = sbr.rel (%p236) target = $region40
      $region39: #{_lambda_.3} parent=31 // pred_region
        %p239 = scmp.lt.s32.totalorder %s19, 1
        %s240 = scalar_select %p239, %s19, 1
        %p241 = scmp.lt.s32.totalorder %s20, 0
        %s242 = scalar_select %p241, %s20, 0
        %s243 = smul.addr %s242, 2
        %s244 = smul.addr %s240, 2
        %s245 = sadd.s32 %s243, %s244
        %s246 = smul.addr %s245, 4
        %s247 = scalar_lea.vmem %s1, %s246
      $region40: #{_lambda_.3} parent=31 // pred_fallthru
        _
    $region32: #{_lambda_.3} parent=5 // pred_fallthru
      _
    %p248 = scmp.le.s32.totalorder 1, %s12
    %p249 = scmp.lt.s32.totalorder %s12, 3
    %p250 = pnand %p248, %p249
    %p251 = pneg %p250
    // Predicated region
    $region41: #{_lambda_.3} parent=5 // pred_check
      _
    $region42: #{_lambda_.3} parent=5 // pred_check_branch
      %253 = sbr.rel (%p250) target = $region44
    $region43: #{_lambda_.3} parent=5 // pred_region
      %s254 = ssub.s32 %s12, 1
      %s255 = smul.u32 2, %s22
      %p256 = scmp.lt.s32.totalorder %s21, 1
      %s257 = scalar_select %p256, %s21, 1
      %p258 = scmp.lt.s32.totalorder %s255, 1
      %s259 = scalar_select %p258, %s255, 1
      %s260 = smul.addr %s257, 8
      %s261 = sadd.s32 %s259, %s260
      %s262 = smul.addr %s261, 8
      %s263 = scalar_lea.vmem %s0, %s262
      %p264 = pneg %p52
      %p265 = pneg %p49
      %p266 = scmp.lt.s32.totalorder %s21, 1
      %s267 = scalar_select %p266, %s21, 1
      %p268 = scmp.lt.s32.totalorder %s22, 0
      %s269 = scalar_select %p268, %s22, 0
      %s270 = smul.addr %s269, 2
      %s271 = smul.addr %s267, 2
      %s272 = sadd.s32 %s270, %s271
      %s273 = smul.addr %s272, 4
      %s274 = scalar_lea.vmem %s1, %s273
      %p275 = pneg %p80
      %p276 = pneg %p77
      %p277 = pneg %p101
      %p278 = pneg %p98
      %p279 = pneg %p122
      %p280 = pneg %p119
      %p281 = pneg %p143
      %p282 = pneg %p140
      %p283 = pneg %p164
      %p284 = pneg %p161
      %p285 = pneg %p192
      %p286 = pneg %p189
      %s287 = smul.u32 2, %s22
      %p288 = scmp.lt.s32.totalorder %s21, 1
      %s289 = scalar_select %p288, %s21, 1
      %p290 = scmp.lt.s32.totalorder %s287, 1
      %s291 = scalar_select %p290, %s287, 1
      %s292 = smul.addr %s289, 16
      %s293 = sadd.s32 %s291, %s292
      %s294 = smul.addr %s293, 8
      %s295 = scalar_lea.vmem %s6, %s294
      %s296 = smul.u32 2, %s22
      %p297 = scmp.lt.s32.totalorder %s21, 1
      %s298 = scalar_select %p297, %s21, 1
      %p299 = scmp.lt.s32.totalorder %s296, 1
      %s300 = scalar_select %p299, %s296, 1
      %s301 = smul.addr %s298, 8
      %s302 = sadd.s32 %s300, %s301
      %s303 = smul.addr %s302, 8
      %s304 = scalar_lea.vmem %s0, %s303
      %s305 = smul.u32 2, %s22
      %p306 = scmp.lt.s32.totalorder %s21, 1
      %s307 = scalar_select %p306, %s21, 1
      %p308 = scmp.lt.s32.totalorder %s22, 0
      %s309 = scalar_select %p308, %s22, 0
      %s310 = smul.addr %s309, 2
      %s311 = smul.addr %s307, 2
      %s312 = sadd.s32 %s310, %s311
      %s313 = smul.addr %s312, 4
      %s314 = scalar_lea.vmem %s1, %s313
      %s315 = smul.u32 2, %s22
      %p316 = scmp.lt.s32.totalorder %s21, 1
      %s317 = scalar_select %p316, %s21, 1
      %p318 = scmp.lt.s32.totalorder %s315, 1
      %s319 = scalar_select %p318, %s315, 1
      %s320 = smul.addr %s317, 16
      %s321 = sadd.s32 %s319, %s320
      %s322 = smul.addr %s321, 8
      %s323 = scalar_lea.vmem %s6, %s322
      %s324 = smul.u32 2, %s22
      %v325 = vld [vmem:[%s304] sm:$0xff]
      %v326 = vld [vmem:[%s304 + $0x8] sm:$0xff]
      %v327 = vld [vmem:[%s304 + $0x10] sm:$0xff]
      %v328 = vld [vmem:[%s304 + $0x18] sm:$0xff]
      %v329 = vld [vmem:[%s304 + $0x20] sm:$0xff]
      %v330 = vld [vmem:[%s304 + $0x28] sm:$0xff]
      %v331 = vld [vmem:[%s304 + $0x30] sm:$0xff]
      %v332 = vld [vmem:[%s304 + $0x38] sm:$0xff]
      %v333 = vld [vmem:[%s314] sm:$0xf]
      %v334 = vld [vmem:[%s314 + $0x4] sm:$0xf]
      %v337 = vcombine.low %v333, %v334
      %339 = vrot.lane.b32.xlu0 %v325, 17
      %v340 = vpop.permute.xlu0 %339
      %341 = vrot.lane.b32.xlu0 %v326, 17
      %v342 = vpop.permute.xlu0 %341
      %343 = vrot.lane.b32.xlu0 %v327, 17
      %v344 = vpop.permute.xlu0 %343
      %345 = vrot.lane.b32.xlu0 %v328, 17
      %v346 = vpop.permute.xlu0 %345
      %347 = vrot.lane.b32.xlu0 %v329, 17
      %v348 = vpop.permute.xlu0 %347
      %349 = vrot.lane.b32.xlu0 %v330, 17
      %v350 = vpop.permute.xlu0 %349
      %351 = vrot.lane.b32.xlu0 %v331, 17
      %v352 = vpop.permute.xlu0 %351
      %353 = vrot.lane.b32.xlu0 %v332, 17
      %v354 = vpop.permute.xlu0 %353
      %355 = vrot.lane.b32.xlu0 %v337, 17
      %v356 = vpop.permute.xlu0 %355
      %v357 = vld [vmem:[%s3] sm:$0x1]
      %v359 = vlaneseq
      %v360 = vshrl.u32 %v359, 7
      %v361 = vsub.s32 0, %v360
      %v362 = vrot.slane %v357, %v361
      %v364 = vmul.f32 %v340, %v362
      %v365 = vmul.f32 %v342, %v362
      %v366 = vmul.f32 %v344, %v362
      %v367 = vmul.f32 %v346, %v362
      %v368 = vmul.f32 %v348, %v362
      %v369 = vmul.f32 %v350, %v362
      %v370 = vmul.f32 %v352, %v362
      %v371 = vmul.f32 %v354, %v362
      %v372 = vmul.f32 %v356, %v362
      %373 = vrot.lane.b32.xlu0 %v325, 16
      %v374 = vpop.permute.xlu0 %373
      %375 = vrot.lane.b32.xlu0 %v326, 16
      %v376 = vpop.permute.xlu0 %375
      %377 = vrot.lane.b32.xlu0 %v327, 16
      %v378 = vpop.permute.xlu0 %377
      %379 = vrot.lane.b32.xlu0 %v328, 16
      %v380 = vpop.permute.xlu0 %379
      %381 = vrot.lane.b32.xlu0 %v329, 16
      %v382 = vpop.permute.xlu0 %381
      %383 = vrot.lane.b32.xlu0 %v330, 16
      %v384 = vpop.permute.xlu0 %383
      %385 = vrot.lane.b32.xlu0 %v331, 16
      %v386 = vpop.permute.xlu0 %385
      %387 = vrot.lane.b32.xlu0 %v332, 16
      %v388 = vpop.permute.xlu0 %387
      %389 = vrot.lane.b32.xlu0 %v337, 16
      %v390 = vpop.permute.xlu0 %389
      %s391 = scalar_lea.vmem %s3, 1
      %v392 = vld [vmem:[%s391] sm:$0x1]
      %v394 = vlaneseq
      %v395 = vshrl.u32 %v394, 7
      %v396 = vsub.s32 0, %v395
      %v397 = vrot.slane %v392, %v396
      %v399 = vmul.f32 %v374, %v397
      %v400 = vmul.f32 %v376, %v397
      %v401 = vmul.f32 %v378, %v397
      %v402 = vmul.f32 %v380, %v397
      %v403 = vmul.f32 %v382, %v397
      %v404 = vmul.f32 %v384, %v397
      %v405 = vmul.f32 %v386, %v397
      %v406 = vmul.f32 %v388, %v397
      %v407 = vmul.f32 %v390, %v397
      %408 = vrot.lane.b32.xlu0 %v325, 15
      %v409 = vpop.permute.xlu0 %408
      %410 = vrot.lane.b32.xlu0 %v326, 15
      %v411 = vpop.permute.xlu0 %410
      %412 = vrot.lane.b32.xlu0 %v327, 15
      %v413 = vpop.permute.xlu0 %412
      %414 = vrot.lane.b32.xlu0 %v328, 15
      %v415 = vpop.permute.xlu0 %414
      %416 = vrot.lane.b32.xlu0 %v329, 15
      %v417 = vpop.permute.xlu0 %416
      %418 = vrot.lane.b32.xlu0 %v330, 15
      %v419 = vpop.permute.xlu0 %418
      %420 = vrot.lane.b32.xlu0 %v331, 15
      %v421 = vpop.permute.xlu0 %420
      %422 = vrot.lane.b32.xlu0 %v332, 15
      %v423 = vpop.permute.xlu0 %422
      %424 = vrot.lane.b32.xlu0 %v337, 15
      %v425 = vpop.permute.xlu0 %424
      %s426 = scalar_lea.vmem %s3, 2
      %v427 = vld [vmem:[%s426] sm:$0x1]
      %v429 = vlaneseq
      %v430 = vshrl.u32 %v429, 7
      %v431 = vsub.s32 0, %v430
      %v432 = vrot.slane %v427, %v431
      %v434 = vmul.f32 %v409, %v432
      %v435 = vmul.f32 %v411, %v432
      %v436 = vmul.f32 %v413, %v432
      %v437 = vmul.f32 %v415, %v432
      %v438 = vmul.f32 %v417, %v432
      %v439 = vmul.f32 %v419, %v432
      %v440 = vmul.f32 %v421, %v432
      %v441 = vmul.f32 %v423, %v432
      %v442 = vmul.f32 %v425, %v432
      %443 = vrot.lane.b32.xlu0 %v325, 1
      %v444 = vpop.permute.xlu0 %443
      %445 = vrot.lane.b32.xlu0 %v326, 1
      %v446 = vpop.permute.xlu0 %445
      %447 = vrot.lane.b32.xlu0 %v327, 1
      %v448 = vpop.permute.xlu0 %447
      %449 = vrot.lane.b32.xlu0 %v328, 1
      %v450 = vpop.permute.xlu0 %449
      %451 = vrot.lane.b32.xlu0 %v329, 1
      %v452 = vpop.permute.xlu0 %451
      %453 = vrot.lane.b32.xlu0 %v330, 1
      %v454 = vpop.permute.xlu0 %453
      %455 = vrot.lane.b32.xlu0 %v331, 1
      %v456 = vpop.permute.xlu0 %455
      %457 = vrot.lane.b32.xlu0 %v332, 1
      %v458 = vpop.permute.xlu0 %457
      %459 = vrot.lane.b32.xlu0 %v337, 1
      %v460 = vpop.permute.xlu0 %459
      %s461 = scalar_lea.vmem %s3, 3
      %v462 = vld [vmem:[%s461] sm:$0x1]
      %v464 = vlaneseq
      %v465 = vshrl.u32 %v464, 7
      %v466 = vsub.s32 0, %v465
      %v467 = vrot.slane %v462, %v466
      %v469 = vmul.f32 %v444, %v467
      %v470 = vmul.f32 %v446, %v467
      %v471 = vmul.f32 %v448, %v467
      %v472 = vmul.f32 %v450, %v467
      %v473 = vmul.f32 %v452, %v467
      %v474 = vmul.f32 %v454, %v467
      %v475 = vmul.f32 %v456, %v467
      %v476 = vmul.f32 %v458, %v467
      %v477 = vmul.f32 %v460, %v467
      %478 = vrot.lane.b32.xlu0 %v325, 127
      %v479 = vpop.permute.xlu0 %478
      %480 = vrot.lane.b32.xlu0 %v326, 127
      %v481 = vpop.permute.xlu0 %480
      %482 = vrot.lane.b32.xlu0 %v327, 127
      %v483 = vpop.permute.xlu0 %482
      %484 = vrot.lane.b32.xlu0 %v328, 127
      %v485 = vpop.permute.xlu0 %484
      %486 = vrot.lane.b32.xlu0 %v329, 127
      %v487 = vpop.permute.xlu0 %486
      %488 = vrot.lane.b32.xlu0 %v330, 127
      %v489 = vpop.permute.xlu0 %488
      %490 = vrot.lane.b32.xlu0 %v331, 127
      %v491 = vpop.permute.xlu0 %490
      %492 = vrot.lane.b32.xlu0 %v332, 127
      %v493 = vpop.permute.xlu0 %492
      %494 = vrot.lane.b32.xlu0 %v337, 127
      %v495 = vpop.permute.xlu0 %494
      %s496 = scalar_lea.vmem %s3, 5
      %v497 = vld [vmem:[%s496] sm:$0x1]
      %v499 = vlaneseq
      %v500 = vshrl.u32 %v499, 7
      %v501 = vsub.s32 0, %v500
      %v502 = vrot.slane %v497, %v501
      %v504 = vmul.f32 %v479, %v502
      %v505 = vmul.f32 %v481, %v502
      %v506 = vmul.f32 %v483, %v502
      %v507 = vmul.f32 %v485, %v502
      %v508 = vmul.f32 %v487, %v502
      %v509 = vmul.f32 %v489, %v502
      %v510 = vmul.f32 %v491, %v502
      %v511 = vmul.f32 %v493, %v502
      %v512 = vmul.f32 %v495, %v502
      %513 = vrot.lane.b32.xlu0 %v325, 113
      %v514 = vpop.permute.xlu0 %513
      %515 = vrot.lane.b32.xlu0 %v326, 113
      %v516 = vpop.permute.xlu0 %515
      %517 = vrot.lane.b32.xlu0 %v327, 113
      %v518 = vpop.permute.xlu0 %517
      %519 = vrot.lane.b32.xlu0 %v328, 113
      %v520 = vpop.permute.xlu0 %519
      %521 = vrot.lane.b32.xlu0 %v329, 113
      %v522 = vpop.permute.xlu0 %521
      %523 = vrot.lane.b32.xlu0 %v330, 113
      %v524 = vpop.permute.xlu0 %523
      %525 = vrot.lane.b32.xlu0 %v331, 113
      %v526 = vpop.permute.xlu0 %525
      %527 = vrot.lane.b32.xlu0 %v332, 113
      %v528 = vpop.permute.xlu0 %527
      %529 = vrot.lane.b32.xlu0 %v337, 113
      %v530 = vpop.permute.xlu0 %529
      %s531 = scalar_lea.vmem %s3, 6
      %v532 = vld [vmem:[%s531] sm:$0x1]
      %v534 = vlaneseq
      %v535 = vshrl.u32 %v534, 7
      %v536 = vsub.s32 0, %v535
      %v537 = vrot.slane %v532, %v536
      %v539 = vmul.f32 %v514, %v537
      %v540 = vmul.f32 %v516, %v537
      %v541 = vmul.f32 %v518, %v537
      %v542 = vmul.f32 %v520, %v537
      %v543 = vmul.f32 %v522, %v537
      %v544 = vmul.f32 %v524, %v537
      %v545 = vmul.f32 %v526, %v537
      %v546 = vmul.f32 %v528, %v537
      %v547 = vmul.f32 %v530, %v537
      %548 = vrot.lane.b32.xlu0 %v325, 112
      %v549 = vpop.permute.xlu0 %548
      %550 = vrot.lane.b32.xlu0 %v326, 112
      %v551 = vpop.permute.xlu0 %550
      %552 = vrot.lane.b32.xlu0 %v327, 112
      %v553 = vpop.permute.xlu0 %552
      %554 = vrot.lane.b32.xlu0 %v328, 112
      %v555 = vpop.permute.xlu0 %554
      %556 = vrot.lane.b32.xlu0 %v329, 112
      %v557 = vpop.permute.xlu0 %556
      %558 = vrot.lane.b32.xlu0 %v330, 112
      %v559 = vpop.permute.xlu0 %558
      %560 = vrot.lane.b32.xlu0 %v331, 112
      %v561 = vpop.permute.xlu0 %560
      %562 = vrot.lane.b32.xlu0 %v332, 112
      %v563 = vpop.permute.xlu0 %562
      %564 = vrot.lane.b32.xlu0 %v337, 112
      %v565 = vpop.permute.xlu0 %564
      %s566 = scalar_lea.vmem %s3, 7
      %v567 = vld [vmem:[%s566] sm:$0x1]
      %v569 = vlaneseq
      %v570 = vshrl.u32 %v569, 7
      %v571 = vsub.s32 0, %v570
      %v572 = vrot.slane %v567, %v571
      %v574 = vmul.f32 %v549, %v572
      %v575 = vmul.f32 %v551, %v572
      %v576 = vmul.f32 %v553, %v572
      %v577 = vmul.f32 %v555, %v572
      %v578 = vmul.f32 %v557, %v572
      %v579 = vmul.f32 %v559, %v572
      %v580 = vmul.f32 %v561, %v572
      %v581 = vmul.f32 %v563, %v572
      %v582 = vmul.f32 %v565, %v572
      %583 = vrot.lane.b32.xlu0 %v325, 111
      %v584 = vpop.permute.xlu0 %583
      %585 = vrot.lane.b32.xlu0 %v326, 111
      %v586 = vpop.permute.xlu0 %585
      %587 = vrot.lane.b32.xlu0 %v327, 111
      %v588 = vpop.permute.xlu0 %587
      %589 = vrot.lane.b32.xlu0 %v328, 111
      %v590 = vpop.permute.xlu0 %589
      %591 = vrot.lane.b32.xlu0 %v329, 111
      %v592 = vpop.permute.xlu0 %591
      %593 = vrot.lane.b32.xlu0 %v330, 111
      %v594 = vpop.permute.xlu0 %593
      %595 = vrot.lane.b32.xlu0 %v331, 111
      %v596 = vpop.permute.xlu0 %595
      %597 = vrot.lane.b32.xlu0 %v332, 111
      %v598 = vpop.permute.xlu0 %597
      %599 = vrot.lane.b32.xlu0 %v337, 111
      %v600 = vpop.permute.xlu0 %599
      %s601 = scalar_lea.vmem %s3, 8
      %v602 = vld [vmem:[%s601] sm:$0x1]
      %v604 = vlaneseq
      %v605 = vshrl.u32 %v604, 7
      %v606 = vsub.s32 0, %v605
      %v607 = vrot.slane %v602, %v606
      %v609 = vmul.f32 %v584, %v607
      %v610 = vmul.f32 %v586, %v607
      %v611 = vmul.f32 %v588, %v607
      %v612 = vmul.f32 %v590, %v607
      %v613 = vmul.f32 %v592, %v607
      %v614 = vmul.f32 %v594, %v607
      %v615 = vmul.f32 %v596, %v607
      %v616 = vmul.f32 %v598, %v607
      %v617 = vmul.f32 %v600, %v607
      %v618 = vld [vmem:[%s2] sm:$0xff]
      %v619 = vld [vmem:[%s2 + $0x8] sm:$0xff]
      %v620 = vld [vmem:[%s2 + $0x10] sm:$0xff]
      %v621 = vld [vmem:[%s2 + $0x18] sm:$0xff]
      %v622 = vld [vmem:[%s2 + $0x20] sm:$0xff]
      %v623 = vld [vmem:[%s2 + $0x28] sm:$0xff]
      %v624 = vld [vmem:[%s2 + $0x30] sm:$0xff]
      %v625 = vld [vmem:[%s2 + $0x38] sm:$0xff]
      %v626 = vld [vmem:[%s2 + $0x40] sm:$0xff]
      %v627 = vld [vmem:[%s2 + $0x48] sm:$0xff]
      %v628 = vld [vmem:[%s2 + $0x50] sm:$0xff]
      %v629 = vld [vmem:[%s2 + $0x58] sm:$0xff]
      %v630 = vld [vmem:[%s2 + $0x60] sm:$0xff]
      %v631 = vld [vmem:[%s2 + $0x68] sm:$0xff]
      %v632 = vld [vmem:[%s2 + $0x70] sm:$0xff]
      %v633 = vld [vmem:[%s2 + $0x78] sm:$0xff]
      %v634 = vld [vmem:[%s2 + $0x80] sm:$0xff]
      %v635 = vld [vmem:[%s2 + $0x88] sm:$0xff]
      %v636 = vld [vmem:[%s2 + $0x90] sm:$0xff]
      %v637 = vld [vmem:[%s2 + $0x98] sm:$0xff]
      %v638 = vld [vmem:[%s2 + $0xa0] sm:$0xff]
      %v639 = vld [vmem:[%s2 + $0xa8] sm:$0xff]
      %v640 = vld [vmem:[%s2 + $0xb0] sm:$0xff]
      %v641 = vld [vmem:[%s2 + $0xb8] sm:$0xff]
      %v642 = vld [vmem:[%s2 + $0xc0] sm:$0xff]
      %v643 = vld [vmem:[%s2 + $0xc8] sm:$0xff]
      %v644 = vld [vmem:[%s2 + $0xd0] sm:$0xff]
      %v645 = vld [vmem:[%s2 + $0xd8] sm:$0xff]
      %v646 = vld [vmem:[%s2 + $0xe0] sm:$0xff]
      %v647 = vld [vmem:[%s2 + $0xe8] sm:$0xff]
      %v648 = vld [vmem:[%s2 + $0xf0] sm:$0xff]
      %v649 = vld [vmem:[%s2 + $0xf8] sm:$0xff]
      %v650 = vld [vmem:[%s2 + $0x100] sm:$0xff]
      %v651 = vld [vmem:[%s2 + $0x108] sm:$0xff]
      %v652 = vld [vmem:[%s2 + $0x110] sm:$0xff]
      %v653 = vld [vmem:[%s2 + $0x118] sm:$0xff]
      %v654 = vld [vmem:[%s2 + $0x120] sm:$0xff]
      %v655 = vld [vmem:[%s2 + $0x128] sm:$0xff]
      %v656 = vld [vmem:[%s2 + $0x130] sm:$0xff]
      %v657 = vld [vmem:[%s2 + $0x138] sm:$0xff]
      %v658 = vld [vmem:[%s2 + $0x140] sm:$0xff]
      %v659 = vld [vmem:[%s2 + $0x148] sm:$0xff]
      %v660 = vld [vmem:[%s2 + $0x150] sm:$0xff]
      %v661 = vld [vmem:[%s2 + $0x158] sm:$0xff]
      %v662 = vld [vmem:[%s2 + $0x160] sm:$0xff]
      %v663 = vld [vmem:[%s2 + $0x168] sm:$0xff]
      %v664 = vld [vmem:[%s2 + $0x170] sm:$0xff]
      %v665 = vld [vmem:[%s2 + $0x178] sm:$0xff]
      %v666 = vld [vmem:[%s2 + $0x180] sm:$0xff]
      %v667 = vld [vmem:[%s2 + $0x188] sm:$0xff]
      %v668 = vld [vmem:[%s2 + $0x190] sm:$0xff]
      %v669 = vld [vmem:[%s2 + $0x198] sm:$0xff]
      %v670 = vld [vmem:[%s2 + $0x1a0] sm:$0xff]
      %v671 = vld [vmem:[%s2 + $0x1a8] sm:$0xff]
      %v672 = vld [vmem:[%s2 + $0x1b0] sm:$0xff]
      %v673 = vld [vmem:[%s2 + $0x1b8] sm:$0xff]
      %v674 = vld [vmem:[%s2 + $0x1c0] sm:$0xff]
      %v675 = vld [vmem:[%s2 + $0x1c8] sm:$0xff]
      %v676 = vld [vmem:[%s2 + $0x1d0] sm:$0xff]
      %v677 = vld [vmem:[%s2 + $0x1d8] sm:$0xff]
      %v678 = vld [vmem:[%s2 + $0x1e0] sm:$0xff]
      %v679 = vld [vmem:[%s2 + $0x1e8] sm:$0xff]
      %v680 = vld [vmem:[%s2 + $0x1f0] sm:$0xff]
      %v681 = vld [vmem:[%s2 + $0x1f8] sm:$0xff]
      %v682 = vld [vmem:[%s2 + $0x200] sm:$0xff]
      %v683 = vld [vmem:[%s2 + $0x208] sm:$0xff]
      %v684 = vld [vmem:[%s2 + $0x210] sm:$0xff]
      %v685 = vld [vmem:[%s2 + $0x218] sm:$0xff]
      %v686 = vld [vmem:[%s2 + $0x220] sm:$0xff]
      %v687 = vld [vmem:[%s2 + $0x228] sm:$0xff]
      %v688 = vld [vmem:[%s2 + $0x230] sm:$0xff]
      %v689 = vld [vmem:[%s2 + $0x238] sm:$0xff]
      %v690 = vld [vmem:[%s2 + $0x240] sm:$0xff]
      %v691 = vld [vmem:[%s2 + $0x248] sm:$0xff]
      %v692 = vld [vmem:[%s2 + $0x250] sm:$0xff]
      %v693 = vld [vmem:[%s2 + $0x258] sm:$0xff]
      %v694 = vld [vmem:[%s2 + $0x260] sm:$0xff]
      %v695 = vld [vmem:[%s2 + $0x268] sm:$0xff]
      %v696 = vld [vmem:[%s2 + $0x270] sm:$0xff]
      %v697 = vld [vmem:[%s2 + $0x278] sm:$0xff]
      %v698 = vld [vmem:[%s2 + $0x280] sm:$0xff]
      %v699 = vld [vmem:[%s2 + $0x288] sm:$0xff]
      %v700 = vld [vmem:[%s2 + $0x290] sm:$0xff]
      %v701 = vld [vmem:[%s2 + $0x298] sm:$0xff]
      %v702 = vld [vmem:[%s2 + $0x2a0] sm:$0xff]
      %v703 = vld [vmem:[%s2 + $0x2a8] sm:$0xff]
      %v704 = vld [vmem:[%s2 + $0x2b0] sm:$0xff]
      %v705 = vld [vmem:[%s2 + $0x2b8] sm:$0xff]
      %v706 = vld [vmem:[%s2 + $0x2c0] sm:$0xff]
      %v707 = vld [vmem:[%s2 + $0x2c8] sm:$0xff]
      %v708 = vld [vmem:[%s2 + $0x2d0] sm:$0xff]
      %v709 = vld [vmem:[%s2 + $0x2d8] sm:$0xff]
      %v710 = vld [vmem:[%s2 + $0x2e0] sm:$0xff]
      %v711 = vld [vmem:[%s2 + $0x2e8] sm:$0xff]
      %v712 = vld [vmem:[%s2 + $0x2f0] sm:$0xff]
      %v713 = vld [vmem:[%s2 + $0x2f8] sm:$0xff]
      %vm714 = vcmask 64512
      %v716 = vsel %vm714, %v623, 0
      %v719 = vsel %vm714, %v629, 0
      %v722 = vsel %vm714, %v635, 0
      %v725 = vsel %vm714, %v641, 0
      %v728 = vsel %vm714, %v647, 0
      %v731 = vsel %vm714, %v653, 0
      %v734 = vsel %vm714, %v659, 0
      %v737 = vsel %vm714, %v665, 0
      %v740 = vsel %vm714, %v671, 0
      %v743 = vsel %vm714, %v677, 0
      %v746 = vsel %vm714, %v683, 0
      %v749 = vsel %vm714, %v689, 0
      %v752 = vsel %vm714, %v695, 0
      %v755 = vsel %vm714, %v701, 0
      %v758 = vsel %vm714, %v707, 0
      %v761 = vsel %vm714, %v713, 0
      %763 = vmatprep.subr.mxu0 0.0
      %764 = vmatpush1.msra.mxu0 %v405
      %765 = vmatprep.subr.mxu0 0.0
      %766 = vmatpush1.msra.mxu0 %v404
      %767 = vmatprep.subr.mxu0 0.0
      %768 = vmatpush1.msra.mxu0 %v403
      %769 = vmatprep.subr.mxu0 0.0
      %770 = vmatpush1.msra.mxu0 %v402
      %771 = vmatprep.subr.mxu0 0.0
      %772 = vmatpush1.msra.mxu0 %v401
      %773 = vmatprep.subr.mxu0 0.0
      %774 = vmatpush1.msra.mxu0 %v400
      %775 = vmatprep.subr.mxu0 0.0
      %776 = vmatpush1.msra.mxu0 %v399
      %777 = vmatprep.subr.mxu0 0.0
      %778 = vmatpush1.msra.mxu0 %v372
      %779 = vmatprep.subr.mxu0 0.0
      %780 = vmatpush1.msra.mxu0 %v371
      %781 = vmatprep.subr.mxu0 0.0
      %782 = vmatpush1.msra.mxu0 %v370
      %783 = vmatprep.subr.mxu0 0.0
      %784 = vmatpush1.msra.mxu0 %v369
      %785 = vmatprep.subr.mxu0 0.0
      %786 = vmatpush1.msra.mxu0 %v368
      %787 = vmatprep.subr.mxu0 0.0
      %788 = vmatpush1.msra.mxu0 %v367
      %789 = vmatprep.subr.mxu0 0.0
      %790 = vmatpush1.msra.mxu0 %v366
      %791 = vmatprep.subr.mxu0 0.0
      %792 = vmatpush1.msra.mxu0 %v365
      %793 = vmatprep.subr.mxu0 0.0
      %794 = vmatpush1.msra.mxu0 %v364
      %795 = vmatprep.subr.mxu0 0.0
      %796 = vmatpush2.msra.mxu0 %v473
      %797 = vmatprep.subr.mxu0 0.0
      %798 = vmatpush2.msra.mxu0 %v472
      %799 = vmatprep.subr.mxu0 0.0
      %800 = vmatpush2.msra.mxu0 %v471
      %801 = vmatprep.subr.mxu0 0.0
      %802 = vmatpush2.msra.mxu0 %v470
      %803 = vmatprep.subr.mxu0 0.0
      %804 = vmatpush2.msra.mxu0 %v469
      %805 = vmatprep.subr.mxu0 0.0
      %806 = vmatpush2.msra.mxu0 %v442
      %807 = vmatprep.subr.mxu0 0.0
      %808 = vmatpush2.msra.mxu0 %v441
      %809 = vmatprep.subr.mxu0 0.0
      %810 = vmatpush2.msra.mxu0 %v440
      %811 = vmatprep.subr.mxu0 0.0
      %812 = vmatpush2.msra.mxu0 %v439
      %813 = vmatprep.subr.mxu0 0.0
      %814 = vmatpush2.msra.mxu0 %v438
      %815 = vmatprep.subr.mxu0 0.0
      %816 = vmatpush2.msra.mxu0 %v437
      %817 = vmatprep.subr.mxu0 0.0
      %818 = vmatpush2.msra.mxu0 %v436
      %819 = vmatprep.subr.mxu0 0.0
      %820 = vmatpush2.msra.mxu0 %v435
      %821 = vmatprep.subr.mxu0 0.0
      %822 = vmatpush2.msra.mxu0 %v434
      %823 = vmatprep.subr.mxu0 0.0
      %824 = vmatpush2.msra.mxu0 %v407
      %825 = vmatprep.subr.mxu0 0.0
      %826 = vmatpush2.msra.mxu0 %v406
      %827 = vmatprep.mubr.f32.mxu0 %v619
      %828 = vmatmul.mubr.f32.gmra.mxu0 %v618
      %v829 = vpop.f32.mrf.mxu0
      %v830 = vadd.f32 0.0, %v829
      %v831 = vpop.f32.mrf.mxu0
      %832 = vmatprep.mubr.f32.mxu0 %v625
      %833 = vmatmul.mubr.f32.gmra.mxu0 %v624
      %v834 = vpop.f32.mrf.mxu0
      %v835 = vadd.f32 0.0, %v834
      %v836 = vpop.f32.mrf.mxu0
      %837 = vmatprep.mubr.f32.mxu0 %v631
      %838 = vmatmul.mubr.f32.gmra.mxu0 %v630
      %v839 = vpop.f32.mrf.mxu0
      %v840 = vadd.f32 0.0, %v839
      %v841 = vpop.f32.mrf.mxu0
      %842 = vmatprep.mubr.f32.mxu0 %v637
      %843 = vmatmul.mubr.f32.gmra.mxu0 %v636
      %v844 = vpop.f32.mrf.mxu0
      %v845 = vadd.f32 0.0, %v844
      %v846 = vpop.f32.mrf.mxu0
      %847 = vmatprep.mubr.f32.mxu0 %v643
      %848 = vmatmul.mubr.f32.gmra.mxu0 %v642
      %v849 = vpop.f32.mrf.mxu0
      %v850 = vadd.f32 0.0, %v849
      %v851 = vpop.f32.mrf.mxu0
      %852 = vmatprep.mubr.f32.mxu0 %v649
      %853 = vmatmul.mubr.f32.gmra.mxu0 %v648
      %v854 = vpop.f32.mrf.mxu0
      %v855 = vadd.f32 0.0, %v854
      %v856 = vpop.f32.mrf.mxu0
      %857 = vmatprep.mubr.f32.mxu0 %v655
      %858 = vmatmul.mubr.f32.gmra.mxu0 %v654
      %v859 = vpop.f32.mrf.mxu0
      %v860 = vadd.f32 0.0, %v859
      %v861 = vpop.f32.mrf.mxu0
      %862 = vmatprep.mubr.f32.mxu0 %v661
      %863 = vmatmul.mubr.f32.gmra.mxu0 %v660
      %v864 = vpop.f32.mrf.mxu0
      %v865 = vadd.f32 0.0, %v864
      %v866 = vpop.f32.mrf.mxu0
      %867 = vmatprep.mubr.f32.mxu0 %v667
      %868 = vmatmul.mubr.f32.gmra.mxu0 %v666
      %v869 = vpop.f32.mrf.mxu0
      %v870 = vadd.f32 0.0, %v869
      %v871 = vpop.f32.mrf.mxu0
      %872 = vmatprep.mubr.f32.mxu0 %v673
      %873 = vmatmul.mubr.f32.gmra.mxu0 %v672
      %v874 = vpop.f32.mrf.mxu0
      %v875 = vadd.f32 0.0, %v874
      %v876 = vpop.f32.mrf.mxu0
      %877 = vmatprep.mubr.f32.mxu0 %v679
      %878 = vmatmul.mubr.f32.gmra.mxu0 %v678
      %v879 = vpop.f32.mrf.mxu0
      %v880 = vadd.f32 0.0, %v879
      %v881 = vpop.f32.mrf.mxu0
      %882 = vmatprep.mubr.f32.mxu0 %v685
      %883 = vmatmul.mubr.f32.gmra.mxu0 %v684
      %v884 = vpop.f32.mrf.mxu0
      %v885 = vadd.f32 0.0, %v884
      %v886 = vpop.f32.mrf.mxu0
      %887 = vmatprep.mubr.f32.mxu0 %v691
      %888 = vmatmul.mubr.f32.gmra.mxu0 %v690
      %v889 = vpop.f32.mrf.mxu0
      %v890 = vadd.f32 0.0, %v889
      %v891 = vpop.f32.mrf.mxu0
      %892 = vmatprep.mubr.f32.mxu0 %v697
      %893 = vmatmul.mubr.f32.gmra.mxu0 %v696
      %v894 = vpop.f32.mrf.mxu0
      %v895 = vadd.f32 0.0, %v894
      %v896 = vpop.f32.mrf.mxu0
      %897 = vmatprep.mubr.f32.mxu0 %v703
      %898 = vmatmul.mubr.f32.gmra.mxu0 %v702
      %v899 = vpop.f32.mrf.mxu0
      %v900 = vadd.f32 0.0, %v899
      %v901 = vpop.f32.mrf.mxu0
      %902 = vmatprep.mubr.f32.mxu0 %v709
      %903 = vmatmul.mubr.f32.gmra.mxu0 %v708
      %v904 = vpop.f32.mrf.mxu0
      %v905 = vadd.f32 0.0, %v904
      %v906 = vpop.f32.mrf.mxu0
      %907 = vdwg.mxu0
      %908 = vmatprep.subr.mxu0 0.0
      %909 = vmatpush1.msra.mxu0 %v506
      %910 = vmatprep.subr.mxu0 0.0
      %911 = vmatpush1.msra.mxu0 %v505
      %912 = vmatprep.subr.mxu0 0.0
      %913 = vmatpush1.msra.mxu0 %v504
      %914 = vmatprep.subr.mxu0 0.0
      %915 = vmatpush1.msra.mxu0 %v337
      %916 = vmatprep.subr.mxu0 0.0
      %917 = vmatpush1.msra.mxu0 %v332
      %918 = vmatprep.subr.mxu0 0.0
      %919 = vmatpush1.msra.mxu0 %v331
      %920 = vmatprep.subr.mxu0 0.0
      %921 = vmatpush1.msra.mxu0 %v330
      %922 = vmatprep.subr.mxu0 0.0
      %923 = vmatpush1.msra.mxu0 %v329
      %924 = vmatprep.subr.mxu0 0.0
      %925 = vmatpush1.msra.mxu0 %v328
      %926 = vmatprep.subr.mxu0 0.0
      %927 = vmatpush1.msra.mxu0 %v327
      %928 = vmatprep.subr.mxu0 0.0
      %929 = vmatpush1.msra.mxu0 %v326
      %930 = vmatprep.subr.mxu0 0.0
      %931 = vmatpush1.msra.mxu0 %v325
      %932 = vmatprep.subr.mxu0 0.0
      %933 = vmatpush1.msra.mxu0 %v477
      %934 = vmatprep.subr.mxu0 0.0
      %935 = vmatpush1.msra.mxu0 %v476
      %936 = vmatprep.subr.mxu0 0.0
      %937 = vmatpush1.msra.mxu0 %v475
      %938 = vmatprep.subr.mxu0 0.0
      %939 = vmatpush1.msra.mxu0 %v474
      %940 = vmatprep.subr.mxu0 0.0
      %941 = vmatpush2.msra.mxu0 %v574
      %942 = vmatprep.subr.mxu0 0.0
      %943 = vmatpush2.msra.mxu0 %v547
      %944 = vmatprep.subr.mxu0 0.0
      %945 = vmatpush2.msra.mxu0 %v546
      %946 = vmatprep.subr.mxu0 0.0
      %947 = vmatpush2.msra.mxu0 %v545
      %948 = vmatprep.subr.mxu0 0.0
      %949 = vmatpush2.msra.mxu0 %v544
      %950 = vmatprep.subr.mxu0 0.0
      %951 = vmatpush2.msra.mxu0 %v543
      %952 = vmatprep.subr.mxu0 0.0
      %953 = vmatpush2.msra.mxu0 %v542
      %954 = vmatprep.subr.mxu0 0.0
      %955 = vmatpush2.msra.mxu0 %v541
      %956 = vmatprep.subr.mxu0 0.0
      %957 = vmatpush2.msra.mxu0 %v540
      %958 = vmatprep.subr.mxu0 0.0
      %959 = vmatpush2.msra.mxu0 %v539
      %960 = vmatprep.subr.mxu0 0.0
      %961 = vmatpush2.msra.mxu0 %v512
      %962 = vmatprep.subr.mxu0 0.0
      %963 = vmatpush2.msra.mxu0 %v511
      %964 = vmatprep.subr.mxu0 0.0
      %965 = vmatpush2.msra.mxu0 %v510
      %966 = vmatprep.subr.mxu0 0.0
      %967 = vmatpush2.msra.mxu0 %v509
      %968 = vmatprep.subr.mxu0 0.0
      %969 = vmatpush2.msra.mxu0 %v508
      %970 = vmatprep.subr.mxu0 0.0
      %971 = vmatpush2.msra.mxu0 %v507
      %972 = vmatprep.mubr.f32.mxu0 %v621
      %973 = vmatmul.mubr.f32.gmra.mxu0 %v620
      %v974 = vpop.f32.mrf.mxu0
      %v975 = vadd.f32 %v830, %v974
      %v976 = vpop.f32.mrf.mxu0
      %977 = vmatprep.mubr.f32.mxu0 %v627
      %978 = vmatmul.mubr.f32.gmra.mxu0 %v626
      %v979 = vpop.f32.mrf.mxu0
      %v980 = vadd.f32 %v835, %v979
      %v981 = vpop.f32.mrf.mxu0
      %982 = vmatprep.mubr.f32.mxu0 %v633
      %983 = vmatmul.mubr.f32.gmra.mxu0 %v632
      %v984 = vpop.f32.mrf.mxu0
      %v985 = vadd.f32 %v840, %v984
      %v986 = vpop.f32.mrf.mxu0
      %987 = vmatprep.mubr.f32.mxu0 %v639
      %988 = vmatmul.mubr.f32.gmra.mxu0 %v638
      %v989 = vpop.f32.mrf.mxu0
      %v990 = vadd.f32 %v845, %v989
      %v991 = vpop.f32.mrf.mxu0
      %992 = vmatprep.mubr.f32.mxu0 %v645
      %993 = vmatmul.mubr.f32.gmra.mxu0 %v644
      %v994 = vpop.f32.mrf.mxu0
      %v995 = vadd.f32 %v850, %v994
      %v996 = vpop.f32.mrf.mxu0
      %997 = vmatprep.mubr.f32.mxu0 %v651
      %998 = vmatmul.mubr.f32.gmra.mxu0 %v650
      %v999 = vpop.f32.mrf.mxu0
      %v1000 = vadd.f32 %v855, %v999
      %v1001 = vpop.f32.mrf.mxu0
      %1002 = vmatprep.mubr.f32.mxu0 %v657
      %1003 = vmatmul.mubr.f32.gmra.mxu0 %v656
      %v1004 = vpop.f32.mrf.mxu0
      %v1005 = vadd.f32 %v860, %v1004
      %v1006 = vpop.f32.mrf.mxu0
      %1007 = vmatprep.mubr.f32.mxu0 %v663
      %1008 = vmatmul.mubr.f32.gmra.mxu0 %v662
      %v1009 = vpop.f32.mrf.mxu0
      %v1010 = vadd.f32 %v865, %v1009
      %v1011 = vpop.f32.mrf.mxu0
      %1012 = vmatprep.mubr.f32.mxu0 %v669
      %1013 = vmatmul.mubr.f32.gmra.mxu0 %v668
      %v1014 = vpop.f32.mrf.mxu0
      %v1015 = vadd.f32 %v870, %v1014
      %v1016 = vpop.f32.mrf.mxu0
      %1017 = vmatprep.mubr.f32.mxu0 %v675
      %1018 = vmatmul.mubr.f32.gmra.mxu0 %v674
      %v1019 = vpop.f32.mrf.mxu0
      %v1020 = vadd.f32 %v875, %v1019
      %v1021 = vpop.f32.mrf.mxu0
      %1022 = vmatprep.mubr.f32.mxu0 %v681
      %1023 = vmatmul.mubr.f32.gmra.mxu0 %v680
      %v1024 = vpop.f32.mrf.mxu0
      %v1025 = vadd.f32 %v880, %v1024
      %v1026 = vpop.f32.mrf.mxu0
      %1027 = vmatprep.mubr.f32.mxu0 %v687
      %1028 = vmatmul.mubr.f32.gmra.mxu0 %v686
      %v1029 = vpop.f32.mrf.mxu0
      %v1030 = vadd.f32 %v885, %v1029
      %v1031 = vpop.f32.mrf.mxu0
      %1032 = vmatprep.mubr.f32.mxu0 %v693
      %1033 = vmatmul.mubr.f32.gmra.mxu0 %v692
      %v1034 = vpop.f32.mrf.mxu0
      %v1035 = vadd.f32 %v890, %v1034
      %v1036 = vpop.f32.mrf.mxu0
      %1037 = vmatprep.mubr.f32.mxu0 %v699
      %1038 = vmatmul.mubr.f32.gmra.mxu0 %v698
      %v1039 = vpop.f32.mrf.mxu0
      %v1040 = vadd.f32 %v895, %v1039
      %v1041 = vpop.f32.mrf.mxu0
      %1042 = vmatprep.mubr.f32.mxu0 %v705
      %1043 = vmatmul.mubr.f32.gmra.mxu0 %v704
      %v1044 = vpop.f32.mrf.mxu0
      %v1045 = vadd.f32 %v900, %v1044
      %v1046 = vpop.f32.mrf.mxu0
      %1047 = vmatprep.mubr.f32.mxu0 %v711
      %1048 = vmatmul.mubr.f32.gmra.mxu0 %v710
      %v1049 = vpop.f32.mrf.mxu0
      %v1050 = vadd.f32 %v905, %v1049
      %v1051 = vpop.f32.mrf.mxu0
      %1052 = vdwg.mxu0
      %1053 = vmatprep.subr.mxu0 0.0
      %1054 = vmatpush1.msra.mxu0 %v616
      %1055 = vmatprep.subr.mxu0 0.0
      %1056 = vmatpush1.msra.mxu0 %v615
      %1057 = vmatprep.subr.mxu0 0.0
      %1058 = vmatpush1.msra.mxu0 %v614
      %1059 = vmatprep.subr.mxu0 0.0
      %1060 = vmatpush1.msra.mxu0 %v613
      %1061 = vmatprep.subr.mxu0 0.0
      %1062 = vmatpush1.msra.mxu0 %v612
      %1063 = vmatprep.subr.mxu0 0.0
      %1064 = vmatpush1.msra.mxu0 %v611
      %1065 = vmatprep.subr.mxu0 0.0
      %1066 = vmatpush1.msra.mxu0 %v610
      %1067 = vmatprep.subr.mxu0 0.0
      %1068 = vmatpush1.msra.mxu0 %v609
      %1069 = vmatprep.subr.mxu0 0.0
      %1070 = vmatpush1.msra.mxu0 %v582
      %1071 = vmatprep.subr.mxu0 0.0
      %1072 = vmatpush1.msra.mxu0 %v581
      %1073 = vmatprep.subr.mxu0 0.0
      %1074 = vmatpush1.msra.mxu0 %v580
      %1075 = vmatprep.subr.mxu0 0.0
      %1076 = vmatpush1.msra.mxu0 %v579
      %1077 = vmatprep.subr.mxu0 0.0
      %1078 = vmatpush1.msra.mxu0 %v578
      %1079 = vmatprep.subr.mxu0 0.0
      %1080 = vmatpush1.msra.mxu0 %v577
      %1081 = vmatprep.subr.mxu0 0.0
      %1082 = vmatpush1.msra.mxu0 %v576
      %1083 = vmatprep.subr.mxu0 0.0
      %1084 = vmatpush1.msra.mxu0 %v575
      %1085 = vmatprep.subr.mxu0 0.0
      %1086 = vmatpush2.msra.mxu0 0.0
      %1087 = vmatprep.subr.mxu0 0.0
      %1088 = vmatpush2.msra.mxu0 0.0
      %1089 = vmatprep.subr.mxu0 0.0
      %1090 = vmatpush2.msra.mxu0 0.0
      %1091 = vmatprep.subr.mxu0 0.0
      %1092 = vmatpush2.msra.mxu0 0.0
      %1093 = vmatprep.subr.mxu0 0.0
      %1094 = vmatpush2.msra.mxu0 0.0
      %1095 = vmatprep.subr.mxu0 0.0
      %1096 = vmatpush2.msra.mxu0 0.0
      %1097 = vmatprep.subr.mxu0 0.0
      %1098 = vmatpush2.msra.mxu0 0.0
      %1099 = vmatprep.subr.mxu0 0.0
      %1100 = vmatpush2.msra.mxu0 0.0
      %1101 = vmatprep.subr.mxu0 0.0
      %1102 = vmatpush2.msra.mxu0 0.0
      %1103 = vmatprep.subr.mxu0 0.0
      %1104 = vmatpush2.msra.mxu0 0.0
      %1105 = vmatprep.subr.mxu0 0.0
      %1106 = vmatpush2.msra.mxu0 0.0
      %1107 = vmatprep.subr.mxu0 0.0
      %1108 = vmatpush2.msra.mxu0 0.0
      %1109 = vmatprep.subr.mxu0 0.0
      %1110 = vmatpush2.msra.mxu0 0.0
      %1111 = vmatprep.subr.mxu0 0.0
      %1112 = vmatpush2.msra.mxu0 0.0
      %1113 = vmatprep.subr.mxu0 0.0
      %1114 = vmatpush2.msra.mxu0 0.0
      %1115 = vmatprep.subr.mxu0 0.0
      %1116 = vmatpush2.msra.mxu0 %v617
      %1117 = vmatprep.mubr.f32.mxu0 %v716
      %1118 = vmatmul.mubr.f32.gmra.mxu0 %v622
      %v1119 = vpop.f32.mrf.mxu0
      %v1120 = vadd.f32 %v975, %v1119
      %v1121 = vpop.f32.mrf.mxu0
      %1122 = vmatprep.mubr.f32.mxu0 %v719
      %1123 = vmatmul.mubr.f32.gmra.mxu0 %v628
      %v1124 = vpop.f32.mrf.mxu0
      %v1125 = vadd.f32 %v980, %v1124
      %v1126 = vpop.f32.mrf.mxu0
      %1127 = vmatprep.mubr.f32.mxu0 %v722
      %1128 = vmatmul.mubr.f32.gmra.mxu0 %v634
      %v1129 = vpop.f32.mrf.mxu0
      %v1130 = vadd.f32 %v985, %v1129
      %v1131 = vpop.f32.mrf.mxu0
      %1132 = vmatprep.mubr.f32.mxu0 %v725
      %1133 = vmatmul.mubr.f32.gmra.mxu0 %v640
      %v1134 = vpop.f32.mrf.mxu0
      %v1135 = vadd.f32 %v990, %v1134
      %v1136 = vpop.f32.mrf.mxu0
      %1137 = vmatprep.mubr.f32.mxu0 %v728
      %1138 = vmatmul.mubr.f32.gmra.mxu0 %v646
      %v1139 = vpop.f32.mrf.mxu0
      %v1140 = vadd.f32 %v995, %v1139
      %v1141 = vpop.f32.mrf.mxu0
      %1142 = vmatprep.mubr.f32.mxu0 %v731
      %1143 = vmatmul.mubr.f32.gmra.mxu0 %v652
      %v1144 = vpop.f32.mrf.mxu0
      %v1145 = vadd.f32 %v1000, %v1144
      %v1146 = vpop.f32.mrf.mxu0
      %1147 = vmatprep.mubr.f32.mxu0 %v734
      %1148 = vmatmul.mubr.f32.gmra.mxu0 %v658
      %v1149 = vpop.f32.mrf.mxu0
      %v1150 = vadd.f32 %v1005, %v1149
      %v1151 = vpop.f32.mrf.mxu0
      %1152 = vmatprep.mubr.f32.mxu0 %v737
      %1153 = vmatmul.mubr.f32.gmra.mxu0 %v664
      %v1154 = vpop.f32.mrf.mxu0
      %v1155 = vadd.f32 %v1010, %v1154
      %v1156 = vpop.f32.mrf.mxu0
      %1157 = vmatprep.mubr.f32.mxu0 %v740
      %1158 = vmatmul.mubr.f32.gmra.mxu0 %v670
      %v1159 = vpop.f32.mrf.mxu0
      %v1160 = vadd.f32 %v1015, %v1159
      %v1161 = vpop.f32.mrf.mxu0
      %1162 = vmatprep.mubr.f32.mxu0 %v743
      %1163 = vmatmul.mubr.f32.gmra.mxu0 %v676
      %v1164 = vpop.f32.mrf.mxu0
      %v1165 = vadd.f32 %v1020, %v1164
      %v1166 = vpop.f32.mrf.mxu0
      %1167 = vmatprep.mubr.f32.mxu0 %v746
      %1168 = vmatmul.mubr.f32.gmra.mxu0 %v682
      %v1169 = vpop.f32.mrf.mxu0
      %v1170 = vadd.f32 %v1025, %v1169
      %v1171 = vpop.f32.mrf.mxu0
      %1172 = vmatprep.mubr.f32.mxu0 %v749
      %1173 = vmatmul.mubr.f32.gmra.mxu0 %v688
      %v1174 = vpop.f32.mrf.mxu0
      %v1175 = vadd.f32 %v1030, %v1174
      %v1176 = vpop.f32.mrf.mxu0
      %1177 = vmatprep.mubr.f32.mxu0 %v752
      %1178 = vmatmul.mubr.f32.gmra.mxu0 %v694
      %v1179 = vpop.f32.mrf.mxu0
      %v1180 = vadd.f32 %v1035, %v1179
      %v1181 = vpop.f32.mrf.mxu0
      %1182 = vmatprep.mubr.f32.mxu0 %v755
      %1183 = vmatmul.mubr.f32.gmra.mxu0 %v700
      %v1184 = vpop.f32.mrf.mxu0
      %v1185 = vadd.f32 %v1040, %v1184
      %v1186 = vpop.f32.mrf.mxu0
      %1187 = vmatprep.mubr.f32.mxu0 %v758
      %1188 = vmatmul.mubr.f32.gmra.mxu0 %v706
      %v1189 = vpop.f32.mrf.mxu0
      %v1190 = vadd.f32 %v1045, %v1189
      %v1191 = vpop.f32.mrf.mxu0
      %1192 = vmatprep.mubr.f32.mxu0 %v761
      %1193 = vmatmul.mubr.f32.gmra.mxu0 %v712
      %v1194 = vpop.f32.mrf.mxu0
      %v1195 = vadd.f32 %v1050, %v1194
      %v1196 = vpop.f32.mrf.mxu0
      %1197 = vdwg.mxu0
      %v1198 = vld [vmem:[%s4] sm:$0xff]
      %v1199 = vld [vmem:[%s4 + $0x8] sm:$0xff]
      %v1200 = vld [vmem:[%s4 + $0x10] sm:$0xff]
      %v1201 = vld [vmem:[%s4 + $0x18] sm:$0xff]
      %v1202 = vld [vmem:[%s4 + $0x20] sm:$0xff]
      %v1203 = vld [vmem:[%s4 + $0x28] sm:$0xff]
      %v1204 = vld [vmem:[%s4 + $0x30] sm:$0xff]
      %v1205 = vld [vmem:[%s4 + $0x38] sm:$0xff]
      %v1206 = vld [vmem:[%s4 + $0x40] sm:$0xff]
      %v1207 = vld [vmem:[%s4 + $0x48] sm:$0xff]
      %v1208 = vld [vmem:[%s4 + $0x50] sm:$0xff]
      %v1209 = vld [vmem:[%s4 + $0x58] sm:$0xff]
      %v1210 = vld [vmem:[%s4 + $0x60] sm:$0xff]
      %v1211 = vld [vmem:[%s4 + $0x68] sm:$0xff]
      %v1212 = vld [vmem:[%s4 + $0x70] sm:$0xff]
      %v1213 = vld [vmem:[%s4 + $0x78] sm:$0xff]
      %1215 = vset.pattern.permute.xlu0 0
      %1216 = vperm.xlu0 %1215, %v1198
      %v1217 = vpop.permute.xlu0 %1216
      %1220 = vset.pattern.permute.xlu0 0
      %1221 = vperm.xlu0 %1220, %v1199
      %v1222 = vpop.permute.xlu0 %1221
      %1225 = vset.pattern.permute.xlu0 0
      %1226 = vperm.xlu0 %1225, %v1200
      %v1227 = vpop.permute.xlu0 %1226
      %1230 = vset.pattern.permute.xlu0 0
      %1231 = vperm.xlu0 %1230, %v1201
      %v1232 = vpop.permute.xlu0 %1231
      %1235 = vset.pattern.permute.xlu0 0
      %1236 = vperm.xlu0 %1235, %v1202
      %v1237 = vpop.permute.xlu0 %1236
      %1240 = vset.pattern.permute.xlu0 0
      %1241 = vperm.xlu0 %1240, %v1203
      %v1242 = vpop.permute.xlu0 %1241
      %1245 = vset.pattern.permute.xlu0 0
      %1246 = vperm.xlu0 %1245, %v1204
      %v1247 = vpop.permute.xlu0 %1246
      %1250 = vset.pattern.permute.xlu0 0
      %1251 = vperm.xlu0 %1250, %v1205
      %v1252 = vpop.permute.xlu0 %1251
      %1255 = vset.pattern.permute.xlu0 0
      %1256 = vperm.xlu0 %1255, %v1206
      %v1257 = vpop.permute.xlu0 %1256
      %1260 = vset.pattern.permute.xlu0 0
      %1261 = vperm.xlu0 %1260, %v1207
      %v1262 = vpop.permute.xlu0 %1261
      %1265 = vset.pattern.permute.xlu0 0
      %1266 = vperm.xlu0 %1265, %v1208
      %v1267 = vpop.permute.xlu0 %1266
      %1270 = vset.pattern.permute.xlu0 0
      %1271 = vperm.xlu0 %1270, %v1209
      %v1272 = vpop.permute.xlu0 %1271
      %1275 = vset.pattern.permute.xlu0 0
      %1276 = vperm.xlu0 %1275, %v1210
      %v1277 = vpop.permute.xlu0 %1276
      %1280 = vset.pattern.permute.xlu0 0
      %1281 = vperm.xlu0 %1280, %v1211
      %v1282 = vpop.permute.xlu0 %1281
      %1285 = vset.pattern.permute.xlu0 0
      %1286 = vperm.xlu0 %1285, %v1212
      %v1287 = vpop.permute.xlu0 %1286
      %1290 = vset.pattern.permute.xlu0 0
      %1291 = vperm.xlu0 %1290, %v1213
      %v1292 = vpop.permute.xlu0 %1291
      %v1294 = vmul.f32 %v1120, %v1217
      %v1295 = vmul.f32 %v1125, %v1222
      %v1296 = vmul.f32 %v1130, %v1227
      %v1297 = vmul.f32 %v1135, %v1232
      %v1298 = vmul.f32 %v1140, %v1237
      %v1299 = vmul.f32 %v1145, %v1242
      %v1300 = vmul.f32 %v1150, %v1247
      %v1301 = vmul.f32 %v1155, %v1252
      %v1302 = vmul.f32 %v1160, %v1257
      %v1303 = vmul.f32 %v1165, %v1262
      %v1304 = vmul.f32 %v1170, %v1267
      %v1305 = vmul.f32 %v1175, %v1272
      %v1306 = vmul.f32 %v1180, %v1277
      %v1307 = vmul.f32 %v1185, %v1282
      %v1308 = vmul.f32 %v1190, %v1287
      %v1309 = vmul.f32 %v1195, %v1292
      %v1310 = vld [vmem:[%s5] sm:$0xff]
      %v1311 = vld [vmem:[%s5 + $0x8] sm:$0xff]
      %v1312 = vld [vmem:[%s5 + $0x10] sm:$0xff]
      %v1313 = vld [vmem:[%s5 + $0x18] sm:$0xff]
      %v1314 = vld [vmem:[%s5 + $0x20] sm:$0xff]
      %v1315 = vld [vmem:[%s5 + $0x28] sm:$0xff]
      %v1316 = vld [vmem:[%s5 + $0x30] sm:$0xff]
      %v1317 = vld [vmem:[%s5 + $0x38] sm:$0xff]
      %v1318 = vld [vmem:[%s5 + $0x40] sm:$0xff]
      %v1319 = vld [vmem:[%s5 + $0x48] sm:$0xff]
      %v1320 = vld [vmem:[%s5 + $0x50] sm:$0xff]
      %v1321 = vld [vmem:[%s5 + $0x58] sm:$0xff]
      %v1322 = vld [vmem:[%s5 + $0x60] sm:$0xff]
      %v1323 = vld [vmem:[%s5 + $0x68] sm:$0xff]
      %v1324 = vld [vmem:[%s5 + $0x70] sm:$0xff]
      %v1325 = vld [vmem:[%s5 + $0x78] sm:$0xff]
      %1327 = vset.pattern.permute.xlu0 0
      %1328 = vperm.xlu0 %1327, %v1310
      %v1329 = vpop.permute.xlu0 %1328
      %1332 = vset.pattern.permute.xlu0 0
      %1333 = vperm.xlu0 %1332, %v1311
      %v1334 = vpop.permute.xlu0 %1333
      %1337 = vset.pattern.permute.xlu0 0
      %1338 = vperm.xlu0 %1337, %v1312
      %v1339 = vpop.permute.xlu0 %1338
      %1342 = vset.pattern.permute.xlu0 0
      %1343 = vperm.xlu0 %1342, %v1313
      %v1344 = vpop.permute.xlu0 %1343
      %1347 = vset.pattern.permute.xlu0 0
      %1348 = vperm.xlu0 %1347, %v1314
      %v1349 = vpop.permute.xlu0 %1348
      %1352 = vset.pattern.permute.xlu0 0
      %1353 = vperm.xlu0 %1352, %v1315
      %v1354 = vpop.permute.xlu0 %1353
      %1357 = vset.pattern.permute.xlu0 0
      %1358 = vperm.xlu0 %1357, %v1316
      %v1359 = vpop.permute.xlu0 %1358
      %1362 = vset.pattern.permute.xlu0 0
      %1363 = vperm.xlu0 %1362, %v1317
      %v1364 = vpop.permute.xlu0 %1363
      %1367 = vset.pattern.permute.xlu0 0
      %1368 = vperm.xlu0 %1367, %v1318
      %v1369 = vpop.permute.xlu0 %1368
      %1372 = vset.pattern.permute.xlu0 0
      %1373 = vperm.xlu0 %1372, %v1319
      %v1374 = vpop.permute.xlu0 %1373
      %1377 = vset.pattern.permute.xlu0 0
      %1378 = vperm.xlu0 %1377, %v1320
      %v1379 = vpop.permute.xlu0 %1378
      %1382 = vset.pattern.permute.xlu0 0
      %1383 = vperm.xlu0 %1382, %v1321
      %v1384 = vpop.permute.xlu0 %1383
      %1387 = vset.pattern.permute.xlu0 0
      %1388 = vperm.xlu0 %1387, %v1322
      %v1389 = vpop.permute.xlu0 %1388
      %1392 = vset.pattern.permute.xlu0 0
      %1393 = vperm.xlu0 %1392, %v1323
      %v1394 = vpop.permute.xlu0 %1393
      %1397 = vset.pattern.permute.xlu0 0
      %1398 = vperm.xlu0 %1397, %v1324
      %v1399 = vpop.permute.xlu0 %1398
      %1402 = vset.pattern.permute.xlu0 0
      %1403 = vperm.xlu0 %1402, %v1325
      %v1404 = vpop.permute.xlu0 %1403
      %v1406 = vadd.f32 %v1294, %v1329
      %v1407 = vadd.f32 %v1295, %v1334
      %v1408 = vadd.f32 %v1296, %v1339
      %v1409 = vadd.f32 %v1297, %v1344
      %v1410 = vadd.f32 %v1298, %v1349
      %v1411 = vadd.f32 %v1299, %v1354
      %v1412 = vadd.f32 %v1300, %v1359
      %v1413 = vadd.f32 %v1301, %v1364
      %v1414 = vadd.f32 %v1302, %v1369
      %v1415 = vadd.f32 %v1303, %v1374
      %v1416 = vadd.f32 %v1304, %v1379
      %v1417 = vadd.f32 %v1305, %v1384
      %v1418 = vadd.f32 %v1306, %v1389
      %v1419 = vadd.f32 %v1307, %v1394
      %v1420 = vadd.f32 %v1308, %v1399
      %v1421 = vadd.f32 %v1309, %v1404
      %v1422 = vmax.f32 %v1406, 0.0
      %v1423 = vmax.f32 %v1407, 0.0
      %v1424 = vmax.f32 %v1408, 0.0
      %v1425 = vmax.f32 %v1409, 0.0
      %v1426 = vmax.f32 %v1410, 0.0
      %v1427 = vmax.f32 %v1411, 0.0
      %v1428 = vmax.f32 %v1412, 0.0
      %v1429 = vmax.f32 %v1413, 0.0
      %v1430 = vmax.f32 %v1414, 0.0
      %v1431 = vmax.f32 %v1415, 0.0
      %v1432 = vmax.f32 %v1416, 0.0
      %v1433 = vmax.f32 %v1417, 0.0
      %v1434 = vmax.f32 %v1418, 0.0
      %v1435 = vmax.f32 %v1419, 0.0
      %v1436 = vmax.f32 %v1420, 0.0
      %v1437 = vmax.f32 %v1421, 0.0
      %1438 = vst [vmem:[%s323] sm:$0xff] %v1422
      %1439 = vst [vmem:[%s323 + $0x8] sm:$0xff] %v1423
      %1440 = vst [vmem:[%s323 + $0x10] sm:$0xff] %v1424
      %1441 = vst [vmem:[%s323 + $0x18] sm:$0xff] %v1425
      %1442 = vst [vmem:[%s323 + $0x20] sm:$0xff] %v1426
      %1443 = vst [vmem:[%s323 + $0x28] sm:$0xff] %v1427
      %1444 = vst [vmem:[%s323 + $0x30] sm:$0xff] %v1428
      %1445 = vst [vmem:[%s323 + $0x38] sm:$0xff] %v1429
      %1446 = vst [vmem:[%s323 + $0x40] sm:$0xff] %v1430
      %1447 = vst [vmem:[%s323 + $0x48] sm:$0xff] %v1431
      %1448 = vst [vmem:[%s323 + $0x50] sm:$0xff] %v1432
      %1449 = vst [vmem:[%s323 + $0x58] sm:$0xff] %v1433
      %1450 = vst [vmem:[%s323 + $0x60] sm:$0xff] %v1434
      %1451 = vst [vmem:[%s323 + $0x68] sm:$0xff] %v1435
      %1452 = vst [vmem:[%s323 + $0x70] sm:$0xff] %v1436
      %1453 = vst [vmem:[%s323 + $0x78] sm:$0xff] %v1437
      %s1454 = smul.u32 2, %s22
      %p1455 = scmp.lt.s32.totalorder %s21, 1
      %s1456 = scalar_select %p1455, %s21, 1
      %p1457 = scmp.lt.s32.totalorder %s1454, 1
      %s1458 = scalar_select %p1457, %s1454, 1
      %s1459 = smul.addr %s1456, 16
      %s1460 = sadd.s32 %s1458, %s1459
      %s1461 = smul.addr %s1460, 8
      %s1462 = scalar_lea.vmem %s6, %s1461
      // Predicated region
      $region45: #{_lambda_.3} parent=43 // pred_check
        %p1463 = pneg %p189
      $region46: #{_lambda_.3} parent=43 // pred_check_branch
        %1465 = sbr.rel (%p1463) target = $region48
      $region47: #{_lambda_.3} parent=43 // pred_region
        %s1466 = smul.u32 2, %s22
      $region48: #{_lambda_.3} parent=43 // pred_fallthru
        _
    $region44: #{_lambda_.3} parent=5 // pred_fallthru
      _
    %p1467 = scmp.le.s32.totalorder 2, %s12
    // Predicated region
    $region49: #{_lambda_.3} parent=5 // pred_check
      %p1468 = pneg %p1467
    $region50: #{_lambda_.3} parent=5 // pred_check_branch
      %1470 = sbr.rel (%p1468) target = $region52
    $region51: #{_lambda_.3} parent=5 // pred_region
      %s1471 = ssub.s32 %s12, 2
      // Predicated region
      $region53: #{_lambda_.3} parent=51 // pred_check
        %p1472 = pneg %p195
      $region54: #{_lambda_.3} parent=51 // pred_check_branch
        %1474 = sbr.rel (%p1472) target = $region56
      $region55: #{_lambda_.3} parent=51 // pred_region
        %s1475 = smul.u32 2, %s24
        %p1476 = scmp.lt.s32.totalorder %s23, 1
        %s1477 = scalar_select %p1476, %s23, 1
        %p1478 = scmp.lt.s32.totalorder %s1475, 1
        %s1479 = scalar_select %p1478, %s1475, 1
        %s1480 = smul.addr %s1477, 16
        %s1481 = sadd.s32 %s1479, %s1480
        %s1482 = smul.addr %s1481, 8
        %s1483 = scalar_lea.vmem %s6, %s1482
      $region56: #{_lambda_.3} parent=51 // pred_fallthru
        _
    $region52: #{_lambda_.3} parent=5 // pred_fallthru
      _
  $region6: #{_lambda_.3} parent=0 // loop_footer
    %s16 = sadd.s32 1, %s12
  $region7: #{_lambda_.3} parent=0 // loop_footer_branch
    %11 = sbr.rel target = $region3
  $region8: #{_lambda_.3} parent=0 // loop_exit
    _

</llo_original>
